<compile_context>
chip_gen: v7x
topology: tpu7x:2x2x1
jax: 0.10.0
libtpu: 0.0.40
codegen_flags: <defaults>
</compile_context>

<pallas_src>
import jax
import jax.numpy as jnp
from jax.experimental import pallas as pl
from jax.experimental.pallas import tpu as pltpu


def open_lstm_forward(seq, w_ih, w_hh, b_ih, b_hh):
    """seq: [T, B, I]; w_ih: [4H, I]; w_hh: [4H, H]; b_ih/b_hh: [4H].
    Returns (hid, cell), each [T, 1, B, H] (OpenLSTM semantics)."""
    T, B, I = seq.shape
    H = w_hh.shape[1]
    LANES = 128
    Hp = ((H + LANES - 1) // LANES) * LANES   # lane-aligned per-gate width
    f32 = jnp.float32

    # Flatten time/batch for the hoisted input projection (free, XLA-side).
    seq2d = jnp.asarray(seq, f32).reshape(T * B, I)            # [T*B, I]

    # Pad each gate's output dim H -> Hp (and W_hh's input dim H -> Hp) so
    # every gate occupies whole 128-lane tiles inside the kernel.  Padded
    # positions carry exact zeros through the whole recurrence:
    #   gate_pad = 0 -> c_pad = sigmoid(0)*0 + sigmoid(0)*tanh(0) = 0,
    #   h_pad = sigmoid(0)*tanh(0) = 0, and W_hh rows for padded h are zero.
    w_ih4 = jnp.asarray(w_ih, f32).reshape(4, H, I)
    wih_t = (jnp.zeros((4, Hp, I), f32).at[:, :H, :].set(w_ih4)
             .reshape(4 * Hp, I).T)                            # [I, 4Hp]
    w_hh4 = jnp.asarray(w_hh, f32).reshape(4, H, H)
    whh_t = (jnp.zeros((4, Hp, Hp), f32).at[:, :H, :H].set(w_hh4)
             .reshape(4 * Hp, Hp).T)                           # [Hp, 4Hp]
    bias = (jnp.zeros((4, Hp), f32)
            .at[:, :H].set((jnp.asarray(b_ih, f32)
                            + jnp.asarray(b_hh, f32)).reshape(4, H))
            .reshape(1, 4 * Hp))                               # [1, 4Hp]

    def _sig(x):
        # sigmoid(x) == 0.5 * (tanh(0.5*x) + 1): single EUP op + cheap VPU ops.
        return 0.5 * jnp.tanh(0.5 * x) + 0.5

    def kernel(x_ref, wih_ref, whh_ref, b_ref, hid_ref, cell_ref, gx_ref):
        # Hoisted (non-recurrent) input projection for all timesteps at once.
        gx_ref[...] = (jnp.dot(x_ref[...], wih_ref[...],
                               preferred_element_type=jnp.float32)
                       + b_ref[...])                           # [T*B, 4Hp]

        h = jnp.zeros((B, Hp), jnp.float32)
        c = jnp.zeros((B, Hp), jnp.float32)

        # T is small -> fully unrolled at trace time; all slice indices static.
        # TODO(synk): for long sequences, chunk T over the grid
        # (BlockSpec((Tc, B, I), lambda t: (t, 0, 0)), 'arbitrary' semantics)
        # and carry h/c in VMEM scratch across grid steps.
        for t in range(T):
            gates = (gx_ref[pl.ds(t * B, B), :]
                     + jnp.dot(h, whh_ref[...],
                               preferred_element_type=jnp.float32))  # [B, 4Hp]
            i_g = _sig(gates[:, 0 * Hp:1 * Hp])
            f_g = _sig(gates[:, 1 * Hp:2 * Hp])
            g_g = jnp.tanh(gates[:, 2 * Hp:3 * Hp])
            o_g = _sig(gates[:, 3 * Hp:4 * Hp])
            c = f_g * c + i_g * g_g
            h = o_g * jnp.tanh(c)
            hid_ref[t] = h                                     # 128-lane dense
            cell_ref[t] = c

    hid_p, cell_p = pl.pallas_call(
        kernel,
        out_shape=(jax.ShapeDtypeStruct((T, B, Hp), f32),
                   jax.ShapeDtypeStruct((T, B, Hp), f32)),
        grid_spec=pltpu.PrefetchScalarGridSpec(
            num_scalar_prefetch=0,
            grid=(1,),
            in_specs=[
                pl.BlockSpec((T * B, I), lambda i: (0, 0)),        # x (all t)
                pl.BlockSpec((I, 4 * Hp), lambda i: (0, 0)),       # W_ih^T (pad)
                pl.BlockSpec((Hp, 4 * Hp), lambda i: (0, 0)),      # W_hh^T (pad)
                pl.BlockSpec((1, 4 * Hp), lambda i: (0, 0)),       # bias (pad)
            ],
            out_specs=[
                pl.BlockSpec((T, B, Hp), lambda i: (0, 0, 0)),
                pl.BlockSpec((T, B, Hp), lambda i: (0, 0, 0)),
            ],
            scratch_shapes=[
                pltpu.VMEM((T * B, 4 * Hp), jnp.float32),          # gates_x
            ],
        ),
        compiler_params=pltpu.CompilerParams(
            dimension_semantics=("arbitrary",)),   # recurrence: keep sequential
    )(seq2d, wih_t, whh_t, bias)

    # Drop lane padding, add the num_layers=1 axis (matches torch.stack).
    hid = hid_p[:, :, :H].reshape(T, 1, B, H)
    cell = cell_p[:, :, :H].reshape(T, 1, B, H)
    return hid, cell


def _reference_open_lstm(seq, w_ih, w_hh, b_ih, b_hh):
    """Pure-JAX reference (lax.scan) with PyTorch LSTM cell semantics."""
    T, B, I = seq.shape
    H = w_hh.shape[1]

    def step(carry, x):
        h, c = carry
        gates = x @ w_ih.T + b_ih + h @ w_hh.T + b_hh
        i_g = jax.nn.sigmoid(gates[:, 0 * H:1 * H])
        f_g = jax.nn.sigmoid(gates[:, 1 * H:2 * H])
        g_g = jnp.tanh(gates[:, 2 * H:3 * H])
        o_g = jax.nn.sigmoid(gates[:, 3 * H:4 * H])
        c_new = f_g * c + i_g * g_g
        h_new = o_g * jnp.tanh(c_new)
        return (h_new, c_new), (h_new, c_new)

    init = (jnp.zeros((B, H), jnp.float32), jnp.zeros((B, H), jnp.float32))
    _, (hs, cs) = jax.lax.scan(step, init, seq)
    return hs.reshape(T, 1, B, H), cs.reshape(T, 1, B, H)


if __name__ == "__main__":
    T, B, FEAT_IN, FEAT_OUT = 8, 2, 16, 32

    key = jax.random.PRNGKey(0)
    k_seq, k_wih, k_whh, k_bih, k_bhh = jax.random.split(key, 5)

    # Deterministic "PyTorch-like" init: uniform(-1/sqrt(H), 1/sqrt(H))
    bound = 1.0 / (FEAT_OUT ** 0.5)
    seq = jax.random.normal(k_seq, (T, B, FEAT_IN), dtype=jnp.float32)
    w_ih = jax.random.uniform(k_wih, (4 * FEAT_OUT, FEAT_IN),
                              minval=-bound, maxval=bound, dtype=jnp.float32)
    w_hh = jax.random.uniform(k_whh, (4 * FEAT_OUT, FEAT_OUT),
                              minval=-bound, maxval=bound, dtype=jnp.float32)
    b_ih = jax.random.uniform(k_bih, (4 * FEAT_OUT,),
                              minval=-bound, maxval=bound, dtype=jnp.float32)
    b_hh = jax.random.uniform(k_bhh, (4 * FEAT_OUT,),
                              minval=-bound, maxval=bound, dtype=jnp.float32)

    hid, cell = open_lstm_forward(seq, w_ih, w_hh, b_ih, b_hh)
    jax.block_until_ready((hid, cell))

    ref_hid, ref_cell = _reference_open_lstm(seq, w_ih, w_hh, b_ih, b_hh)
    assert hid.shape == (T, 1, B, FEAT_OUT) and cell.shape == (T, 1, B, FEAT_OUT)
    assert jnp.allclose(hid, ref_hid, atol=1e-4, rtol=1e-4), \
        f"hid max err {jnp.max(jnp.abs(hid - ref_hid))}"
    assert jnp.allclose(cell, ref_cell, atol=1e-4, rtol=1e-4), \
        f"cell max err {jnp.max(jnp.abs(cell - ref_cell))}"

    print("KERNEL_OK")
</pallas_src>

<mosaic_0001>
module attributes {stable_mosaic.version = 11 : i64} {
  func.func @kernel(%arg0: i32, %arg1: memref<16x16xf32, #tpu.memory_space<vmem>>, %arg2: memref<16x512xf32, #tpu.memory_space<vmem>>, %arg3: memref<128x512xf32, #tpu.memory_space<vmem>>, %arg4: memref<1x512xf32, #tpu.memory_space<vmem>>, %arg5: memref<8x2x128xf32, #tpu.memory_space<vmem>>, %arg6: memref<8x2x128xf32, #tpu.memory_space<vmem>>, %arg7: memref<16x512xf32, #tpu.memory_space<vmem>>) attributes {dimension_semantics = [#tpu.dimension_semantics<arbitrary>], iteration_bounds = array<i64: 1>, scalar_prefetch = 0 : i64, scratch_operands = 1 : i64, tpu.core_type = #tpu.core_type<tc>, window_params = [{pipeline_mode = #tpu.pipeline_mode<synchronous>, transform_indices = @transform_0, window_bounds = array<i64: 16, 16>}, {pipeline_mode = #tpu.pipeline_mode<synchronous>, transform_indices = @transform_1, window_bounds = array<i64: 16, 512>}, {pipeline_mode = #tpu.pipeline_mode<synchronous>, transform_indices = @transform_2, window_bounds = array<i64: 128, 512>}, {pipeline_mode = #tpu.pipeline_mode<synchronous>, transform_indices = @transform_3, window_bounds = array<i64: 1, 512>}, {pipeline_mode = #tpu.pipeline_mode<synchronous>, transform_indices = @transform_4, window_bounds = array<i64: 8, 2, 128>}, {pipeline_mode = #tpu.pipeline_mode<synchronous>, transform_indices = @transform_5, window_bounds = array<i64: 8, 2, 128>}]} {
    %c0 = arith.constant 0 : index
    %c0_0 = arith.constant 0 : index
    %0 = vector.load %arg1[%c0, %c0_0] : memref<16x16xf32, #tpu.memory_space<vmem>>, vector<16x16xf32>
    %c0_1 = arith.constant 0 : index
    %c0_2 = arith.constant 0 : index
    %1 = vector.load %arg2[%c0_1, %c0_2] : memref<16x512xf32, #tpu.memory_space<vmem>>, vector<16x512xf32>
    %cst = arith.constant dense<0.000000e+00> : vector<16x512xf32>
    %2 = tpu.matmul %0, %1, %cst {dimension_numbers = #tpu.dot_dimension_numbers<[1], [0], [0], [1], [0, 0, 1, 1], [], []>} : vector<16x16xf32>, vector<16x512xf32>, vector<16x512xf32> -> vector<16x512xf32>
    %c0_3 = arith.constant 0 : index
    %c0_4 = arith.constant 0 : index
    %3 = vector.load %arg4[%c0_3, %c0_4] : memref<1x512xf32, #tpu.memory_space<vmem>>, vector<1x512xf32>
    %4 = vector.broadcast %3 : vector<1x512xf32> to vector<16x512xf32>
    %5 = arith.addf %2, %4 : vector<16x512xf32>
    %c0_5 = arith.constant 0 : index
    %c0_6 = arith.constant 0 : index
    %6 = vector.load %arg7[%c0_5, %c0_6] : memref<16x512xf32, #tpu.memory_space<vmem>>, vector<16x512xf32>
    tpu.vector_store %arg7[%c0_5, %c0_6], %5 {strides = array<i32>} : memref<16x512xf32, #tpu.memory_space<vmem>>, vector<16x512xf32>,
    %cst_7 = arith.constant 0.000000e+00 : f32
    %7 = vector.broadcast %cst_7 : f32 to vector<2x128xf32>
    %cst_8 = arith.constant 0.000000e+00 : f32
    %8 = vector.broadcast %cst_8 : f32 to vector<2x128xf32>
    %c0_9 = arith.constant 0 : index
    %c0_10 = arith.constant 0 : index
    %9 = vector.load %arg7[%c0_9, %c0_10] : memref<16x512xf32, #tpu.memory_space<vmem>>, vector<2x512xf32>
    %c0_11 = arith.constant 0 : index
    %c0_12 = arith.constant 0 : index
    %10 = vector.load %arg3[%c0_11, %c0_12] : memref<128x512xf32, #tpu.memory_space<vmem>>, vector<128x512xf32>
    %cst_13 = arith.constant dense<0.000000e+00> : vector<2x512xf32>
    %11 = tpu.matmul %7, %10, %cst_13 {dimension_numbers = #tpu.dot_dimension_numbers<[1], [0], [0], [1], [0, 0, 1, 1], [], []>} : vector<2x128xf32>, vector<128x512xf32>, vector<2x512xf32> -> vector<2x512xf32>
    %12 = arith.addf %9, %11 : vector<2x512xf32>
    %13 = vector.extract_strided_slice %12 {offsets = [0, 0], sizes = [2, 128], strides = [1, 1]} : vector<2x512xf32> to vector<2x128xf32>
    %cst_14 = arith.constant 5.000000e-01 : f32
    %14 = vector.broadcast %cst_14 : f32 to vector<2x128xf32>
    %15 = arith.mulf %14, %13 : vector<2x128xf32>
    %16 = math.tanh %15 : vector<2x128xf32>
    %cst_15 = arith.constant 5.000000e-01 : f32
    %17 = vector.broadcast %cst_15 : f32 to vector<2x128xf32>
    %18 = arith.mulf %17, %16 : vector<2x128xf32>
    %cst_16 = arith.constant 5.000000e-01 : f32
    %19 = vector.broadcast %cst_16 : f32 to vector<2x128xf32>
    %20 = arith.addf %18, %19 : vector<2x128xf32>
    %21 = vector.extract_strided_slice %12 {offsets = [0, 128], sizes = [2, 128], strides = [1, 1]} : vector<2x512xf32> to vector<2x128xf32>
    %cst_17 = arith.constant 5.000000e-01 : f32
    %22 = vector.broadcast %cst_17 : f32 to vector<2x128xf32>
    %23 = arith.mulf %22, %21 : vector<2x128xf32>
    %24 = math.tanh %23 : vector<2x128xf32>
    %cst_18 = arith.constant 5.000000e-01 : f32
    %25 = vector.broadcast %cst_18 : f32 to vector<2x128xf32>
    %26 = arith.mulf %25, %24 : vector<2x128xf32>
    %cst_19 = arith.constant 5.000000e-01 : f32
    %27 = vector.broadcast %cst_19 : f32 to vector<2x128xf32>
    %28 = arith.addf %26, %27 : vector<2x128xf32>
    %29 = vector.extract_strided_slice %12 {offsets = [0, 256], sizes = [2, 128], strides = [1, 1]} : vector<2x512xf32> to vector<2x128xf32>
    %30 = math.tanh %29 : vector<2x128xf32>
    %31 = vector.extract_strided_slice %12 {offsets = [0, 384], sizes = [2, 128], strides = [1, 1]} : vector<2x512xf32> to vector<2x128xf32>
    %cst_20 = arith.constant 5.000000e-01 : f32
    %32 = vector.broadcast %cst_20 : f32 to vector<2x128xf32>
    %33 = arith.mulf %32, %31 : vector<2x128xf32>
    %34 = math.tanh %33 : vector<2x128xf32>
    %cst_21 = arith.constant 5.000000e-01 : f32
    %35 = vector.broadcast %cst_21 : f32 to vector<2x128xf32>
    %36 = arith.mulf %35, %34 : vector<2x128xf32>
    %cst_22 = arith.constant 5.000000e-01 : f32
    %37 = vector.broadcast %cst_22 : f32 to vector<2x128xf32>
    %38 = arith.addf %36, %37 : vector<2x128xf32>
    %39 = arith.mulf %28, %8 : vector<2x128xf32>
    %40 = arith.mulf %20, %30 : vector<2x128xf32>
    %41 = arith.addf %39, %40 : vector<2x128xf32>
    %42 = math.tanh %41 : vector<2x128xf32>
    %43 = arith.mulf %38, %42 : vector<2x128xf32>
    %c0_23 = arith.constant 0 : index
    %c0_24 = arith.constant 0 : index
    %c0_25 = arith.constant 0 : index
    %44 = vector.load %arg5[%c0_23, %c0_24, %c0_25] : memref<8x2x128xf32, #tpu.memory_space<vmem>>, vector<1x2x128xf32>
    %45 = vector.shape_cast %44 : vector<1x2x128xf32> to vector<2x128xf32>
    %46 = vector.shape_cast %43 : vector<2x128xf32> to vector<1x2x128xf32>
    tpu.vector_store %arg5[%c0_23, %c0_24, %c0_25], %46 {strides = array<i32>} : memref<8x2x128xf32, #tpu.memory_space<vmem>>, vector<1x2x128xf32>,
    %c0_26 = arith.constant 0 : index
    %c0_27 = arith.constant 0 : index
    %c0_28 = arith.constant 0 : index
    %47 = vector.load %arg6[%c0_26, %c0_27, %c0_28] : memref<8x2x128xf32, #tpu.memory_space<vmem>>, vector<1x2x128xf32>
    %48 = vector.shape_cast %47 : vector<1x2x128xf32> to vector<2x128xf32>
    %49 = vector.shape_cast %41 : vector<2x128xf32> to vector<1x2x128xf32>
    tpu.vector_store %arg6[%c0_26, %c0_27, %c0_28], %49 {strides = array<i32>} : memref<8x2x128xf32, #tpu.memory_space<vmem>>, vector<1x2x128xf32>,
    %c2 = arith.constant 2 : index
    %c0_29 = arith.constant 0 : index
    %50 = vector.load %arg7[%c2, %c0_29] : memref<16x512xf32, #tpu.memory_space<vmem>>, vector<2x512xf32>
    %c0_30 = arith.constant 0 : index
    %c0_31 = arith.constant 0 : index
    %51 = vector.load %arg3[%c0_30, %c0_31] : memref<128x512xf32, #tpu.memory_space<vmem>>, vector<128x512xf32>
    %cst_32 = arith.constant dense<0.000000e+00> : vector<2x512xf32>
    %52 = tpu.matmul %43, %51, %cst_32 {dimension_numbers = #tpu.dot_dimension_numbers<[1], [0], [0], [1], [0, 0, 1, 1], [], []>} : vector<2x128xf32>, vector<128x512xf32>, vector<2x512xf32> -> vector<2x512xf32>
    %53 = arith.addf %50, %52 : vector<2x512xf32>
    %54 = vector.extract_strided_slice %53 {offsets = [0, 0], sizes = [2, 128], strides = [1, 1]} : vector<2x512xf32> to vector<2x128xf32>
    %cst_33 = arith.constant 5.000000e-01 : f32
    %55 = vector.broadcast %cst_33 : f32 to vector<2x128xf32>
    %56 = arith.mulf %55, %54 : vector<2x128xf32>
    %57 = math.tanh %56 : vector<2x128xf32>
    %cst_34 = arith.constant 5.000000e-01 : f32
    %58 = vector.broadcast %cst_34 : f32 to vector<2x128xf32>
    %59 = arith.mulf %58, %57 : vector<2x128xf32>
    %cst_35 = arith.constant 5.000000e-01 : f32
    %60 = vector.broadcast %cst_35 : f32 to vector<2x128xf32>
    %61 = arith.addf %59, %60 : vector<2x128xf32>
    %62 = vector.extract_strided_slice %53 {offsets = [0, 128], sizes = [2, 128], strides = [1, 1]} : vector<2x512xf32> to vector<2x128xf32>
    %cst_36 = arith.constant 5.000000e-01 : f32
    %63 = vector.broadcast %cst_36 : f32 to vector<2x128xf32>
    %64 = arith.mulf %63, %62 : vector<2x128xf32>
    %65 = math.tanh %64 : vector<2x128xf32>
    %cst_37 = arith.constant 5.000000e-01 : f32
    %66 = vector.broadcast %cst_37 : f32 to vector<2x128xf32>
    %67 = arith.mulf %66, %65 : vector<2x128xf32>
    %cst_38 = arith.constant 5.000000e-01 : f32
    %68 = vector.broadcast %cst_38 : f32 to vector<2x128xf32>
    %69 = arith.addf %67, %68 : vector<2x128xf32>
    %70 = vector.extract_strided_slice %53 {offsets = [0, 256], sizes = [2, 128], strides = [1, 1]} : vector<2x512xf32> to vector<2x128xf32>
    %71 = math.tanh %70 : vector<2x128xf32>
    %72 = vector.extract_strided_slice %53 {offsets = [0, 384], sizes = [2, 128], strides = [1, 1]} : vector<2x512xf32> to vector<2x128xf32>
    %cst_39 = arith.constant 5.000000e-01 : f32
    %73 = vector.broadcast %cst_39 : f32 to vector<2x128xf32>
    %74 = arith.mulf %73, %72 : vector<2x128xf32>
    %75 = math.tanh %74 : vector<2x128xf32>
    %cst_40 = arith.constant 5.000000e-01 : f32
    %76 = vector.broadcast %cst_40 : f32 to vector<2x128xf32>
    %77 = arith.mulf %76, %75 : vector<2x128xf32>
    %cst_41 = arith.constant 5.000000e-01 : f32
    %78 = vector.broadcast %cst_41 : f32 to vector<2x128xf32>
    %79 = arith.addf %77, %78 : vector<2x128xf32>
    %80 = arith.mulf %69, %41 : vector<2x128xf32>
    %81 = arith.mulf %61, %71 : vector<2x128xf32>
    %82 = arith.addf %80, %81 : vector<2x128xf32>
    %83 = math.tanh %82 : vector<2x128xf32>
    %84 = arith.mulf %79, %83 : vector<2x128xf32>
    %c1 = arith.constant 1 : index
    %c0_42 = arith.constant 0 : index
    %c0_43 = arith.constant 0 : index
    %85 = vector.load %arg5[%c1, %c0_42, %c0_43] : memref<8x2x128xf32, #tpu.memory_space<vmem>>, vector<1x2x128xf32>
    %86 = vector.shape_cast %85 : vector<1x2x128xf32> to vector<2x128xf32>
    %87 = vector.shape_cast %84 : vector<2x128xf32> to vector<1x2x128xf32>
    tpu.vector_store %arg5[%c1, %c0_42, %c0_43], %87 {strides = array<i32>} : memref<8x2x128xf32, #tpu.memory_space<vmem>>, vector<1x2x128xf32>,
    %c1_44 = arith.constant 1 : index
    %c0_45 = arith.constant 0 : index
    %c0_46 = arith.constant 0 : index
    %88 = vector.load %arg6[%c1_44, %c0_45, %c0_46] : memref<8x2x128xf32, #tpu.memory_space<vmem>>, vector<1x2x128xf32>
    %89 = vector.shape_cast %88 : vector<1x2x128xf32> to vector<2x128xf32>
    %90 = vector.shape_cast %82 : vector<2x128xf32> to vector<1x2x128xf32>
    tpu.vector_store %arg6[%c1_44, %c0_45, %c0_46], %90 {strides = array<i32>} : memref<8x2x128xf32, #tpu.memory_space<vmem>>, vector<1x2x128xf32>,
    %c4 = arith.constant 4 : index
    %c0_47 = arith.constant 0 : index
    %91 = vector.load %arg7[%c4, %c0_47] : memref<16x512xf32, #tpu.memory_space<vmem>>, vector<2x512xf32>
    %c0_48 = arith.constant 0 : index
    %c0_49 = arith.constant 0 : index
    %92 = vector.load %arg3[%c0_48, %c0_49] : memref<128x512xf32, #tpu.memory_space<vmem>>, vector<128x512xf32>
    %cst_50 = arith.constant dense<0.000000e+00> : vector<2x512xf32>
    %93 = tpu.matmul %84, %92, %cst_50 {dimension_numbers = #tpu.dot_dimension_numbers<[1], [0], [0], [1], [0, 0, 1, 1], [], []>} : vector<2x128xf32>, vector<128x512xf32>, vector<2x512xf32> -> vector<2x512xf32>
    %94 = arith.addf %91, %93 : vector<2x512xf32>
    %95 = vector.extract_strided_slice %94 {offsets = [0, 0], sizes = [2, 128], strides = [1, 1]} : vector<2x512xf32> to vector<2x128xf32>
    %cst_51 = arith.constant 5.000000e-01 : f32
    %96 = vector.broadcast %cst_51 : f32 to vector<2x128xf32>
    %97 = arith.mulf %96, %95 : vector<2x128xf32>
    %98 = math.tanh %97 : vector<2x128xf32>
    %cst_52 = arith.constant 5.000000e-01 : f32
    %99 = vector.broadcast %cst_52 : f32 to vector<2x128xf32>
    %100 = arith.mulf %99, %98 : vector<2x128xf32>
    %cst_53 = arith.constant 5.000000e-01 : f32
    %101 = vector.broadcast %cst_53 : f32 to vector<2x128xf32>
    %102 = arith.addf %100, %101 : vector<2x128xf32>
    %103 = vector.extract_strided_slice %94 {offsets = [0, 128], sizes = [2, 128], strides = [1, 1]} : vector<2x512xf32> to vector<2x128xf32>
    %cst_54 = arith.constant 5.000000e-01 : f32
    %104 = vector.broadcast %cst_54 : f32 to vector<2x128xf32>
    %105 = arith.mulf %104, %103 : vector<2x128xf32>
    %106 = math.tanh %105 : vector<2x128xf32>
    %cst_55 = arith.constant 5.000000e-01 : f32
    %107 = vector.broadcast %cst_55 : f32 to vector<2x128xf32>
    %108 = arith.mulf %107, %106 : vector<2x128xf32>
    %cst_56 = arith.constant 5.000000e-01 : f32
    %109 = vector.broadcast %cst_56 : f32 to vector<2x128xf32>
    %110 = arith.addf %108, %109 : vector<2x128xf32>
    %111 = vector.extract_strided_slice %94 {offsets = [0, 256], sizes = [2, 128], strides = [1, 1]} : vector<2x512xf32> to vector<2x128xf32>
    %112 = math.tanh %111 : vector<2x128xf32>
    %113 = vector.extract_strided_slice %94 {offsets = [0, 384], sizes = [2, 128], strides = [1, 1]} : vector<2x512xf32> to vector<2x128xf32>
    %cst_57 = arith.constant 5.000000e-01 : f32
    %114 = vector.broadcast %cst_57 : f32 to vector<2x128xf32>
    %115 = arith.mulf %114, %113 : vector<2x128xf32>
    %116 = math.tanh %115 : vector<2x128xf32>
    %cst_58 = arith.constant 5.000000e-01 : f32
    %117 = vector.broadcast %cst_58 : f32 to vector<2x128xf32>
    %118 = arith.mulf %117, %116 : vector<2x128xf32>
    %cst_59 = arith.constant 5.000000e-01 : f32
    %119 = vector.broadcast %cst_59 : f32 to vector<2x128xf32>
    %120 = arith.addf %118, %119 : vector<2x128xf32>
    %121 = arith.mulf %110, %82 : vector<2x128xf32>
    %122 = arith.mulf %102, %112 : vector<2x128xf32>
    %123 = arith.addf %121, %122 : vector<2x128xf32>
    %124 = math.tanh %123 : vector<2x128xf32>
    %125 = arith.mulf %120, %124 : vector<2x128xf32>
    %c2_60 = arith.constant 2 : index
    %c0_61 = arith.constant 0 : index
    %c0_62 = arith.constant 0 : index
    %126 = vector.load %arg5[%c2_60, %c0_61, %c0_62] : memref<8x2x128xf32, #tpu.memory_space<vmem>>, vector<1x2x128xf32>
    %127 = vector.shape_cast %126 : vector<1x2x128xf32> to vector<2x128xf32>
    %128 = vector.shape_cast %125 : vector<2x128xf32> to vector<1x2x128xf32>
    tpu.vector_store %arg5[%c2_60, %c0_61, %c0_62], %128 {strides = array<i32>} : memref<8x2x128xf32, #tpu.memory_space<vmem>>, vector<1x2x128xf32>,
    %c2_63 = arith.constant 2 : index
    %c0_64 = arith.constant 0 : index
    %c0_65 = arith.constant 0 : index
    %129 = vector.load %arg6[%c2_63, %c0_64, %c0_65] : memref<8x2x128xf32, #tpu.memory_space<vmem>>, vector<1x2x128xf32>
    %130 = vector.shape_cast %129 : vector<1x2x128xf32> to vector<2x128xf32>
    %131 = vector.shape_cast %123 : vector<2x128xf32> to vector<1x2x128xf32>
    tpu.vector_store %arg6[%c2_63, %c0_64, %c0_65], %131 {strides = array<i32>} : memref<8x2x128xf32, #tpu.memory_space<vmem>>, vector<1x2x128xf32>,
    %c6 = arith.constant 6 : index
    %c0_66 = arith.constant 0 : index
    %132 = vector.load %arg7[%c6, %c0_66] : memref<16x512xf32, #tpu.memory_space<vmem>>, vector<2x512xf32>
    %c0_67 = arith.constant 0 : index
    %c0_68 = arith.constant 0 : index
    %133 = vector.load %arg3[%c0_67, %c0_68] : memref<128x512xf32, #tpu.memory_space<vmem>>, vector<128x512xf32>
    %cst_69 = arith.constant dense<0.000000e+00> : vector<2x512xf32>
    %134 = tpu.matmul %125, %133, %cst_69 {dimension_numbers = #tpu.dot_dimension_numbers<[1], [0], [0], [1], [0, 0, 1, 1], [], []>} : vector<2x128xf32>, vector<128x512xf32>, vector<2x512xf32> -> vector<2x512xf32>
    %135 = arith.addf %132, %134 : vector<2x512xf32>
    %136 = vector.extract_strided_slice %135 {offsets = [0, 0], sizes = [2, 128], strides = [1, 1]} : vector<2x512xf32> to vector<2x128xf32>
    %cst_70 = arith.constant 5.000000e-01 : f32
    %137 = vector.broadcast %cst_70 : f32 to vector<2x128xf32>
    %138 = arith.mulf %137, %136 : vector<2x128xf32>
    %139 = math.tanh %138 : vector<2x128xf32>
    %cst_71 = arith.constant 5.000000e-01 : f32
    %140 = vector.broadcast %cst_71 : f32 to vector<2x128xf32>
    %141 = arith.mulf %140, %139 : vector<2x128xf32>
    %cst_72 = arith.constant 5.000000e-01 : f32
    %142 = vector.broadcast %cst_72 : f32 to vector<2x128xf32>
    %143 = arith.addf %141, %142 : vector<2x128xf32>
    %144 = vector.extract_strided_slice %135 {offsets = [0, 128], sizes = [2, 128], strides = [1, 1]} : vector<2x512xf32> to vector<2x128xf32>
    %cst_73 = arith.constant 5.000000e-01 : f32
    %145 = vector.broadcast %cst_73 : f32 to vector<2x128xf32>
    %146 = arith.mulf %145, %144 : vector<2x128xf32>
    %147 = math.tanh %146 : vector<2x128xf32>
    %cst_74 = arith.constant 5.000000e-01 : f32
    %148 = vector.broadcast %cst_74 : f32 to vector<2x128xf32>
    %149 = arith.mulf %148, %147 : vector<2x128xf32>
    %cst_75 = arith.constant 5.000000e-01 : f32
    %150 = vector.broadcast %cst_75 : f32 to vector<2x128xf32>
    %151 = arith.addf %149, %150 : vector<2x128xf32>
    %152 = vector.extract_strided_slice %135 {offsets = [0, 256], sizes = [2, 128], strides = [1, 1]} : vector<2x512xf32> to vector<2x128xf32>
    %153 = math.tanh %152 : vector<2x128xf32>
    %154 = vector.extract_strided_slice %135 {offsets = [0, 384], sizes = [2, 128], strides = [1, 1]} : vector<2x512xf32> to vector<2x128xf32>
    %cst_76 = arith.constant 5.000000e-01 : f32
    %155 = vector.broadcast %cst_76 : f32 to vector<2x128xf32>
    %156 = arith.mulf %155, %154 : vector<2x128xf32>
    %157 = math.tanh %156 : vector<2x128xf32>
    %cst_77 = arith.constant 5.000000e-01 : f32
    %158 = vector.broadcast %cst_77 : f32 to vector<2x128xf32>
    %159 = arith.mulf %158, %157 : vector<2x128xf32>
    %cst_78 = arith.constant 5.000000e-01 : f32
    %160 = vector.broadcast %cst_78 : f32 to vector<2x128xf32>
    %161 = arith.addf %159, %160 : vector<2x128xf32>
    %162 = arith.mulf %151, %123 : vector<2x128xf32>
    %163 = arith.mulf %143, %153 : vector<2x128xf32>
    %164 = arith.addf %162, %163 : vector<2x128xf32>
    %165 = math.tanh %164 : vector<2x128xf32>
    %166 = arith.mulf %161, %165 : vector<2x128xf32>
    %c3 = arith.constant 3 : index
    %c0_79 = arith.constant 0 : index
    %c0_80 = arith.constant 0 : index
    %167 = vector.load %arg5[%c3, %c0_79, %c0_80] : memref<8x2x128xf32, #tpu.memory_space<vmem>>, vector<1x2x128xf32>
    %168 = vector.shape_cast %167 : vector<1x2x128xf32> to vector<2x128xf32>
    %169 = vector.shape_cast %166 : vector<2x128xf32> to vector<1x2x128xf32>
    tpu.vector_store %arg5[%c3, %c0_79, %c0_80], %169 {strides = array<i32>} : memref<8x2x128xf32, #tpu.memory_space<vmem>>, vector<1x2x128xf32>,
    %c3_81 = arith.constant 3 : index
    %c0_82 = arith.constant 0 : index
    %c0_83 = arith.constant 0 : index
    %170 = vector.load %arg6[%c3_81, %c0_82, %c0_83] : memref<8x2x128xf32, #tpu.memory_space<vmem>>, vector<1x2x128xf32>
    %171 = vector.shape_cast %170 : vector<1x2x128xf32> to vector<2x128xf32>
    %172 = vector.shape_cast %164 : vector<2x128xf32> to vector<1x2x128xf32>
    tpu.vector_store %arg6[%c3_81, %c0_82, %c0_83], %172 {strides = array<i32>} : memref<8x2x128xf32, #tpu.memory_space<vmem>>, vector<1x2x128xf32>,
    %c8 = arith.constant 8 : index
    %c0_84 = arith.constant 0 : index
    %173 = vector.load %arg7[%c8, %c0_84] : memref<16x512xf32, #tpu.memory_space<vmem>>, vector<2x512xf32>
    %c0_85 = arith.constant 0 : index
    %c0_86 = arith.constant 0 : index
    %174 = vector.load %arg3[%c0_85, %c0_86] : memref<128x512xf32, #tpu.memory_space<vmem>>, vector<128x512xf32>
    %cst_87 = arith.constant dense<0.000000e+00> : vector<2x512xf32>
    %175 = tpu.matmul %166, %174, %cst_87 {dimension_numbers = #tpu.dot_dimension_numbers<[1], [0], [0], [1], [0, 0, 1, 1], [], []>} : vector<2x128xf32>, vector<128x512xf32>, vector<2x512xf32> -> vector<2x512xf32>
    %176 = arith.addf %173, %175 : vector<2x512xf32>
    %177 = vector.extract_strided_slice %176 {offsets = [0, 0], sizes = [2, 128], strides = [1, 1]} : vector<2x512xf32> to vector<2x128xf32>
    %cst_88 = arith.constant 5.000000e-01 : f32
    %178 = vector.broadcast %cst_88 : f32 to vector<2x128xf32>
    %179 = arith.mulf %178, %177 : vector<2x128xf32>
    %180 = math.tanh %179 : vector<2x128xf32>
    %cst_89 = arith.constant 5.000000e-01 : f32
    %181 = vector.broadcast %cst_89 : f32 to vector<2x128xf32>
    %182 = arith.mulf %181, %180 : vector<2x128xf32>
    %cst_90 = arith.constant 5.000000e-01 : f32
    %183 = vector.broadcast %cst_90 : f32 to vector<2x128xf32>
    %184 = arith.addf %182, %183 : vector<2x128xf32>
    %185 = vector.extract_strided_slice %176 {offsets = [0, 128], sizes = [2, 128], strides = [1, 1]} : vector<2x512xf32> to vector<2x128xf32>
    %cst_91 = arith.constant 5.000000e-01 : f32
    %186 = vector.broadcast %cst_91 : f32 to vector<2x128xf32>
    %187 = arith.mulf %186, %185 : vector<2x128xf32>
    %188 = math.tanh %187 : vector<2x128xf32>
    %cst_92 = arith.constant 5.000000e-01 : f32
    %189 = vector.broadcast %cst_92 : f32 to vector<2x128xf32>
    %190 = arith.mulf %189, %188 : vector<2x128xf32>
    %cst_93 = arith.constant 5.000000e-01 : f32
    %191 = vector.broadcast %cst_93 : f32 to vector<2x128xf32>
    %192 = arith.addf %190, %191 : vector<2x128xf32>
    %193 = vector.extract_strided_slice %176 {offsets = [0, 256], sizes = [2, 128], strides = [1, 1]} : vector<2x512xf32> to vector<2x128xf32>
    %194 = math.tanh %193 : vector<2x128xf32>
    %195 = vector.extract_strided_slice %176 {offsets = [0, 384], sizes = [2, 128], strides = [1, 1]} : vector<2x512xf32> to vector<2x128xf32>
    %cst_94 = arith.constant 5.000000e-01 : f32
    %196 = vector.broadcast %cst_94 : f32 to vector<2x128xf32>
    %197 = arith.mulf %196, %195 : vector<2x128xf32>
    %198 = math.tanh %197 : vector<2x128xf32>
    %cst_95 = arith.constant 5.000000e-01 : f32
    %199 = vector.broadcast %cst_95 : f32 to vector<2x128xf32>
    %200 = arith.mulf %199, %198 : vector<2x128xf32>
    %cst_96 = arith.constant 5.000000e-01 : f32
    %201 = vector.broadcast %cst_96 : f32 to vector<2x128xf32>
    %202 = arith.addf %200, %201 : vector<2x128xf32>
    %203 = arith.mulf %192, %164 : vector<2x128xf32>
    %204 = arith.mulf %184, %194 : vector<2x128xf32>
    %205 = arith.addf %203, %204 : vector<2x128xf32>
    %206 = math.tanh %205 : vector<2x128xf32>
    %207 = arith.mulf %202, %206 : vector<2x128xf32>
    %c4_97 = arith.constant 4 : index
    %c0_98 = arith.constant 0 : index
    %c0_99 = arith.constant 0 : index
    %208 = vector.load %arg5[%c4_97, %c0_98, %c0_99] : memref<8x2x128xf32, #tpu.memory_space<vmem>>, vector<1x2x128xf32>
    %209 = vector.shape_cast %208 : vector<1x2x128xf32> to vector<2x128xf32>
    %210 = vector.shape_cast %207 : vector<2x128xf32> to vector<1x2x128xf32>
    tpu.vector_store %arg5[%c4_97, %c0_98, %c0_99], %210 {strides = array<i32>} : memref<8x2x128xf32, #tpu.memory_space<vmem>>, vector<1x2x128xf32>,
    %c4_100 = arith.constant 4 : index
    %c0_101 = arith.constant 0 : index
    %c0_102 = arith.constant 0 : index
    %211 = vector.load %arg6[%c4_100, %c0_101, %c0_102] : memref<8x2x128xf32, #tpu.memory_space<vmem>>, vector<1x2x128xf32>
    %212 = vector.shape_cast %211 : vector<1x2x128xf32> to vector<2x128xf32>
    %213 = vector.shape_cast %205 : vector<2x128xf32> to vector<1x2x128xf32>
    tpu.vector_store %arg6[%c4_100, %c0_101, %c0_102], %213 {strides = array<i32>} : memref<8x2x128xf32, #tpu.memory_space<vmem>>, vector<1x2x128xf32>,
    %c10 = arith.constant 10 : index
    %c0_103 = arith.constant 0 : index
    %214 = vector.load %arg7[%c10, %c0_103] : memref<16x512xf32, #tpu.memory_space<vmem>>, vector<2x512xf32>
    %c0_104 = arith.constant 0 : index
    %c0_105 = arith.constant 0 : index
    %215 = vector.load %arg3[%c0_104, %c0_105] : memref<128x512xf32, #tpu.memory_space<vmem>>, vector<128x512xf32>
    %cst_106 = arith.constant dense<0.000000e+00> : vector<2x512xf32>
    %216 = tpu.matmul %207, %215, %cst_106 {dimension_numbers = #tpu.dot_dimension_numbers<[1], [0], [0], [1], [0, 0, 1, 1], [], []>} : vector<2x128xf32>, vector<128x512xf32>, vector<2x512xf32> -> vector<2x512xf32>
    %217 = arith.addf %214, %216 : vector<2x512xf32>
    %218 = vector.extract_strided_slice %217 {offsets = [0, 0], sizes = [2, 128], strides = [1, 1]} : vector<2x512xf32> to vector<2x128xf32>
    %cst_107 = arith.constant 5.000000e-01 : f32
    %219 = vector.broadcast %cst_107 : f32 to vector<2x128xf32>
    %220 = arith.mulf %219, %218 : vector<2x128xf32>
    %221 = math.tanh %220 : vector<2x128xf32>
    %cst_108 = arith.constant 5.000000e-01 : f32
    %222 = vector.broadcast %cst_108 : f32 to vector<2x128xf32>
    %223 = arith.mulf %222, %221 : vector<2x128xf32>
    %cst_109 = arith.constant 5.000000e-01 : f32
    %224 = vector.broadcast %cst_109 : f32 to vector<2x128xf32>
    %225 = arith.addf %223, %224 : vector<2x128xf32>
    %226 = vector.extract_strided_slice %217 {offsets = [0, 128], sizes = [2, 128], strides = [1, 1]} : vector<2x512xf32> to vector<2x128xf32>
    %cst_110 = arith.constant 5.000000e-01 : f32
    %227 = vector.broadcast %cst_110 : f32 to vector<2x128xf32>
    %228 = arith.mulf %227, %226 : vector<2x128xf32>
    %229 = math.tanh %228 : vector<2x128xf32>
    %cst_111 = arith.constant 5.000000e-01 : f32
    %230 = vector.broadcast %cst_111 : f32 to vector<2x128xf32>
    %231 = arith.mulf %230, %229 : vector<2x128xf32>
    %cst_112 = arith.constant 5.000000e-01 : f32
    %232 = vector.broadcast %cst_112 : f32 to vector<2x128xf32>
    %233 = arith.addf %231, %232 : vector<2x128xf32>
    %234 = vector.extract_strided_slice %217 {offsets = [0, 256], sizes = [2, 128], strides = [1, 1]} : vector<2x512xf32> to vector<2x128xf32>
    %235 = math.tanh %234 : vector<2x128xf32>
    %236 = vector.extract_strided_slice %217 {offsets = [0, 384], sizes = [2, 128], strides = [1, 1]} : vector<2x512xf32> to vector<2x128xf32>
    %cst_113 = arith.constant 5.000000e-01 : f32
    %237 = vector.broadcast %cst_113 : f32 to vector<2x128xf32>
    %238 = arith.mulf %237, %236 : vector<2x128xf32>
    %239 = math.tanh %238 : vector<2x128xf32>
    %cst_114 = arith.constant 5.000000e-01 : f32
    %240 = vector.broadcast %cst_114 : f32 to vector<2x128xf32>
    %241 = arith.mulf %240, %239 : vector<2x128xf32>
    %cst_115 = arith.constant 5.000000e-01 : f32
    %242 = vector.broadcast %cst_115 : f32 to vector<2x128xf32>
    %243 = arith.addf %241, %242 : vector<2x128xf32>
    %244 = arith.mulf %233, %205 : vector<2x128xf32>
    %245 = arith.mulf %225, %235 : vector<2x128xf32>
    %246 = arith.addf %244, %245 : vector<2x128xf32>
    %247 = math.tanh %246 : vector<2x128xf32>
    %248 = arith.mulf %243, %247 : vector<2x128xf32>
    %c5 = arith.constant 5 : index
    %c0_116 = arith.constant 0 : index
    %c0_117 = arith.constant 0 : index
    %249 = vector.load %arg5[%c5, %c0_116, %c0_117] : memref<8x2x128xf32, #tpu.memory_space<vmem>>, vector<1x2x128xf32>
    %250 = vector.shape_cast %249 : vector<1x2x128xf32> to vector<2x128xf32>
    %251 = vector.shape_cast %248 : vector<2x128xf32> to vector<1x2x128xf32>
    tpu.vector_store %arg5[%c5, %c0_116, %c0_117], %251 {strides = array<i32>} : memref<8x2x128xf32, #tpu.memory_space<vmem>>, vector<1x2x128xf32>,
    %c5_118 = arith.constant 5 : index
    %c0_119 = arith.constant 0 : index
    %c0_120 = arith.constant 0 : index
    %252 = vector.load %arg6[%c5_118, %c0_119, %c0_120] : memref<8x2x128xf32, #tpu.memory_space<vmem>>, vector<1x2x128xf32>
    %253 = vector.shape_cast %252 : vector<1x2x128xf32> to vector<2x128xf32>
    %254 = vector.shape_cast %246 : vector<2x128xf32> to vector<1x2x128xf32>
    tpu.vector_store %arg6[%c5_118, %c0_119, %c0_120], %254 {strides = array<i32>} : memref<8x2x128xf32, #tpu.memory_space<vmem>>, vector<1x2x128xf32>,
    %c12 = arith.constant 12 : index
    %c0_121 = arith.constant 0 : index
    %255 = vector.load %arg7[%c12, %c0_121] : memref<16x512xf32, #tpu.memory_space<vmem>>, vector<2x512xf32>
    %c0_122 = arith.constant 0 : index
    %c0_123 = arith.constant 0 : index
    %256 = vector.load %arg3[%c0_122, %c0_123] : memref<128x512xf32, #tpu.memory_space<vmem>>, vector<128x512xf32>
    %cst_124 = arith.constant dense<0.000000e+00> : vector<2x512xf32>
    %257 = tpu.matmul %248, %256, %cst_124 {dimension_numbers = #tpu.dot_dimension_numbers<[1], [0], [0], [1], [0, 0, 1, 1], [], []>} : vector<2x128xf32>, vector<128x512xf32>, vector<2x512xf32> -> vector<2x512xf32>
    %258 = arith.addf %255, %257 : vector<2x512xf32>
    %259 = vector.extract_strided_slice %258 {offsets = [0, 0], sizes = [2, 128], strides = [1, 1]} : vector<2x512xf32> to vector<2x128xf32>
    %cst_125 = arith.constant 5.000000e-01 : f32
    %260 = vector.broadcast %cst_125 : f32 to vector<2x128xf32>
    %261 = arith.mulf %260, %259 : vector<2x128xf32>
    %262 = math.tanh %261 : vector<2x128xf32>
    %cst_126 = arith.constant 5.000000e-01 : f32
    %263 = vector.broadcast %cst_126 : f32 to vector<2x128xf32>
    %264 = arith.mulf %263, %262 : vector<2x128xf32>
    %cst_127 = arith.constant 5.000000e-01 : f32
    %265 = vector.broadcast %cst_127 : f32 to vector<2x128xf32>
    %266 = arith.addf %264, %265 : vector<2x128xf32>
    %267 = vector.extract_strided_slice %258 {offsets = [0, 128], sizes = [2, 128], strides = [1, 1]} : vector<2x512xf32> to vector<2x128xf32>
    %cst_128 = arith.constant 5.000000e-01 : f32
    %268 = vector.broadcast %cst_128 : f32 to vector<2x128xf32>
    %269 = arith.mulf %268, %267 : vector<2x128xf32>
    %270 = math.tanh %269 : vector<2x128xf32>
    %cst_129 = arith.constant 5.000000e-01 : f32
    %271 = vector.broadcast %cst_129 : f32 to vector<2x128xf32>
    %272 = arith.mulf %271, %270 : vector<2x128xf32>
    %cst_130 = arith.constant 5.000000e-01 : f32
    %273 = vector.broadcast %cst_130 : f32 to vector<2x128xf32>
    %274 = arith.addf %272, %273 : vector<2x128xf32>
    %275 = vector.extract_strided_slice %258 {offsets = [0, 256], sizes = [2, 128], strides = [1, 1]} : vector<2x512xf32> to vector<2x128xf32>
    %276 = math.tanh %275 : vector<2x128xf32>
    %277 = vector.extract_strided_slice %258 {offsets = [0, 384], sizes = [2, 128], strides = [1, 1]} : vector<2x512xf32> to vector<2x128xf32>
    %cst_131 = arith.constant 5.000000e-01 : f32
    %278 = vector.broadcast %cst_131 : f32 to vector<2x128xf32>
    %279 = arith.mulf %278, %277 : vector<2x128xf32>
    %280 = math.tanh %279 : vector<2x128xf32>
    %cst_132 = arith.constant 5.000000e-01 : f32
    %281 = vector.broadcast %cst_132 : f32 to vector<2x128xf32>
    %282 = arith.mulf %281, %280 : vector<2x128xf32>
    %cst_133 = arith.constant 5.000000e-01 : f32
    %283 = vector.broadcast %cst_133 : f32 to vector<2x128xf32>
    %284 = arith.addf %282, %283 : vector<2x128xf32>
    %285 = arith.mulf %274, %246 : vector<2x128xf32>
    %286 = arith.mulf %266, %276 : vector<2x128xf32>
    %287 = arith.addf %285, %286 : vector<2x128xf32>
    %288 = math.tanh %287 : vector<2x128xf32>
    %289 = arith.mulf %284, %288 : vector<2x128xf32>
    %c6_134 = arith.constant 6 : index
    %c0_135 = arith.constant 0 : index
    %c0_136 = arith.constant 0 : index
    %290 = vector.load %arg5[%c6_134, %c0_135, %c0_136] : memref<8x2x128xf32, #tpu.memory_space<vmem>>, vector<1x2x128xf32>
    %291 = vector.shape_cast %290 : vector<1x2x128xf32> to vector<2x128xf32>
    %292 = vector.shape_cast %289 : vector<2x128xf32> to vector<1x2x128xf32>
    tpu.vector_store %arg5[%c6_134, %c0_135, %c0_136], %292 {strides = array<i32>} : memref<8x2x128xf32, #tpu.memory_space<vmem>>, vector<1x2x128xf32>,
    %c6_137 = arith.constant 6 : index
    %c0_138 = arith.constant 0 : index
    %c0_139 = arith.constant 0 : index
    %293 = vector.load %arg6[%c6_137, %c0_138, %c0_139] : memref<8x2x128xf32, #tpu.memory_space<vmem>>, vector<1x2x128xf32>
    %294 = vector.shape_cast %293 : vector<1x2x128xf32> to vector<2x128xf32>
    %295 = vector.shape_cast %287 : vector<2x128xf32> to vector<1x2x128xf32>
    tpu.vector_store %arg6[%c6_137, %c0_138, %c0_139], %295 {strides = array<i32>} : memref<8x2x128xf32, #tpu.memory_space<vmem>>, vector<1x2x128xf32>,
    %c14 = arith.constant 14 : index
    %c0_140 = arith.constant 0 : index
    %296 = vector.load %arg7[%c14, %c0_140] : memref<16x512xf32, #tpu.memory_space<vmem>>, vector<2x512xf32>
    %c0_141 = arith.constant 0 : index
    %c0_142 = arith.constant 0 : index
    %297 = vector.load %arg3[%c0_141, %c0_142] : memref<128x512xf32, #tpu.memory_space<vmem>>, vector<128x512xf32>
    %cst_143 = arith.constant dense<0.000000e+00> : vector<2x512xf32>
    %298 = tpu.matmul %289, %297, %cst_143 {dimension_numbers = #tpu.dot_dimension_numbers<[1], [0], [0], [1], [0, 0, 1, 1], [], []>} : vector<2x128xf32>, vector<128x512xf32>, vector<2x512xf32> -> vector<2x512xf32>
    %299 = arith.addf %296, %298 : vector<2x512xf32>
    %300 = vector.extract_strided_slice %299 {offsets = [0, 0], sizes = [2, 128], strides = [1, 1]} : vector<2x512xf32> to vector<2x128xf32>
    %cst_144 = arith.constant 5.000000e-01 : f32
    %301 = vector.broadcast %cst_144 : f32 to vector<2x128xf32>
    %302 = arith.mulf %301, %300 : vector<2x128xf32>
    %303 = math.tanh %302 : vector<2x128xf32>
    %cst_145 = arith.constant 5.000000e-01 : f32
    %304 = vector.broadcast %cst_145 : f32 to vector<2x128xf32>
    %305 = arith.mulf %304, %303 : vector<2x128xf32>
    %cst_146 = arith.constant 5.000000e-01 : f32
    %306 = vector.broadcast %cst_146 : f32 to vector<2x128xf32>
    %307 = arith.addf %305, %306 : vector<2x128xf32>
    %308 = vector.extract_strided_slice %299 {offsets = [0, 128], sizes = [2, 128], strides = [1, 1]} : vector<2x512xf32> to vector<2x128xf32>
    %cst_147 = arith.constant 5.000000e-01 : f32
    %309 = vector.broadcast %cst_147 : f32 to vector<2x128xf32>
    %310 = arith.mulf %309, %308 : vector<2x128xf32>
    %311 = math.tanh %310 : vector<2x128xf32>
    %cst_148 = arith.constant 5.000000e-01 : f32
    %312 = vector.broadcast %cst_148 : f32 to vector<2x128xf32>
    %313 = arith.mulf %312, %311 : vector<2x128xf32>
    %cst_149 = arith.constant 5.000000e-01 : f32
    %314 = vector.broadcast %cst_149 : f32 to vector<2x128xf32>
    %315 = arith.addf %313, %314 : vector<2x128xf32>
    %316 = vector.extract_strided_slice %299 {offsets = [0, 256], sizes = [2, 128], strides = [1, 1]} : vector<2x512xf32> to vector<2x128xf32>
    %317 = math.tanh %316 : vector<2x128xf32>
    %318 = vector.extract_strided_slice %299 {offsets = [0, 384], sizes = [2, 128], strides = [1, 1]} : vector<2x512xf32> to vector<2x128xf32>
    %cst_150 = arith.constant 5.000000e-01 : f32
    %319 = vector.broadcast %cst_150 : f32 to vector<2x128xf32>
    %320 = arith.mulf %319, %318 : vector<2x128xf32>
    %321 = math.tanh %320 : vector<2x128xf32>
    %cst_151 = arith.constant 5.000000e-01 : f32
    %322 = vector.broadcast %cst_151 : f32 to vector<2x128xf32>
    %323 = arith.mulf %322, %321 : vector<2x128xf32>
    %cst_152 = arith.constant 5.000000e-01 : f32
    %324 = vector.broadcast %cst_152 : f32 to vector<2x128xf32>
    %325 = arith.addf %323, %324 : vector<2x128xf32>
    %326 = arith.mulf %315, %287 : vector<2x128xf32>
    %327 = arith.mulf %307, %317 : vector<2x128xf32>
    %328 = arith.addf %326, %327 : vector<2x128xf32>
    %329 = math.tanh %328 : vector<2x128xf32>
    %330 = arith.mulf %325, %329 : vector<2x128xf32>
    %c7 = arith.constant 7 : index
    %c0_153 = arith.constant 0 : index
    %c0_154 = arith.constant 0 : index
    %331 = vector.load %arg5[%c7, %c0_153, %c0_154] : memref<8x2x128xf32, #tpu.memory_space<vmem>>, vector<1x2x128xf32>
    %332 = vector.shape_cast %331 : vector<1x2x128xf32> to vector<2x128xf32>
    %333 = vector.shape_cast %330 : vector<2x128xf32> to vector<1x2x128xf32>
    tpu.vector_store %arg5[%c7, %c0_153, %c0_154], %333 {strides = array<i32>} : memref<8x2x128xf32, #tpu.memory_space<vmem>>, vector<1x2x128xf32>,
    %c7_155 = arith.constant 7 : index
    %c0_156 = arith.constant 0 : index
    %c0_157 = arith.constant 0 : index
    %334 = vector.load %arg6[%c7_155, %c0_156, %c0_157] : memref<8x2x128xf32, #tpu.memory_space<vmem>>, vector<1x2x128xf32>
    %335 = vector.shape_cast %334 : vector<1x2x128xf32> to vector<2x128xf32>
    %336 = vector.shape_cast %328 : vector<2x128xf32> to vector<1x2x128xf32>
    tpu.vector_store %arg6[%c7_155, %c0_156, %c0_157], %336 {strides = array<i32>} : memref<8x2x128xf32, #tpu.memory_space<vmem>>, vector<1x2x128xf32>,
    return
  }
  func.func @transform_0(%arg0: i32) -> (i32, i32) {
    %c0_i32 = arith.constant 0 : i32
    %c0_i32_0 = arith.constant 0 : i32
    %c0_i32_1 = arith.constant 0 : i32
    return %c0_i32, %c0_i32_0 : i32, i32
  }
  func.func @transform_1(%arg0: i32) -> (i32, i32) {
    %c0_i32 = arith.constant 0 : i32
    %c0_i32_0 = arith.constant 0 : i32
    %c0_i32_1 = arith.constant 0 : i32
    return %c0_i32, %c0_i32_0 : i32, i32
  }
  func.func @transform_2(%arg0: i32) -> (i32, i32) {
    %c0_i32 = arith.constant 0 : i32
    %c0_i32_0 = arith.constant 0 : i32
    %c0_i32_1 = arith.constant 0 : i32
    return %c0_i32, %c0_i32_0 : i32, i32
  }
  func.func @transform_3(%arg0: i32) -> (i32, i32) {
    %c0_i32 = arith.constant 0 : i32
    %c0_i32_0 = arith.constant 0 : i32
    %c0_i32_1 = arith.constant 0 : i32
    return %c0_i32, %c0_i32_0 : i32, i32
  }
  func.func @transform_4(%arg0: i32) -> (i32, i32, i32) {
    %c0_i32 = arith.constant 0 : i32
    %c0_i32_0 = arith.constant 0 : i32
    %c0_i32_1 = arith.constant 0 : i32
    %c0_i32_2 = arith.constant 0 : i32
    return %c0_i32, %c0_i32_0, %c0_i32_1 : i32, i32, i32
  }
  func.func @transform_5(%arg0: i32) -> (i32, i32, i32) {
    %c0_i32 = arith.constant 0 : i32
    %c0_i32_0 = arith.constant 0 : i32
    %c0_i32_1 = arith.constant 0 : i32
    %c0_i32_2 = arith.constant 0 : i32
    return %c0_i32, %c0_i32_0, %c0_i32_1 : i32, i32, i32
  }
}

</mosaic_0001>

<llo_original>
// kernel: tpu_custom_call.1
$region0: #{tpu_custom_call.1}
  #allocation0 [shape = 'u32[]', space=smem, size = 0x4, offset = 0x4, fixed_abs, tag = 'smem constant byte address 0x4 - core index']
  #allocation1 [shape = 'u32[144,128]{1,0:T(1,128)}', space=vmem, size = 0x12000, scoped, tag = 'internal scratch']
  #allocation2 [shape = 'f32[16,512]{1,0:T(8,128)}', space=vmem, size = 0x8000, scoped, tag = 'scratch operand']
  %s0 = inlined_call_operand.hbm [shape: f32[16,16], index: 0, kind: input, shape index: {}]
  %s1 = inlined_call_operand.hbm [shape: f32[16,512], index: 1, kind: input, shape index: {}]
  %s2 = inlined_call_operand.hbm [shape: f32[128,512], index: 2, kind: input, shape index: {}]
  %s3 = inlined_call_operand.vmem [shape: f32[1,512], index: 3, kind: input, shape index: {}]
  %s4 = inlined_call_operand.hbm [shape: f32[8,2,128], index: 4, kind: output, shape index: {0}]
  %s5 = inlined_call_operand.hbm [shape: f32[8,2,128], index: 5, kind: output, shape index: {1}]
  %6 = xla_tuple %s4, %s5
  %s7 = sld [smem:[#allocation0]]
  $region46: #{tpu_custom_call.1} parent=0
    _
  %s9 = ssub.s32 1, %s7
  %s10 = scalar_select 0, %s9, %s7
  $region1: #{tpu_custom_call.1} parent=0
    #allocation3 [shape = 'u8[8192]{0}', space=vmem, size = 0x2000, scoped, tag = 'input window, operand 0, single buffered']
    #allocation4 [shape = 's32[1]{0}', space=sflag, size = 0x4, scoped, tag = 'scoped memory for tpu_custom_call.1']
    #allocation5 [shape = 's32[1]{0}', space=sflag, size = 0x4, scoped, tag = 'scoped memory for tpu_custom_call.1']
    #allocation6 [shape = 'u8[32768]{0}', space=vmem, size = 0x8000, scoped, tag = 'input window, operand 1, single buffered']
    #allocation7 [shape = 's32[1]{0}', space=sflag, size = 0x4, scoped, tag = 'scoped memory for tpu_custom_call.1']
    #allocation8 [shape = 'u8[262144]{0}', space=vmem, size = 0x40000, scoped, tag = 'input window, operand 2, single buffered']
    #allocation9 [shape = 'u8[8192]{0}', space=vmem, size = 0x2000, scoped, tag = 'output window, operand 0, single buffered']
    #allocation10 [shape = 'u8[8192]{0}', space=vmem, size = 0x2000, scoped, tag = 'output window, operand 1, single buffered']
    #allocation11 [shape = 's32[1]{0}', space=sflag, size = 0x4, scoped, tag = 'scoped memory for tpu_custom_call.1']
    %11 = vsyncpa [#allocation4], 0
    %12 = vsyncpa [#allocation7], 0
    %13 = vsyncpa [#allocation5], 0
    %14 = vsyncpa [#allocation11], 0
    // Predicated region
    $region2: #{tpu_custom_call.1} parent=1 // pred_check
      _
    $region3: #{tpu_custom_call.1} parent=1 // pred_check_branch
      %16 = sbr.rel (0) target = $region5
    $region4: #{tpu_custom_call.1} parent=1 // pred_region
      %s18 = ssub.s32 256, 256
      %19 = vsyncadd [#allocation4], %s18
      %s20 = sshll.u32 [#allocation3], 4
      %s21 = int_to_ptr.vmem [resolvable:$true] %s20
      %26 = dma.hbm_to_vmem [thread:$0]  %s0, 256, %s21, [#allocation4], 128, 128, 8
    $region5: #{tpu_custom_call.1} parent=1 // pred_fallthru
      _
    // Predicated region
    $region6: #{tpu_custom_call.1} parent=1 // pred_check
      _
    $region7: #{tpu_custom_call.1} parent=1 // pred_check_branch
      %28 = sbr.rel (0) target = $region9
    $region8: #{tpu_custom_call.1} parent=1 // pred_region
      %s30 = ssub.s32 1024, 1024
      %31 = vsyncadd [#allocation7], %s30
      %s32 = sshll.u32 [#allocation6], 4
      %s33 = int_to_ptr.vmem [resolvable:$true] %s32
      %38 = dma.hbm_to_vmem [thread:$0]  %s1, 1024, %s33, [#allocation7], 512, 512, 32
    $region9: #{tpu_custom_call.1} parent=1 // pred_fallthru
      _
    // Predicated region
    $region10: #{tpu_custom_call.1} parent=1 // pred_check
      _
    $region11: #{tpu_custom_call.1} parent=1 // pred_check_branch
      %40 = sbr.rel (0) target = $region13
    $region12: #{tpu_custom_call.1} parent=1 // pred_region
      %s42 = ssub.s32 8192, 8192
      %43 = vsyncadd [#allocation7], %s42
      %s44 = sshll.u32 [#allocation8], 4
      %s45 = int_to_ptr.vmem [resolvable:$true] %s44
      %50 = dma.hbm_to_vmem [thread:$0]  %s2, 8192, %s45, [#allocation7], 512, 512, 32
    $region13: #{tpu_custom_call.1} parent=1 // pred_fallthru
      _
    // Predicated region
    $region14: #{tpu_custom_call.1} parent=1 // pred_check
      _
    $region15: #{tpu_custom_call.1} parent=1 // pred_check_branch
      %52 = sbr.rel (0) target = $region17
    $region16: #{tpu_custom_call.1} parent=1 // pred_region
      _
    $region17: #{tpu_custom_call.1} parent=1 // pred_fallthru
      _
    // Predicated region
    $region18: #{tpu_custom_call.1} parent=1 // pred_check
      _
    $region19: #{tpu_custom_call.1} parent=1 // pred_check_branch
      %54 = sbr.rel (0) target = $region21
    $region20: #{tpu_custom_call.1} parent=1 // pred_region
      %55 = dma.done [#allocation4], 256
    $region21: #{tpu_custom_call.1} parent=1 // pred_fallthru
      _
    // Predicated region
    $region22: #{tpu_custom_call.1} parent=1 // pred_check
      _
    $region23: #{tpu_custom_call.1} parent=1 // pred_check_branch
      %57 = sbr.rel (0) target = $region25
    $region24: #{tpu_custom_call.1} parent=1 // pred_region
      %58 = dma.done [#allocation7], 1024
    $region25: #{tpu_custom_call.1} parent=1 // pred_fallthru
      _
    // Predicated region
    $region26: #{tpu_custom_call.1} parent=1 // pred_check
      _
    $region27: #{tpu_custom_call.1} parent=1 // pred_check_branch
      %60 = sbr.rel (0) target = $region29
    $region28: #{tpu_custom_call.1} parent=1 // pred_region
      %61 = dma.done [#allocation7], 8192
    $region29: #{tpu_custom_call.1} parent=1 // pred_fallthru
      _
    %v62 = vld [vmem:[#allocation3] sm:$0xff]
    %v63 = vld [vmem:[#allocation3 + $0x8] sm:$0xff]
    %v64 = vld [vmem:[#allocation6] sm:$0xff]
    %v65 = vld [vmem:[#allocation6 + $0x8] sm:$0xff]
    %v66 = vld [vmem:[#allocation6 + $0x10] sm:$0xff]
    %v67 = vld [vmem:[#allocation6 + $0x18] sm:$0xff]
    %v68 = vld [vmem:[#allocation6 + $0x20] sm:$0xff]
    %v69 = vld [vmem:[#allocation6 + $0x28] sm:$0xff]
    %v70 = vld [vmem:[#allocation6 + $0x30] sm:$0xff]
    %v71 = vld [vmem:[#allocation6 + $0x38] sm:$0xff]
    %v72 = vld [vmem:[%s3] sm:$0xf]
    %v74 = vlaneseq
    %v75 = vshrl.u32 %v74, 7
    %v76 = vsub.s32 0, %v75
    %v77 = vrot.slane %v72, %v76
    %v78 = vlaneseq
    %v79 = vshrl.u32 %v78, 7
    %v80 = vsub.s32 1, %v79
    %v81 = vrot.slane %v72, %v80
    %v82 = vlaneseq
    %v83 = vshrl.u32 %v82, 7
    %v84 = vsub.s32 2, %v83
    %v85 = vrot.slane %v72, %v84
    %v86 = vlaneseq
    %v87 = vshrl.u32 %v86, 7
    %v88 = vsub.s32 3, %v87
    %v89 = vrot.slane %v72, %v88
    %vm94 = vcmask 130048
    %v96 = vsel %vm94, %v62, 0
    %v99 = vsel %vm94, %v63, 0
    %101 = vmatprep.subr.mxu0 %v65
    %102 = vmatpush1.msra.mxu0 %v64
    %103 = vmatprep.subr.mxu0 %v69
    %104 = vmatpush1.msra.mxu0 %v68
    %105 = vmatprep.subr.mxu0 0.0
    %106 = vmatpush1.msra.mxu0 0.0
    %107 = vmatprep.subr.mxu0 0.0
    %108 = vmatpush1.msra.mxu0 0.0
    %109 = vmatprep.subr.mxu0 0.0
    %110 = vmatpush1.msra.mxu0 0.0
    %111 = vmatprep.subr.mxu0 0.0
    %112 = vmatpush1.msra.mxu0 0.0
    %113 = vmatprep.subr.mxu0 0.0
    %114 = vmatpush1.msra.mxu0 0.0
    %115 = vmatprep.subr.mxu0 0.0
    %116 = vmatpush1.msra.mxu0 0.0
    %117 = vmatprep.subr.mxu0 0.0
    %118 = vmatpush1.msra.mxu0 0.0
    %119 = vmatprep.subr.mxu0 0.0
    %120 = vmatpush1.msra.mxu0 0.0
    %121 = vmatprep.subr.mxu0 0.0
    %122 = vmatpush1.msra.mxu0 0.0
    %123 = vmatprep.subr.mxu0 0.0
    %124 = vmatpush1.msra.mxu0 0.0
    %125 = vmatprep.subr.mxu0 0.0
    %126 = vmatpush1.msra.mxu0 0.0
    %127 = vmatprep.subr.mxu0 0.0
    %128 = vmatpush1.msra.mxu0 0.0
    %129 = vmatprep.subr.mxu0 0.0
    %130 = vmatpush1.msra.mxu0 0.0
    %131 = vmatprep.subr.mxu0 0.0
    %132 = vmatpush1.msra.mxu0 0.0
    %133 = vmatprep.subr.mxu0 0.0
    %134 = vmatpush1.msra.mxu0 0.0
    %135 = vmatprep.subr.mxu0 0.0
    %136 = vmatpush1.msra.mxu0 0.0
    %137 = vmatprep.subr.mxu0 0.0
    %138 = vmatpush1.msra.mxu0 0.0
    %139 = vmatprep.subr.mxu0 0.0
    %140 = vmatpush1.msra.mxu0 0.0
    %141 = vmatprep.subr.mxu0 0.0
    %142 = vmatpush1.msra.mxu0 0.0
    %143 = vmatprep.subr.mxu0 0.0
    %144 = vmatpush1.msra.mxu0 0.0
    %145 = vmatprep.subr.mxu0 0.0
    %146 = vmatpush1.msra.mxu0 0.0
    %147 = vmatprep.subr.mxu0 0.0
    %148 = vmatpush1.msra.mxu0 0.0
    %149 = vmatprep.subr.mxu0 0.0
    %150 = vmatpush1.msra.mxu0 0.0
    %151 = vmatprep.subr.mxu0 0.0
    %152 = vmatpush1.msra.mxu0 0.0
    %153 = vmatprep.subr.mxu0 0.0
    %154 = vmatpush1.msra.mxu0 0.0
    %155 = vmatprep.subr.mxu0 0.0
    %156 = vmatpush1.msra.mxu0 0.0
    %157 = vmatprep.subr.mxu0 0.0
    %158 = vmatpush1.msra.mxu0 0.0
    %159 = vmatprep.subr.mxu0 0.0
    %160 = vmatpush1.msra.mxu0 0.0
    %161 = vmatprep.subr.mxu0 0.0
    %162 = vmatpush1.msra.mxu0 0.0
    %163 = vmatprep.subr.mxu0 0.0
    %164 = vmatpush1.msra.mxu0 0.0
    %165 = vmatprep.mubr.f32.mxu0 0.0
    %166 = vmatmul.mubr.f32.gmra.mrb[0].mxu0 %v96
    %v167 = vpop.f32.mrb[0].mxu0
    %v168 = vadd.f32 %v77, %v167
    %v169 = vpop.f32.mrb[0].mxu0
    %v170 = vadd.f32 %v81, %v169
    %171 = vmatprep.mubr.f32.mxu0 0.0
    %172 = vmatmul.mubr.f32.gmra.mrb[0].mxu0 %v99
    %v173 = vpop.f32.mrb[0].mxu0
    %v174 = vadd.f32 %v77, %v173
    %v175 = vpop.f32.mrb[0].mxu0
    %v176 = vadd.f32 %v81, %v175
    %177 = vdwg.mxu0
    %178 = vmatprep.subr.mxu0 %v67
    %179 = vmatpush1.msra.mxu0 %v66
    %180 = vmatprep.subr.mxu0 %v71
    %181 = vmatpush1.msra.mxu0 %v70
    %182 = vmatprep.subr.mxu0 0.0
    %183 = vmatpush1.msra.mxu0 0.0
    %184 = vmatprep.subr.mxu0 0.0
    %185 = vmatpush1.msra.mxu0 0.0
    %186 = vmatprep.subr.mxu0 0.0
    %187 = vmatpush1.msra.mxu0 0.0
    %188 = vmatprep.subr.mxu0 0.0
    %189 = vmatpush1.msra.mxu0 0.0
    %190 = vmatprep.subr.mxu0 0.0
    %191 = vmatpush1.msra.mxu0 0.0
    %192 = vmatprep.subr.mxu0 0.0
    %193 = vmatpush1.msra.mxu0 0.0
    %194 = vmatprep.subr.mxu0 0.0
    %195 = vmatpush1.msra.mxu0 0.0
    %196 = vmatprep.subr.mxu0 0.0
    %197 = vmatpush1.msra.mxu0 0.0
    %198 = vmatprep.subr.mxu0 0.0
    %199 = vmatpush1.msra.mxu0 0.0
    %200 = vmatprep.subr.mxu0 0.0
    %201 = vmatpush1.msra.mxu0 0.0
    %202 = vmatprep.subr.mxu0 0.0
    %203 = vmatpush1.msra.mxu0 0.0
    %204 = vmatprep.subr.mxu0 0.0
    %205 = vmatpush1.msra.mxu0 0.0
    %206 = vmatprep.subr.mxu0 0.0
    %207 = vmatpush1.msra.mxu0 0.0
    %208 = vmatprep.subr.mxu0 0.0
    %209 = vmatpush1.msra.mxu0 0.0
    %210 = vmatprep.subr.mxu0 0.0
    %211 = vmatpush1.msra.mxu0 0.0
    %212 = vmatprep.subr.mxu0 0.0
    %213 = vmatpush1.msra.mxu0 0.0
    %214 = vmatprep.subr.mxu0 0.0
    %215 = vmatpush1.msra.mxu0 0.0
    %216 = vmatprep.subr.mxu0 0.0
    %217 = vmatpush1.msra.mxu0 0.0
    %218 = vmatprep.subr.mxu0 0.0
    %219 = vmatpush1.msra.mxu0 0.0
    %220 = vmatprep.subr.mxu0 0.0
    %221 = vmatpush1.msra.mxu0 0.0
    %222 = vmatprep.subr.mxu0 0.0
    %223 = vmatpush1.msra.mxu0 0.0
    %224 = vmatprep.subr.mxu0 0.0
    %225 = vmatpush1.msra.mxu0 0.0
    %226 = vmatprep.subr.mxu0 0.0
    %227 = vmatpush1.msra.mxu0 0.0
    %228 = vmatprep.subr.mxu0 0.0
    %229 = vmatpush1.msra.mxu0 0.0
    %230 = vmatprep.subr.mxu0 0.0
    %231 = vmatpush1.msra.mxu0 0.0
    %232 = vmatprep.subr.mxu0 0.0
    %233 = vmatpush1.msra.mxu0 0.0
    %234 = vmatprep.subr.mxu0 0.0
    %235 = vmatpush1.msra.mxu0 0.0
    %236 = vmatprep.subr.mxu0 0.0
    %237 = vmatpush1.msra.mxu0 0.0
    %238 = vmatprep.subr.mxu0 0.0
    %239 = vmatpush1.msra.mxu0 0.0
    %240 = vmatprep.subr.mxu0 0.0
    %241 = vmatpush1.msra.mxu0 0.0
    %242 = vmatprep.mubr.f32.mxu0 0.0
    %243 = vmatmul.mubr.f32.gmra.mrb[0].mxu0 %v96
    %v244 = vpop.f32.mrb[0].mxu0
    %v245 = vadd.f32 %v85, %v244
    %v246 = vpop.f32.mrb[0].mxu0
    %v247 = vadd.f32 %v89, %v246
    %248 = vmatprep.mubr.f32.mxu0 0.0
    %249 = vmatmul.mubr.f32.gmra.mrb[0].mxu0 %v99
    %v250 = vpop.f32.mrb[0].mxu0
    %v251 = vadd.f32 %v85, %v250
    %v252 = vpop.f32.mrb[0].mxu0
    %v253 = vadd.f32 %v89, %v252
    %254 = vdwg.mxu0
    %255 = vst [vmem:[#allocation2] sm:$0xff] %v168
    %256 = vst [vmem:[#allocation2 + $0x8] sm:$0xff] %v170
    %257 = vst [vmem:[#allocation2 + $0x10] sm:$0xff] %v245
    %258 = vst [vmem:[#allocation2 + $0x18] sm:$0xff] %v247
    %259 = vst [vmem:[#allocation2 + $0x20] sm:$0xff] %v174
    %260 = vst [vmem:[#allocation2 + $0x28] sm:$0xff] %v176
    %261 = vst [vmem:[#allocation2 + $0x30] sm:$0xff] %v251
    %262 = vst [vmem:[#allocation2 + $0x38] sm:$0xff] %v253
    %v263 = vld [vmem:[#allocation2] sm:$0x3]
    %v264 = vld [vmem:[#allocation2 + $0x8] sm:$0x3]
    %v265 = vld [vmem:[#allocation2 + $0x10] sm:$0x3]
    %v266 = vld [vmem:[#allocation2 + $0x18] sm:$0x3]
    %v267 = vld [vmem:[#allocation8] sm:$0xff]
    %v268 = vld [vmem:[#allocation8 + $0x8] sm:$0xff]
    %v269 = vld [vmem:[#allocation8 + $0x10] sm:$0xff]
    %v270 = vld [vmem:[#allocation8 + $0x18] sm:$0xff]
    %v271 = vld [vmem:[#allocation8 + $0x20] sm:$0xff]
    %v272 = vld [vmem:[#allocation8 + $0x28] sm:$0xff]
    %v273 = vld [vmem:[#allocation8 + $0x30] sm:$0xff]
    %v274 = vld [vmem:[#allocation8 + $0x38] sm:$0xff]
    %v275 = vld [vmem:[#allocation8 + $0x40] sm:$0xff]
    %v276 = vld [vmem:[#allocation8 + $0x48] sm:$0xff]
    %v277 = vld [vmem:[#allocation8 + $0x50] sm:$0xff]
    %v278 = vld [vmem:[#allocation8 + $0x58] sm:$0xff]
    %v279 = vld [vmem:[#allocation8 + $0x60] sm:$0xff]
    %v280 = vld [vmem:[#allocation8 + $0x68] sm:$0xff]
    %v281 = vld [vmem:[#allocation8 + $0x70] sm:$0xff]
    %v282 = vld [vmem:[#allocation8 + $0x78] sm:$0xff]
    %v283 = vld [vmem:[#allocation8 + $0x80] sm:$0xff]
    %v284 = vld [vmem:[#allocation8 + $0x88] sm:$0xff]
    %v285 = vld [vmem:[#allocation8 + $0x90] sm:$0xff]
    %v286 = vld [vmem:[#allocation8 + $0x98] sm:$0xff]
    %v287 = vld [vmem:[#allocation8 + $0xa0] sm:$0xff]
    %v288 = vld [vmem:[#allocation8 + $0xa8] sm:$0xff]
    %v289 = vld [vmem:[#allocation8 + $0xb0] sm:$0xff]
    %v290 = vld [vmem:[#allocation8 + $0xb8] sm:$0xff]
    %v291 = vld [vmem:[#allocation8 + $0xc0] sm:$0xff]
    %v292 = vld [vmem:[#allocation8 + $0xc8] sm:$0xff]
    %v293 = vld [vmem:[#allocation8 + $0xd0] sm:$0xff]
    %v294 = vld [vmem:[#allocation8 + $0xd8] sm:$0xff]
    %v295 = vld [vmem:[#allocation8 + $0xe0] sm:$0xff]
    %v296 = vld [vmem:[#allocation8 + $0xe8] sm:$0xff]
    %v297 = vld [vmem:[#allocation8 + $0xf0] sm:$0xff]
    %v298 = vld [vmem:[#allocation8 + $0xf8] sm:$0xff]
    %v299 = vld [vmem:[#allocation8 + $0x100] sm:$0xff]
    %v300 = vld [vmem:[#allocation8 + $0x108] sm:$0xff]
    %v301 = vld [vmem:[#allocation8 + $0x110] sm:$0xff]
    %v302 = vld [vmem:[#allocation8 + $0x118] sm:$0xff]
    %v303 = vld [vmem:[#allocation8 + $0x120] sm:$0xff]
    %v304 = vld [vmem:[#allocation8 + $0x128] sm:$0xff]
    %v305 = vld [vmem:[#allocation8 + $0x130] sm:$0xff]
    %v306 = vld [vmem:[#allocation8 + $0x138] sm:$0xff]
    %v307 = vld [vmem:[#allocation8 + $0x140] sm:$0xff]
    %v308 = vld [vmem:[#allocation8 + $0x148] sm:$0xff]
    %v309 = vld [vmem:[#allocation8 + $0x150] sm:$0xff]
    %v310 = vld [vmem:[#allocation8 + $0x158] sm:$0xff]
    %v311 = vld [vmem:[#allocation8 + $0x160] sm:$0xff]
    %v312 = vld [vmem:[#allocation8 + $0x168] sm:$0xff]
    %v313 = vld [vmem:[#allocation8 + $0x170] sm:$0xff]
    %v314 = vld [vmem:[#allocation8 + $0x178] sm:$0xff]
    %v315 = vld [vmem:[#allocation8 + $0x180] sm:$0xff]
    %v316 = vld [vmem:[#allocation8 + $0x188] sm:$0xff]
    %v317 = vld [vmem:[#allocation8 + $0x190] sm:$0xff]
    %v318 = vld [vmem:[#allocation8 + $0x198] sm:$0xff]
    %v319 = vld [vmem:[#allocation8 + $0x1a0] sm:$0xff]
    %v320 = vld [vmem:[#allocation8 + $0x1a8] sm:$0xff]
    %v321 = vld [vmem:[#allocation8 + $0x1b0] sm:$0xff]
    %v322 = vld [vmem:[#allocation8 + $0x1b8] sm:$0xff]
    %v323 = vld [vmem:[#allocation8 + $0x1c0] sm:$0xff]
    %v324 = vld [vmem:[#allocation8 + $0x1c8] sm:$0xff]
    %v325 = vld [vmem:[#allocation8 + $0x1d0] sm:$0xff]
    %v326 = vld [vmem:[#allocation8 + $0x1d8] sm:$0xff]
    %v327 = vld [vmem:[#allocation8 + $0x1e0] sm:$0xff]
    %v328 = vld [vmem:[#allocation8 + $0x1e8] sm:$0xff]
    %v329 = vld [vmem:[#allocation8 + $0x1f0] sm:$0xff]
    %v330 = vld [vmem:[#allocation8 + $0x1f8] sm:$0xff]
    %331 = vmatprep.subr.mxu0 %v268
    %332 = vmatpush1.msra.mxu0 %v267
    %333 = vmatprep.subr.mxu0 %v272
    %334 = vmatpush1.msra.mxu0 %v271
    %335 = vmatprep.subr.mxu0 %v276
    %336 = vmatpush1.msra.mxu0 %v275
    %337 = vmatprep.subr.mxu0 %v280
    %338 = vmatpush1.msra.mxu0 %v279
    %339 = vmatprep.subr.mxu0 %v284
    %340 = vmatpush1.msra.mxu0 %v283
    %341 = vmatprep.subr.mxu0 %v288
    %342 = vmatpush1.msra.mxu0 %v287
    %343 = vmatprep.subr.mxu0 %v292
    %344 = vmatpush1.msra.mxu0 %v291
    %345 = vmatprep.subr.mxu0 %v296
    %346 = vmatpush1.msra.mxu0 %v295
    %347 = vmatprep.subr.mxu0 %v300
    %348 = vmatpush1.msra.mxu0 %v299
    %349 = vmatprep.subr.mxu0 %v304
    %350 = vmatpush1.msra.mxu0 %v303
    %351 = vmatprep.subr.mxu0 %v308
    %352 = vmatpush1.msra.mxu0 %v307
    %353 = vmatprep.subr.mxu0 %v312
    %354 = vmatpush1.msra.mxu0 %v311
    %355 = vmatprep.subr.mxu0 %v316
    %356 = vmatpush1.msra.mxu0 %v315
    %357 = vmatprep.subr.mxu0 %v320
    %358 = vmatpush1.msra.mxu0 %v319
    %359 = vmatprep.subr.mxu0 %v324
    %360 = vmatpush1.msra.mxu0 %v323
    %361 = vmatprep.subr.mxu0 %v328
    %362 = vmatpush1.msra.mxu0 %v327
    %363 = vmatprep.subr.mxu0 0.0
    %364 = vmatpush1.msra.mxu0 0.0
    %365 = vmatprep.subr.mxu0 0.0
    %366 = vmatpush1.msra.mxu0 0.0
    %367 = vmatprep.subr.mxu0 0.0
    %368 = vmatpush1.msra.mxu0 0.0
    %369 = vmatprep.subr.mxu0 0.0
    %370 = vmatpush1.msra.mxu0 0.0
    %371 = vmatprep.subr.mxu0 0.0
    %372 = vmatpush1.msra.mxu0 0.0
    %373 = vmatprep.subr.mxu0 0.0
    %374 = vmatpush1.msra.mxu0 0.0
    %375 = vmatprep.subr.mxu0 0.0
    %376 = vmatpush1.msra.mxu0 0.0
    %377 = vmatprep.subr.mxu0 0.0
    %378 = vmatpush1.msra.mxu0 0.0
    %379 = vmatprep.subr.mxu0 0.0
    %380 = vmatpush1.msra.mxu0 0.0
    %381 = vmatprep.subr.mxu0 0.0
    %382 = vmatpush1.msra.mxu0 0.0
    %383 = vmatprep.subr.mxu0 0.0
    %384 = vmatpush1.msra.mxu0 0.0
    %385 = vmatprep.subr.mxu0 0.0
    %386 = vmatpush1.msra.mxu0 0.0
    %387 = vmatprep.subr.mxu0 0.0
    %388 = vmatpush1.msra.mxu0 0.0
    %389 = vmatprep.subr.mxu0 0.0
    %390 = vmatpush1.msra.mxu0 0.0
    %391 = vmatprep.subr.mxu0 0.0
    %392 = vmatpush1.msra.mxu0 0.0
    %393 = vmatprep.subr.mxu0 0.0
    %394 = vmatpush1.msra.mxu0 0.0
    %395 = vmatprep.mubr.f32.mxu0 0.0
    %396 = vmatmul.mubr.f32.gmra.mrb[0].mxu0 0.0
    %v397 = vpop.f32.mrb[0].mxu0
    %v398 = vadd.f32 0.0, %v397
    %v399 = vpop.f32.mrb[0].mxu0
    %v400 = vadd.f32 0.0, %v399
    %401 = vdwg.mxu0
    %402 = vmatprep.subr.mxu0 %v270
    %403 = vmatpush1.msra.mxu0 %v269
    %404 = vmatprep.subr.mxu0 %v274
    %405 = vmatpush1.msra.mxu0 %v273
    %406 = vmatprep.subr.mxu0 %v278
    %407 = vmatpush1.msra.mxu0 %v277
    %408 = vmatprep.subr.mxu0 %v282
    %409 = vmatpush1.msra.mxu0 %v281
    %410 = vmatprep.subr.mxu0 %v286
    %411 = vmatpush1.msra.mxu0 %v285
    %412 = vmatprep.subr.mxu0 %v290
    %413 = vmatpush1.msra.mxu0 %v289
    %414 = vmatprep.subr.mxu0 %v294
    %415 = vmatpush1.msra.mxu0 %v293
    %416 = vmatprep.subr.mxu0 %v298
    %417 = vmatpush1.msra.mxu0 %v297
    %418 = vmatprep.subr.mxu0 %v302
    %419 = vmatpush1.msra.mxu0 %v301
    %420 = vmatprep.subr.mxu0 %v306
    %421 = vmatpush1.msra.mxu0 %v305
    %422 = vmatprep.subr.mxu0 %v310
    %423 = vmatpush1.msra.mxu0 %v309
    %424 = vmatprep.subr.mxu0 %v314
    %425 = vmatpush1.msra.mxu0 %v313
    %426 = vmatprep.subr.mxu0 %v318
    %427 = vmatpush1.msra.mxu0 %v317
    %428 = vmatprep.subr.mxu0 %v322
    %429 = vmatpush1.msra.mxu0 %v321
    %430 = vmatprep.subr.mxu0 %v326
    %431 = vmatpush1.msra.mxu0 %v325
    %432 = vmatprep.subr.mxu0 %v330
    %433 = vmatpush1.msra.mxu0 %v329
    %434 = vmatprep.subr.mxu0 0.0
    %435 = vmatpush1.msra.mxu0 0.0
    %436 = vmatprep.subr.mxu0 0.0
    %437 = vmatpush1.msra.mxu0 0.0
    %438 = vmatprep.subr.mxu0 0.0
    %439 = vmatpush1.msra.mxu0 0.0
    %440 = vmatprep.subr.mxu0 0.0
    %441 = vmatpush1.msra.mxu0 0.0
    %442 = vmatprep.subr.mxu0 0.0
    %443 = vmatpush1.msra.mxu0 0.0
    %444 = vmatprep.subr.mxu0 0.0
    %445 = vmatpush1.msra.mxu0 0.0
    %446 = vmatprep.subr.mxu0 0.0
    %447 = vmatpush1.msra.mxu0 0.0
    %448 = vmatprep.subr.mxu0 0.0
    %449 = vmatpush1.msra.mxu0 0.0
    %450 = vmatprep.subr.mxu0 0.0
    %451 = vmatpush1.msra.mxu0 0.0
    %452 = vmatprep.subr.mxu0 0.0
    %453 = vmatpush1.msra.mxu0 0.0
    %454 = vmatprep.subr.mxu0 0.0
    %455 = vmatpush1.msra.mxu0 0.0
    %456 = vmatprep.subr.mxu0 0.0
    %457 = vmatpush1.msra.mxu0 0.0
    %458 = vmatprep.subr.mxu0 0.0
    %459 = vmatpush1.msra.mxu0 0.0
    %460 = vmatprep.subr.mxu0 0.0
    %461 = vmatpush1.msra.mxu0 0.0
    %462 = vmatprep.subr.mxu0 0.0
    %463 = vmatpush1.msra.mxu0 0.0
    %464 = vmatprep.subr.mxu0 0.0
    %465 = vmatpush1.msra.mxu0 0.0
    %466 = vmatprep.mubr.f32.mxu0 0.0
    %467 = vmatmul.mubr.f32.gmra.mrb[0].mxu0 0.0
    %v468 = vpop.f32.mrb[0].mxu0
    %v469 = vadd.f32 0.0, %v468
    %v470 = vpop.f32.mrb[0].mxu0
    %v471 = vadd.f32 0.0, %v470
    %472 = vdwg.mxu0
    %v473 = vadd.f32 %v263, %v398
    %v474 = vadd.f32 %v264, %v400
    %v475 = vadd.f32 %v265, %v469
    %v476 = vadd.f32 %v266, %v471
    %v477 = vmul.f32 %v473, 0.5
    %v478 = vtanh.pop %v477
    %v479 = vmul.f32 %v478, 0.5
    %v480 = vadd.f32 %v479, 0.5
    %v481 = vmul.f32 %v474, 0.5
    %v482 = vtanh.pop %v481
    %v483 = vmul.f32 %v482, 0.5
    %v484 = vadd.f32 %v483, 0.5
    %v485 = vtanh.pop %v475
    %v486 = vmul.f32 %v476, 0.5
    %v487 = vtanh.pop %v486
    %v488 = vmul.f32 %v487, 0.5
    %v489 = vadd.f32 %v488, 0.5
    %v490 = vmul.f32 %v484, 0.0
    %v491 = vmul.f32 %v480, %v485
    %v492 = vadd.f32 %v490, %v491
    %v493 = vtanh.pop %v492
    %v494 = vmul.f32 %v489, %v493
    %495 = vst [vmem:[#allocation9] sm:$0x3] %v494
    %496 = vst [vmem:[#allocation10] sm:$0x3] %v492
    %v497 = vld [vmem:[#allocation2] sm:$0xc]
    %v498 = vld [vmem:[#allocation2 + $0x8] sm:$0xc]
    %v499 = vld [vmem:[#allocation2 + $0x10] sm:$0xc]
    %v500 = vld [vmem:[#allocation2 + $0x18] sm:$0xc]
    %v501 = vld [vmem:[#allocation8] sm:$0xff]
    %v502 = vld [vmem:[#allocation8 + $0x8] sm:$0xff]
    %v503 = vld [vmem:[#allocation8 + $0x10] sm:$0xff]
    %v504 = vld [vmem:[#allocation8 + $0x18] sm:$0xff]
    %v505 = vld [vmem:[#allocation8 + $0x20] sm:$0xff]
    %v506 = vld [vmem:[#allocation8 + $0x28] sm:$0xff]
    %v507 = vld [vmem:[#allocation8 + $0x30] sm:$0xff]
    %v508 = vld [vmem:[#allocation8 + $0x38] sm:$0xff]
    %v509 = vld [vmem:[#allocation8 + $0x40] sm:$0xff]
    %v510 = vld [vmem:[#allocation8 + $0x48] sm:$0xff]
    %v511 = vld [vmem:[#allocation8 + $0x50] sm:$0xff]
    %v512 = vld [vmem:[#allocation8 + $0x58] sm:$0xff]
    %v513 = vld [vmem:[#allocation8 + $0x60] sm:$0xff]
    %v514 = vld [vmem:[#allocation8 + $0x68] sm:$0xff]
    %v515 = vld [vmem:[#allocation8 + $0x70] sm:$0xff]
    %v516 = vld [vmem:[#allocation8 + $0x78] sm:$0xff]
    %v517 = vld [vmem:[#allocation8 + $0x80] sm:$0xff]
    %v518 = vld [vmem:[#allocation8 + $0x88] sm:$0xff]
    %v519 = vld [vmem:[#allocation8 + $0x90] sm:$0xff]
    %v520 = vld [vmem:[#allocation8 + $0x98] sm:$0xff]
    %v521 = vld [vmem:[#allocation8 + $0xa0] sm:$0xff]
    %v522 = vld [vmem:[#allocation8 + $0xa8] sm:$0xff]
    %v523 = vld [vmem:[#allocation8 + $0xb0] sm:$0xff]
    %v524 = vld [vmem:[#allocation8 + $0xb8] sm:$0xff]
    %v525 = vld [vmem:[#allocation8 + $0xc0] sm:$0xff]
    %v526 = vld [vmem:[#allocation8 + $0xc8] sm:$0xff]
    %v527 = vld [vmem:[#allocation8 + $0xd0] sm:$0xff]
    %v528 = vld [vmem:[#allocation8 + $0xd8] sm:$0xff]
    %v529 = vld [vmem:[#allocation8 + $0xe0] sm:$0xff]
    %v530 = vld [vmem:[#allocation8 + $0xe8] sm:$0xff]
    %v531 = vld [vmem:[#allocation8 + $0xf0] sm:$0xff]
    %v532 = vld [vmem:[#allocation8 + $0xf8] sm:$0xff]
    %v533 = vld [vmem:[#allocation8 + $0x100] sm:$0xff]
    %v534 = vld [vmem:[#allocation8 + $0x108] sm:$0xff]
    %v535 = vld [vmem:[#allocation8 + $0x110] sm:$0xff]
    %v536 = vld [vmem:[#allocation8 + $0x118] sm:$0xff]
    %v537 = vld [vmem:[#allocation8 + $0x120] sm:$0xff]
    %v538 = vld [vmem:[#allocation8 + $0x128] sm:$0xff]
    %v539 = vld [vmem:[#allocation8 + $0x130] sm:$0xff]
    %v540 = vld [vmem:[#allocation8 + $0x138] sm:$0xff]
    %v541 = vld [vmem:[#allocation8 + $0x140] sm:$0xff]
    %v542 = vld [vmem:[#allocation8 + $0x148] sm:$0xff]
    %v543 = vld [vmem:[#allocation8 + $0x150] sm:$0xff]
    %v544 = vld [vmem:[#allocation8 + $0x158] sm:$0xff]
    %v545 = vld [vmem:[#allocation8 + $0x160] sm:$0xff]
    %v546 = vld [vmem:[#allocation8 + $0x168] sm:$0xff]
    %v547 = vld [vmem:[#allocation8 + $0x170] sm:$0xff]
    %v548 = vld [vmem:[#allocation8 + $0x178] sm:$0xff]
    %v549 = vld [vmem:[#allocation8 + $0x180] sm:$0xff]
    %v550 = vld [vmem:[#allocation8 + $0x188] sm:$0xff]
    %v551 = vld [vmem:[#allocation8 + $0x190] sm:$0xff]
    %v552 = vld [vmem:[#allocation8 + $0x198] sm:$0xff]
    %v553 = vld [vmem:[#allocation8 + $0x1a0] sm:$0xff]
    %v554 = vld [vmem:[#allocation8 + $0x1a8] sm:$0xff]
    %v555 = vld [vmem:[#allocation8 + $0x1b0] sm:$0xff]
    %v556 = vld [vmem:[#allocation8 + $0x1b8] sm:$0xff]
    %v557 = vld [vmem:[#allocation8 + $0x1c0] sm:$0xff]
    %v558 = vld [vmem:[#allocation8 + $0x1c8] sm:$0xff]
    %v559 = vld [vmem:[#allocation8 + $0x1d0] sm:$0xff]
    %v560 = vld [vmem:[#allocation8 + $0x1d8] sm:$0xff]
    %v561 = vld [vmem:[#allocation8 + $0x1e0] sm:$0xff]
    %v562 = vld [vmem:[#allocation8 + $0x1e8] sm:$0xff]
    %v563 = vld [vmem:[#allocation8 + $0x1f0] sm:$0xff]
    %v564 = vld [vmem:[#allocation8 + $0x1f8] sm:$0xff]
    %565 = vmatprep.subr.mxu0 %v502
    %566 = vmatpush1.msra.mxu0 %v501
    %567 = vmatprep.subr.mxu0 %v506
    %568 = vmatpush1.msra.mxu0 %v505
    %569 = vmatprep.subr.mxu0 %v510
    %570 = vmatpush1.msra.mxu0 %v509
    %571 = vmatprep.subr.mxu0 %v514
    %572 = vmatpush1.msra.mxu0 %v513
    %573 = vmatprep.subr.mxu0 %v518
    %574 = vmatpush1.msra.mxu0 %v517
    %575 = vmatprep.subr.mxu0 %v522
    %576 = vmatpush1.msra.mxu0 %v521
    %577 = vmatprep.subr.mxu0 %v526
    %578 = vmatpush1.msra.mxu0 %v525
    %579 = vmatprep.subr.mxu0 %v530
    %580 = vmatpush1.msra.mxu0 %v529
    %581 = vmatprep.subr.mxu0 %v534
    %582 = vmatpush1.msra.mxu0 %v533
    %583 = vmatprep.subr.mxu0 %v538
    %584 = vmatpush1.msra.mxu0 %v537
    %585 = vmatprep.subr.mxu0 %v542
    %586 = vmatpush1.msra.mxu0 %v541
    %587 = vmatprep.subr.mxu0 %v546
    %588 = vmatpush1.msra.mxu0 %v545
    %589 = vmatprep.subr.mxu0 %v550
    %590 = vmatpush1.msra.mxu0 %v549
    %591 = vmatprep.subr.mxu0 %v554
    %592 = vmatpush1.msra.mxu0 %v553
    %593 = vmatprep.subr.mxu0 %v558
    %594 = vmatpush1.msra.mxu0 %v557
    %595 = vmatprep.subr.mxu0 %v562
    %596 = vmatpush1.msra.mxu0 %v561
    %597 = vmatprep.subr.mxu0 0.0
    %598 = vmatpush1.msra.mxu0 0.0
    %599 = vmatprep.subr.mxu0 0.0
    %600 = vmatpush1.msra.mxu0 0.0
    %601 = vmatprep.subr.mxu0 0.0
    %602 = vmatpush1.msra.mxu0 0.0
    %603 = vmatprep.subr.mxu0 0.0
    %604 = vmatpush1.msra.mxu0 0.0
    %605 = vmatprep.subr.mxu0 0.0
    %606 = vmatpush1.msra.mxu0 0.0
    %607 = vmatprep.subr.mxu0 0.0
    %608 = vmatpush1.msra.mxu0 0.0
    %609 = vmatprep.subr.mxu0 0.0
    %610 = vmatpush1.msra.mxu0 0.0
    %611 = vmatprep.subr.mxu0 0.0
    %612 = vmatpush1.msra.mxu0 0.0
    %613 = vmatprep.subr.mxu0 0.0
    %614 = vmatpush1.msra.mxu0 0.0
    %615 = vmatprep.subr.mxu0 0.0
    %616 = vmatpush1.msra.mxu0 0.0
    %617 = vmatprep.subr.mxu0 0.0
    %618 = vmatpush1.msra.mxu0 0.0
    %619 = vmatprep.subr.mxu0 0.0
    %620 = vmatpush1.msra.mxu0 0.0
    %621 = vmatprep.subr.mxu0 0.0
    %622 = vmatpush1.msra.mxu0 0.0
    %623 = vmatprep.subr.mxu0 0.0
    %624 = vmatpush1.msra.mxu0 0.0
    %625 = vmatprep.subr.mxu0 0.0
    %626 = vmatpush1.msra.mxu0 0.0
    %627 = vmatprep.subr.mxu0 0.0
    %628 = vmatpush1.msra.mxu0 0.0
    %629 = vmatprep.mubr.f32.mxu0 0.0
    %630 = vmatmul.mubr.f32.gmra.mrb[0].mxu0 %v494
    %v631 = vpop.f32.mrb[0].mxu0
    %v632 = vadd.f32 0.0, %v631
    %v633 = vpop.f32.mrb[0].mxu0
    %v634 = vadd.f32 0.0, %v633
    %635 = vdwg.mxu0
    %636 = vmatprep.subr.mxu0 %v504
    %637 = vmatpush1.msra.mxu0 %v503
    %638 = vmatprep.subr.mxu0 %v508
    %639 = vmatpush1.msra.mxu0 %v507
    %640 = vmatprep.subr.mxu0 %v512
    %641 = vmatpush1.msra.mxu0 %v511
    %642 = vmatprep.subr.mxu0 %v516
    %643 = vmatpush1.msra.mxu0 %v515
    %644 = vmatprep.subr.mxu0 %v520
    %645 = vmatpush1.msra.mxu0 %v519
    %646 = vmatprep.subr.mxu0 %v524
    %647 = vmatpush1.msra.mxu0 %v523
    %648 = vmatprep.subr.mxu0 %v528
    %649 = vmatpush1.msra.mxu0 %v527
    %650 = vmatprep.subr.mxu0 %v532
    %651 = vmatpush1.msra.mxu0 %v531
    %652 = vmatprep.subr.mxu0 %v536
    %653 = vmatpush1.msra.mxu0 %v535
    %654 = vmatprep.subr.mxu0 %v540
    %655 = vmatpush1.msra.mxu0 %v539
    %656 = vmatprep.subr.mxu0 %v544
    %657 = vmatpush1.msra.mxu0 %v543
    %658 = vmatprep.subr.mxu0 %v548
    %659 = vmatpush1.msra.mxu0 %v547
    %660 = vmatprep.subr.mxu0 %v552
    %661 = vmatpush1.msra.mxu0 %v551
    %662 = vmatprep.subr.mxu0 %v556
    %663 = vmatpush1.msra.mxu0 %v555
    %664 = vmatprep.subr.mxu0 %v560
    %665 = vmatpush1.msra.mxu0 %v559
    %666 = vmatprep.subr.mxu0 %v564
    %667 = vmatpush1.msra.mxu0 %v563
    %668 = vmatprep.subr.mxu0 0.0
    %669 = vmatpush1.msra.mxu0 0.0
    %670 = vmatprep.subr.mxu0 0.0
    %671 = vmatpush1.msra.mxu0 0.0
    %672 = vmatprep.subr.mxu0 0.0
    %673 = vmatpush1.msra.mxu0 0.0
    %674 = vmatprep.subr.mxu0 0.0
    %675 = vmatpush1.msra.mxu0 0.0
    %676 = vmatprep.subr.mxu0 0.0
    %677 = vmatpush1.msra.mxu0 0.0
    %678 = vmatprep.subr.mxu0 0.0
    %679 = vmatpush1.msra.mxu0 0.0
    %680 = vmatprep.subr.mxu0 0.0
    %681 = vmatpush1.msra.mxu0 0.0
    %682 = vmatprep.subr.mxu0 0.0
    %683 = vmatpush1.msra.mxu0 0.0
    %684 = vmatprep.subr.mxu0 0.0
    %685 = vmatpush1.msra.mxu0 0.0
    %686 = vmatprep.subr.mxu0 0.0
    %687 = vmatpush1.msra.mxu0 0.0
    %688 = vmatprep.subr.mxu0 0.0
    %689 = vmatpush1.msra.mxu0 0.0
    %690 = vmatprep.subr.mxu0 0.0
    %691 = vmatpush1.msra.mxu0 0.0
    %692 = vmatprep.subr.mxu0 0.0
    %693 = vmatpush1.msra.mxu0 0.0
    %694 = vmatprep.subr.mxu0 0.0
    %695 = vmatpush1.msra.mxu0 0.0
    %696 = vmatprep.subr.mxu0 0.0
    %697 = vmatpush1.msra.mxu0 0.0
    %698 = vmatprep.subr.mxu0 0.0
    %699 = vmatpush1.msra.mxu0 0.0
    %700 = vmatprep.mubr.f32.mxu0 0.0
    %701 = vmatmul.mubr.f32.gmra.mrb[0].mxu0 %v494
    %v702 = vpop.f32.mrb[0].mxu0
    %v703 = vadd.f32 0.0, %v702
    %v704 = vpop.f32.mrb[0].mxu0
    %v705 = vadd.f32 0.0, %v704
    %706 = vdwg.mxu0
    %v711 = vrot.slane %v632, 6
    %v712 = vrot.slane %v634, 6
    %v713 = vrot.slane %v703, 6
    %v714 = vrot.slane %v705, 6
    %v719 = vadd.f32 %v497, %v711
    %v720 = vadd.f32 %v498, %v712
    %v721 = vadd.f32 %v499, %v713
    %v722 = vadd.f32 %v500, %v714
    %v723 = vmul.f32 %v719, 0.5
    %v724 = vtanh.pop %v723
    %v725 = vmul.f32 %v724, 0.5
    %v726 = vadd.f32 %v725, 0.5
    %v727 = vmul.f32 %v720, 0.5
    %v728 = vtanh.pop %v727
    %v729 = vmul.f32 %v728, 0.5
    %v730 = vadd.f32 %v729, 0.5
    %v731 = vtanh.pop %v721
    %v732 = vmul.f32 %v722, 0.5
    %v733 = vtanh.pop %v732
    %v734 = vmul.f32 %v733, 0.5
    %v735 = vadd.f32 %v734, 0.5
    %v737 = vrot.slane %v492, 6
    %v739 = vmul.f32 %v730, %v737
    %v740 = vmul.f32 %v726, %v731
    %v741 = vadd.f32 %v739, %v740
    %v742 = vtanh.pop %v741
    %v743 = vmul.f32 %v735, %v742
    %s744 = scalar_lea.vmem [#allocation9], 2
    %745 = vst [vmem:[%s744 - $0x2] sm:$0xc] %v743
    %s746 = scalar_lea.vmem [#allocation10], 2
    %747 = vst [vmem:[%s746 - $0x2] sm:$0xc] %v741
    %v748 = vld [vmem:[#allocation2] sm:$0x30]
    %v749 = vld [vmem:[#allocation2 + $0x8] sm:$0x30]
    %v750 = vld [vmem:[#allocation2 + $0x10] sm:$0x30]
    %v751 = vld [vmem:[#allocation2 + $0x18] sm:$0x30]
    %v752 = vld [vmem:[#allocation8] sm:$0xff]
    %v753 = vld [vmem:[#allocation8 + $0x8] sm:$0xff]
    %v754 = vld [vmem:[#allocation8 + $0x10] sm:$0xff]
    %v755 = vld [vmem:[#allocation8 + $0x18] sm:$0xff]
    %v756 = vld [vmem:[#allocation8 + $0x20] sm:$0xff]
    %v757 = vld [vmem:[#allocation8 + $0x28] sm:$0xff]
    %v758 = vld [vmem:[#allocation8 + $0x30] sm:$0xff]
    %v759 = vld [vmem:[#allocation8 + $0x38] sm:$0xff]
    %v760 = vld [vmem:[#allocation8 + $0x40] sm:$0xff]
    %v761 = vld [vmem:[#allocation8 + $0x48] sm:$0xff]
    %v762 = vld [vmem:[#allocation8 + $0x50] sm:$0xff]
    %v763 = vld [vmem:[#allocation8 + $0x58] sm:$0xff]
    %v764 = vld [vmem:[#allocation8 + $0x60] sm:$0xff]
    %v765 = vld [vmem:[#allocation8 + $0x68] sm:$0xff]
    %v766 = vld [vmem:[#allocation8 + $0x70] sm:$0xff]
    %v767 = vld [vmem:[#allocation8 + $0x78] sm:$0xff]
    %v768 = vld [vmem:[#allocation8 + $0x80] sm:$0xff]
    %v769 = vld [vmem:[#allocation8 + $0x88] sm:$0xff]
    %v770 = vld [vmem:[#allocation8 + $0x90] sm:$0xff]
    %v771 = vld [vmem:[#allocation8 + $0x98] sm:$0xff]
    %v772 = vld [vmem:[#allocation8 + $0xa0] sm:$0xff]
    %v773 = vld [vmem:[#allocation8 + $0xa8] sm:$0xff]
    %v774 = vld [vmem:[#allocation8 + $0xb0] sm:$0xff]
    %v775 = vld [vmem:[#allocation8 + $0xb8] sm:$0xff]
    %v776 = vld [vmem:[#allocation8 + $0xc0] sm:$0xff]
    %v777 = vld [vmem:[#allocation8 + $0xc8] sm:$0xff]
    %v778 = vld [vmem:[#allocation8 + $0xd0] sm:$0xff]
    %v779 = vld [vmem:[#allocation8 + $0xd8] sm:$0xff]
    %v780 = vld [vmem:[#allocation8 + $0xe0] sm:$0xff]
    %v781 = vld [vmem:[#allocation8 + $0xe8] sm:$0xff]
    %v782 = vld [vmem:[#allocation8 + $0xf0] sm:$0xff]
    %v783 = vld [vmem:[#allocation8 + $0xf8] sm:$0xff]
    %v784 = vld [vmem:[#allocation8 + $0x100] sm:$0xff]
    %v785 = vld [vmem:[#allocation8 + $0x108] sm:$0xff]
    %v786 = vld [vmem:[#allocation8 + $0x110] sm:$0xff]
    %v787 = vld [vmem:[#allocation8 + $0x118] sm:$0xff]
    %v788 = vld [vmem:[#allocation8 + $0x120] sm:$0xff]
    %v789 = vld [vmem:[#allocation8 + $0x128] sm:$0xff]
    %v790 = vld [vmem:[#allocation8 + $0x130] sm:$0xff]
    %v791 = vld [vmem:[#allocation8 + $0x138] sm:$0xff]
    %v792 = vld [vmem:[#allocation8 + $0x140] sm:$0xff]
    %v793 = vld [vmem:[#allocation8 + $0x148] sm:$0xff]
    %v794 = vld [vmem:[#allocation8 + $0x150] sm:$0xff]
    %v795 = vld [vmem:[#allocation8 + $0x158] sm:$0xff]
    %v796 = vld [vmem:[#allocation8 + $0x160] sm:$0xff]
    %v797 = vld [vmem:[#allocation8 + $0x168] sm:$0xff]
    %v798 = vld [vmem:[#allocation8 + $0x170] sm:$0xff]
    %v799 = vld [vmem:[#allocation8 + $0x178] sm:$0xff]
    %v800 = vld [vmem:[#allocation8 + $0x180] sm:$0xff]
    %v801 = vld [vmem:[#allocation8 + $0x188] sm:$0xff]
    %v802 = vld [vmem:[#allocation8 + $0x190] sm:$0xff]
    %v803 = vld [vmem:[#allocation8 + $0x198] sm:$0xff]
    %v804 = vld [vmem:[#allocation8 + $0x1a0] sm:$0xff]
    %v805 = vld [vmem:[#allocation8 + $0x1a8] sm:$0xff]
    %v806 = vld [vmem:[#allocation8 + $0x1b0] sm:$0xff]
    %v807 = vld [vmem:[#allocation8 + $0x1b8] sm:$0xff]
    %v808 = vld [vmem:[#allocation8 + $0x1c0] sm:$0xff]
    %v809 = vld [vmem:[#allocation8 + $0x1c8] sm:$0xff]
    %v810 = vld [vmem:[#allocation8 + $0x1d0] sm:$0xff]
    %v811 = vld [vmem:[#allocation8 + $0x1d8] sm:$0xff]
    %v812 = vld [vmem:[#allocation8 + $0x1e0] sm:$0xff]
    %v813 = vld [vmem:[#allocation8 + $0x1e8] sm:$0xff]
    %v814 = vld [vmem:[#allocation8 + $0x1f0] sm:$0xff]
    %v815 = vld [vmem:[#allocation8 + $0x1f8] sm:$0xff]
    %v817 = vrot.slane %v743, 2
    %819 = vmatprep.subr.mxu0 %v753
    %820 = vmatpush1.msra.mxu0 %v752
    %821 = vmatprep.subr.mxu0 %v757
    %822 = vmatpush1.msra.mxu0 %v756
    %823 = vmatprep.subr.mxu0 %v761
    %824 = vmatpush1.msra.mxu0 %v760
    %825 = vmatprep.subr.mxu0 %v765
    %826 = vmatpush1.msra.mxu0 %v764
    %827 = vmatprep.subr.mxu0 %v769
    %828 = vmatpush1.msra.mxu0 %v768
    %829 = vmatprep.subr.mxu0 %v773
    %830 = vmatpush1.msra.mxu0 %v772
    %831 = vmatprep.subr.mxu0 %v777
    %832 = vmatpush1.msra.mxu0 %v776
    %833 = vmatprep.subr.mxu0 %v781
    %834 = vmatpush1.msra.mxu0 %v780
    %835 = vmatprep.subr.mxu0 %v785
    %836 = vmatpush1.msra.mxu0 %v784
    %837 = vmatprep.subr.mxu0 %v789
    %838 = vmatpush1.msra.mxu0 %v788
    %839 = vmatprep.subr.mxu0 %v793
    %840 = vmatpush1.msra.mxu0 %v792
    %841 = vmatprep.subr.mxu0 %v797
    %842 = vmatpush1.msra.mxu0 %v796
    %843 = vmatprep.subr.mxu0 %v801
    %844 = vmatpush1.msra.mxu0 %v800
    %845 = vmatprep.subr.mxu0 %v805
    %846 = vmatpush1.msra.mxu0 %v804
    %847 = vmatprep.subr.mxu0 %v809
    %848 = vmatpush1.msra.mxu0 %v808
    %849 = vmatprep.subr.mxu0 %v813
    %850 = vmatpush1.msra.mxu0 %v812
    %851 = vmatprep.subr.mxu0 0.0
    %852 = vmatpush1.msra.mxu0 0.0
    %853 = vmatprep.subr.mxu0 0.0
    %854 = vmatpush1.msra.mxu0 0.0
    %855 = vmatprep.subr.mxu0 0.0
    %856 = vmatpush1.msra.mxu0 0.0
    %857 = vmatprep.subr.mxu0 0.0
    %858 = vmatpush1.msra.mxu0 0.0
    %859 = vmatprep.subr.mxu0 0.0
    %860 = vmatpush1.msra.mxu0 0.0
    %861 = vmatprep.subr.mxu0 0.0
    %862 = vmatpush1.msra.mxu0 0.0
    %863 = vmatprep.subr.mxu0 0.0
    %864 = vmatpush1.msra.mxu0 0.0
    %865 = vmatprep.subr.mxu0 0.0
    %866 = vmatpush1.msra.mxu0 0.0
    %867 = vmatprep.subr.mxu0 0.0
    %868 = vmatpush1.msra.mxu0 0.0
    %869 = vmatprep.subr.mxu0 0.0
    %870 = vmatpush1.msra.mxu0 0.0
    %871 = vmatprep.subr.mxu0 0.0
    %872 = vmatpush1.msra.mxu0 0.0
    %873 = vmatprep.subr.mxu0 0.0
    %874 = vmatpush1.msra.mxu0 0.0
    %875 = vmatprep.subr.mxu0 0.0
    %876 = vmatpush1.msra.mxu0 0.0
    %877 = vmatprep.subr.mxu0 0.0
    %878 = vmatpush1.msra.mxu0 0.0
    %879 = vmatprep.subr.mxu0 0.0
    %880 = vmatpush1.msra.mxu0 0.0
    %881 = vmatprep.subr.mxu0 0.0
    %882 = vmatpush1.msra.mxu0 0.0
    %883 = vmatprep.mubr.f32.mxu0 0.0
    %884 = vmatmul.mubr.f32.gmra.mrb[0].mxu0 %v817
    %v885 = vpop.f32.mrb[0].mxu0
    %v886 = vadd.f32 0.0, %v885
    %v887 = vpop.f32.mrb[0].mxu0
    %v888 = vadd.f32 0.0, %v887
    %889 = vdwg.mxu0
    %890 = vmatprep.subr.mxu0 %v755
    %891 = vmatpush1.msra.mxu0 %v754
    %892 = vmatprep.subr.mxu0 %v759
    %893 = vmatpush1.msra.mxu0 %v758
    %894 = vmatprep.subr.mxu0 %v763
    %895 = vmatpush1.msra.mxu0 %v762
    %896 = vmatprep.subr.mxu0 %v767
    %897 = vmatpush1.msra.mxu0 %v766
    %898 = vmatprep.subr.mxu0 %v771
    %899 = vmatpush1.msra.mxu0 %v770
    %900 = vmatprep.subr.mxu0 %v775
    %901 = vmatpush1.msra.mxu0 %v774
    %902 = vmatprep.subr.mxu0 %v779
    %903 = vmatpush1.msra.mxu0 %v778
    %904 = vmatprep.subr.mxu0 %v783
    %905 = vmatpush1.msra.mxu0 %v782
    %906 = vmatprep.subr.mxu0 %v787
    %907 = vmatpush1.msra.mxu0 %v786
    %908 = vmatprep.subr.mxu0 %v791
    %909 = vmatpush1.msra.mxu0 %v790
    %910 = vmatprep.subr.mxu0 %v795
    %911 = vmatpush1.msra.mxu0 %v794
    %912 = vmatprep.subr.mxu0 %v799
    %913 = vmatpush1.msra.mxu0 %v798
    %914 = vmatprep.subr.mxu0 %v803
    %915 = vmatpush1.msra.mxu0 %v802
    %916 = vmatprep.subr.mxu0 %v807
    %917 = vmatpush1.msra.mxu0 %v806
    %918 = vmatprep.subr.mxu0 %v811
    %919 = vmatpush1.msra.mxu0 %v810
    %920 = vmatprep.subr.mxu0 %v815
    %921 = vmatpush1.msra.mxu0 %v814
    %922 = vmatprep.subr.mxu0 0.0
    %923 = vmatpush1.msra.mxu0 0.0
    %924 = vmatprep.subr.mxu0 0.0
    %925 = vmatpush1.msra.mxu0 0.0
    %926 = vmatprep.subr.mxu0 0.0
    %927 = vmatpush1.msra.mxu0 0.0
    %928 = vmatprep.subr.mxu0 0.0
    %929 = vmatpush1.msra.mxu0 0.0
    %930 = vmatprep.subr.mxu0 0.0
    %931 = vmatpush1.msra.mxu0 0.0
    %932 = vmatprep.subr.mxu0 0.0
    %933 = vmatpush1.msra.mxu0 0.0
    %934 = vmatprep.subr.mxu0 0.0
    %935 = vmatpush1.msra.mxu0 0.0
    %936 = vmatprep.subr.mxu0 0.0
    %937 = vmatpush1.msra.mxu0 0.0
    %938 = vmatprep.subr.mxu0 0.0
    %939 = vmatpush1.msra.mxu0 0.0
    %940 = vmatprep.subr.mxu0 0.0
    %941 = vmatpush1.msra.mxu0 0.0
    %942 = vmatprep.subr.mxu0 0.0
    %943 = vmatpush1.msra.mxu0 0.0
    %944 = vmatprep.subr.mxu0 0.0
    %945 = vmatpush1.msra.mxu0 0.0
    %946 = vmatprep.subr.mxu0 0.0
    %947 = vmatpush1.msra.mxu0 0.0
    %948 = vmatprep.subr.mxu0 0.0
    %949 = vmatpush1.msra.mxu0 0.0
    %950 = vmatprep.subr.mxu0 0.0
    %951 = vmatpush1.msra.mxu0 0.0
    %952 = vmatprep.subr.mxu0 0.0
    %953 = vmatpush1.msra.mxu0 0.0
    %954 = vmatprep.mubr.f32.mxu0 0.0
    %955 = vmatmul.mubr.f32.gmra.mrb[0].mxu0 %v817
    %v956 = vpop.f32.mrb[0].mxu0
    %v957 = vadd.f32 0.0, %v956
    %v958 = vpop.f32.mrb[0].mxu0
    %v959 = vadd.f32 0.0, %v958
    %960 = vdwg.mxu0
    %v965 = vrot.slane %v886, 4
    %v966 = vrot.slane %v888, 4
    %v967 = vrot.slane %v957, 4
    %v968 = vrot.slane %v959, 4
    %v973 = vadd.f32 %v748, %v965
    %v974 = vadd.f32 %v749, %v966
    %v975 = vadd.f32 %v750, %v967
    %v976 = vadd.f32 %v751, %v968
    %v977 = vmul.f32 %v973, 0.5
    %v978 = vtanh.pop %v977
    %v979 = vmul.f32 %v978, 0.5
    %v980 = vadd.f32 %v979, 0.5
    %v981 = vmul.f32 %v974, 0.5
    %v982 = vtanh.pop %v981
    %v983 = vmul.f32 %v982, 0.5
    %v984 = vadd.f32 %v983, 0.5
    %v985 = vtanh.pop %v975
    %v986 = vmul.f32 %v976, 0.5
    %v987 = vtanh.pop %v986
    %v988 = vmul.f32 %v987, 0.5
    %v989 = vadd.f32 %v988, 0.5
    %v991 = vrot.slane %v741, 6
    %v993 = vmul.f32 %v984, %v991
    %v994 = vmul.f32 %v980, %v985
    %v995 = vadd.f32 %v993, %v994
    %v996 = vtanh.pop %v995
    %v997 = vmul.f32 %v989, %v996
    %s998 = scalar_lea.vmem [#allocation9], 4
    %999 = vst [vmem:[%s998 - $0x4] sm:$0x30] %v997
    %s1000 = scalar_lea.vmem [#allocation10], 4
    %1001 = vst [vmem:[%s1000 - $0x4] sm:$0x30] %v995
    %v1002 = vld [vmem:[#allocation2] sm:$0xc0]
    %v1003 = vld [vmem:[#allocation2 + $0x8] sm:$0xc0]
    %v1004 = vld [vmem:[#allocation2 + $0x10] sm:$0xc0]
    %v1005 = vld [vmem:[#allocation2 + $0x18] sm:$0xc0]
    %v1006 = vld [vmem:[#allocation8] sm:$0xff]
    %v1007 = vld [vmem:[#allocation8 + $0x8] sm:$0xff]
    %v1008 = vld [vmem:[#allocation8 + $0x10] sm:$0xff]
    %v1009 = vld [vmem:[#allocation8 + $0x18] sm:$0xff]
    %v1010 = vld [vmem:[#allocation8 + $0x20] sm:$0xff]
    %v1011 = vld [vmem:[#allocation8 + $0x28] sm:$0xff]
    %v1012 = vld [vmem:[#allocation8 + $0x30] sm:$0xff]
    %v1013 = vld [vmem:[#allocation8 + $0x38] sm:$0xff]
    %v1014 = vld [vmem:[#allocation8 + $0x40] sm:$0xff]
    %v1015 = vld [vmem:[#allocation8 + $0x48] sm:$0xff]
    %v1016 = vld [vmem:[#allocation8 + $0x50] sm:$0xff]
    %v1017 = vld [vmem:[#allocation8 + $0x58] sm:$0xff]
    %v1018 = vld [vmem:[#allocation8 + $0x60] sm:$0xff]
    %v1019 = vld [vmem:[#allocation8 + $0x68] sm:$0xff]
    %v1020 = vld [vmem:[#allocation8 + $0x70] sm:$0xff]
    %v1021 = vld [vmem:[#allocation8 + $0x78] sm:$0xff]
    %v1022 = vld [vmem:[#allocation8 + $0x80] sm:$0xff]
    %v1023 = vld [vmem:[#allocation8 + $0x88] sm:$0xff]
    %v1024 = vld [vmem:[#allocation8 + $0x90] sm:$0xff]
    %v1025 = vld [vmem:[#allocation8 + $0x98] sm:$0xff]
    %v1026 = vld [vmem:[#allocation8 + $0xa0] sm:$0xff]
    %v1027 = vld [vmem:[#allocation8 + $0xa8] sm:$0xff]
    %v1028 = vld [vmem:[#allocation8 + $0xb0] sm:$0xff]
    %v1029 = vld [vmem:[#allocation8 + $0xb8] sm:$0xff]
    %v1030 = vld [vmem:[#allocation8 + $0xc0] sm:$0xff]
    %v1031 = vld [vmem:[#allocation8 + $0xc8] sm:$0xff]
    %v1032 = vld [vmem:[#allocation8 + $0xd0] sm:$0xff]
    %v1033 = vld [vmem:[#allocation8 + $0xd8] sm:$0xff]
    %v1034 = vld [vmem:[#allocation8 + $0xe0] sm:$0xff]
    %v1035 = vld [vmem:[#allocation8 + $0xe8] sm:$0xff]
    %v1036 = vld [vmem:[#allocation8 + $0xf0] sm:$0xff]
    %v1037 = vld [vmem:[#allocation8 + $0xf8] sm:$0xff]
    %v1038 = vld [vmem:[#allocation8 + $0x100] sm:$0xff]
    %v1039 = vld [vmem:[#allocation8 + $0x108] sm:$0xff]
    %v1040 = vld [vmem:[#allocation8 + $0x110] sm:$0xff]
    %v1041 = vld [vmem:[#allocation8 + $0x118] sm:$0xff]
    %v1042 = vld [vmem:[#allocation8 + $0x120] sm:$0xff]
    %v1043 = vld [vmem:[#allocation8 + $0x128] sm:$0xff]
    %v1044 = vld [vmem:[#allocation8 + $0x130] sm:$0xff]
    %v1045 = vld [vmem:[#allocation8 + $0x138] sm:$0xff]
    %v1046 = vld [vmem:[#allocation8 + $0x140] sm:$0xff]
    %v1047 = vld [vmem:[#allocation8 + $0x148] sm:$0xff]
    %v1048 = vld [vmem:[#allocation8 + $0x150] sm:$0xff]
    %v1049 = vld [vmem:[#allocation8 + $0x158] sm:$0xff]
    %v1050 = vld [vmem:[#allocation8 + $0x160] sm:$0xff]
    %v1051 = vld [vmem:[#allocation8 + $0x168] sm:$0xff]
    %v1052 = vld [vmem:[#allocation8 + $0x170] sm:$0xff]
    %v1053 = vld [vmem:[#allocation8 + $0x178] sm:$0xff]
    %v1054 = vld [vmem:[#allocation8 + $0x180] sm:$0xff]
    %v1055 = vld [vmem:[#allocation8 + $0x188] sm:$0xff]
    %v1056 = vld [vmem:[#allocation8 + $0x190] sm:$0xff]
    %v1057 = vld [vmem:[#allocation8 + $0x198] sm:$0xff]
    %v1058 = vld [vmem:[#allocation8 + $0x1a0] sm:$0xff]
    %v1059 = vld [vmem:[#allocation8 + $0x1a8] sm:$0xff]
    %v1060 = vld [vmem:[#allocation8 + $0x1b0] sm:$0xff]
    %v1061 = vld [vmem:[#allocation8 + $0x1b8] sm:$0xff]
    %v1062 = vld [vmem:[#allocation8 + $0x1c0] sm:$0xff]
    %v1063 = vld [vmem:[#allocation8 + $0x1c8] sm:$0xff]
    %v1064 = vld [vmem:[#allocation8 + $0x1d0] sm:$0xff]
    %v1065 = vld [vmem:[#allocation8 + $0x1d8] sm:$0xff]
    %v1066 = vld [vmem:[#allocation8 + $0x1e0] sm:$0xff]
    %v1067 = vld [vmem:[#allocation8 + $0x1e8] sm:$0xff]
    %v1068 = vld [vmem:[#allocation8 + $0x1f0] sm:$0xff]
    %v1069 = vld [vmem:[#allocation8 + $0x1f8] sm:$0xff]
    %v1071 = vrot.slane %v997, 4
    %1073 = vmatprep.subr.mxu0 %v1007
    %1074 = vmatpush1.msra.mxu0 %v1006
    %1075 = vmatprep.subr.mxu0 %v1011
    %1076 = vmatpush1.msra.mxu0 %v1010
    %1077 = vmatprep.subr.mxu0 %v1015
    %1078 = vmatpush1.msra.mxu0 %v1014
    %1079 = vmatprep.subr.mxu0 %v1019
    %1080 = vmatpush1.msra.mxu0 %v1018
    %1081 = vmatprep.subr.mxu0 %v1023
    %1082 = vmatpush1.msra.mxu0 %v1022
    %1083 = vmatprep.subr.mxu0 %v1027
    %1084 = vmatpush1.msra.mxu0 %v1026
    %1085 = vmatprep.subr.mxu0 %v1031
    %1086 = vmatpush1.msra.mxu0 %v1030
    %1087 = vmatprep.subr.mxu0 %v1035
    %1088 = vmatpush1.msra.mxu0 %v1034
    %1089 = vmatprep.subr.mxu0 %v1039
    %1090 = vmatpush1.msra.mxu0 %v1038
    %1091 = vmatprep.subr.mxu0 %v1043
    %1092 = vmatpush1.msra.mxu0 %v1042
    %1093 = vmatprep.subr.mxu0 %v1047
    %1094 = vmatpush1.msra.mxu0 %v1046
    %1095 = vmatprep.subr.mxu0 %v1051
    %1096 = vmatpush1.msra.mxu0 %v1050
    %1097 = vmatprep.subr.mxu0 %v1055
    %1098 = vmatpush1.msra.mxu0 %v1054
    %1099 = vmatprep.subr.mxu0 %v1059
    %1100 = vmatpush1.msra.mxu0 %v1058
    %1101 = vmatprep.subr.mxu0 %v1063
    %1102 = vmatpush1.msra.mxu0 %v1062
    %1103 = vmatprep.subr.mxu0 %v1067
    %1104 = vmatpush1.msra.mxu0 %v1066
    %1105 = vmatprep.subr.mxu0 0.0
    %1106 = vmatpush1.msra.mxu0 0.0
    %1107 = vmatprep.subr.mxu0 0.0
    %1108 = vmatpush1.msra.mxu0 0.0
    %1109 = vmatprep.subr.mxu0 0.0
    %1110 = vmatpush1.msra.mxu0 0.0
    %1111 = vmatprep.subr.mxu0 0.0
    %1112 = vmatpush1.msra.mxu0 0.0
    %1113 = vmatprep.subr.mxu0 0.0
    %1114 = vmatpush1.msra.mxu0 0.0
    %1115 = vmatprep.subr.mxu0 0.0
    %1116 = vmatpush1.msra.mxu0 0.0
    %1117 = vmatprep.subr.mxu0 0.0
    %1118 = vmatpush1.msra.mxu0 0.0
    %1119 = vmatprep.subr.mxu0 0.0
    %1120 = vmatpush1.msra.mxu0 0.0
    %1121 = vmatprep.subr.mxu0 0.0
    %1122 = vmatpush1.msra.mxu0 0.0
    %1123 = vmatprep.subr.mxu0 0.0
    %1124 = vmatpush1.msra.mxu0 0.0
    %1125 = vmatprep.subr.mxu0 0.0
    %1126 = vmatpush1.msra.mxu0 0.0
    %1127 = vmatprep.subr.mxu0 0.0
    %1128 = vmatpush1.msra.mxu0 0.0
    %1129 = vmatprep.subr.mxu0 0.0
    %1130 = vmatpush1.msra.mxu0 0.0
    %1131 = vmatprep.subr.mxu0 0.0
    %1132 = vmatpush1.msra.mxu0 0.0
    %1133 = vmatprep.subr.mxu0 0.0
    %1134 = vmatpush1.msra.mxu0 0.0
    %1135 = vmatprep.subr.mxu0 0.0
    %1136 = vmatpush1.msra.mxu0 0.0
    %1137 = vmatprep.mubr.f32.mxu0 0.0
    %1138 = vmatmul.mubr.f32.gmra.mrb[0].mxu0 %v1071
    %v1139 = vpop.f32.mrb[0].mxu0
    %v1140 = vadd.f32 0.0, %v1139
    %v1141 = vpop.f32.mrb[0].mxu0
    %v1142 = vadd.f32 0.0, %v1141
    %1143 = vdwg.mxu0
    %1144 = vmatprep.subr.mxu0 %v1009
    %1145 = vmatpush1.msra.mxu0 %v1008
    %1146 = vmatprep.subr.mxu0 %v1013
    %1147 = vmatpush1.msra.mxu0 %v1012
    %1148 = vmatprep.subr.mxu0 %v1017
    %1149 = vmatpush1.msra.mxu0 %v1016
    %1150 = vmatprep.subr.mxu0 %v1021
    %1151 = vmatpush1.msra.mxu0 %v1020
    %1152 = vmatprep.subr.mxu0 %v1025
    %1153 = vmatpush1.msra.mxu0 %v1024
    %1154 = vmatprep.subr.mxu0 %v1029
    %1155 = vmatpush1.msra.mxu0 %v1028
    %1156 = vmatprep.subr.mxu0 %v1033
    %1157 = vmatpush1.msra.mxu0 %v1032
    %1158 = vmatprep.subr.mxu0 %v1037
    %1159 = vmatpush1.msra.mxu0 %v1036
    %1160 = vmatprep.subr.mxu0 %v1041
    %1161 = vmatpush1.msra.mxu0 %v1040
    %1162 = vmatprep.subr.mxu0 %v1045
    %1163 = vmatpush1.msra.mxu0 %v1044
    %1164 = vmatprep.subr.mxu0 %v1049
    %1165 = vmatpush1.msra.mxu0 %v1048
    %1166 = vmatprep.subr.mxu0 %v1053
    %1167 = vmatpush1.msra.mxu0 %v1052
    %1168 = vmatprep.subr.mxu0 %v1057
    %1169 = vmatpush1.msra.mxu0 %v1056
    %1170 = vmatprep.subr.mxu0 %v1061
    %1171 = vmatpush1.msra.mxu0 %v1060
    %1172 = vmatprep.subr.mxu0 %v1065
    %1173 = vmatpush1.msra.mxu0 %v1064
    %1174 = vmatprep.subr.mxu0 %v1069
    %1175 = vmatpush1.msra.mxu0 %v1068
    %1176 = vmatprep.subr.mxu0 0.0
    %1177 = vmatpush1.msra.mxu0 0.0
    %1178 = vmatprep.subr.mxu0 0.0
    %1179 = vmatpush1.msra.mxu0 0.0
    %1180 = vmatprep.subr.mxu0 0.0
    %1181 = vmatpush1.msra.mxu0 0.0
    %1182 = vmatprep.subr.mxu0 0.0
    %1183 = vmatpush1.msra.mxu0 0.0
    %1184 = vmatprep.subr.mxu0 0.0
    %1185 = vmatpush1.msra.mxu0 0.0
    %1186 = vmatprep.subr.mxu0 0.0
    %1187 = vmatpush1.msra.mxu0 0.0
    %1188 = vmatprep.subr.mxu0 0.0
    %1189 = vmatpush1.msra.mxu0 0.0
    %1190 = vmatprep.subr.mxu0 0.0
    %1191 = vmatpush1.msra.mxu0 0.0
    %1192 = vmatprep.subr.mxu0 0.0
    %1193 = vmatpush1.msra.mxu0 0.0
    %1194 = vmatprep.subr.mxu0 0.0
    %1195 = vmatpush1.msra.mxu0 0.0
    %1196 = vmatprep.subr.mxu0 0.0
    %1197 = vmatpush1.msra.mxu0 0.0
    %1198 = vmatprep.subr.mxu0 0.0
    %1199 = vmatpush1.msra.mxu0 0.0
    %1200 = vmatprep.subr.mxu0 0.0
    %1201 = vmatpush1.msra.mxu0 0.0
    %1202 = vmatprep.subr.mxu0 0.0
    %1203 = vmatpush1.msra.mxu0 0.0
    %1204 = vmatprep.subr.mxu0 0.0
    %1205 = vmatpush1.msra.mxu0 0.0
    %1206 = vmatprep.subr.mxu0 0.0
    %1207 = vmatpush1.msra.mxu0 0.0
    %1208 = vmatprep.mubr.f32.mxu0 0.0
    %1209 = vmatmul.mubr.f32.gmra.mrb[0].mxu0 %v1071
    %v1210 = vpop.f32.mrb[0].mxu0
    %v1211 = vadd.f32 0.0, %v1210
    %v1212 = vpop.f32.mrb[0].mxu0
    %v1213 = vadd.f32 0.0, %v1212
    %1214 = vdwg.mxu0
    %v1219 = vrot.slane %v1140, 2
    %v1220 = vrot.slane %v1142, 2
    %v1221 = vrot.slane %v1211, 2
    %v1222 = vrot.slane %v1213, 2
    %v1227 = vadd.f32 %v1002, %v1219
    %v1228 = vadd.f32 %v1003, %v1220
    %v1229 = vadd.f32 %v1004, %v1221
    %v1230 = vadd.f32 %v1005, %v1222
    %v1231 = vmul.f32 %v1227, 0.5
    %v1232 = vtanh.pop %v1231
    %v1233 = vmul.f32 %v1232, 0.5
    %v1234 = vadd.f32 %v1233, 0.5
    %v1235 = vmul.f32 %v1228, 0.5
    %v1236 = vtanh.pop %v1235
    %v1237 = vmul.f32 %v1236, 0.5
    %v1238 = vadd.f32 %v1237, 0.5
    %v1239 = vtanh.pop %v1229
    %v1240 = vmul.f32 %v1230, 0.5
    %v1241 = vtanh.pop %v1240
    %v1242 = vmul.f32 %v1241, 0.5
    %v1243 = vadd.f32 %v1242, 0.5
    %v1245 = vrot.slane %v995, 6
    %v1247 = vmul.f32 %v1238, %v1245
    %v1248 = vmul.f32 %v1234, %v1239
    %v1249 = vadd.f32 %v1247, %v1248
    %v1250 = vtanh.pop %v1249
    %v1251 = vmul.f32 %v1243, %v1250
    %s1252 = scalar_lea.vmem [#allocation9], 6
    %1253 = vst [vmem:[%s1252 - $0x6] sm:$0xc0] %v1251
    %s1254 = scalar_lea.vmem [#allocation10], 6
    %1255 = vst [vmem:[%s1254 - $0x6] sm:$0xc0] %v1249
    %v1256 = vld [vmem:[#allocation2 + $0x20] sm:$0x3]
    %v1257 = vld [vmem:[#allocation2 + $0x28] sm:$0x3]
    %v1258 = vld [vmem:[#allocation2 + $0x30] sm:$0x3]
    %v1259 = vld [vmem:[#allocation2 + $0x38] sm:$0x3]
    %v1260 = vld [vmem:[#allocation8] sm:$0xff]
    %v1261 = vld [vmem:[#allocation8 + $0x8] sm:$0xff]
    %v1262 = vld [vmem:[#allocation8 + $0x10] sm:$0xff]
    %v1263 = vld [vmem:[#allocation8 + $0x18] sm:$0xff]
    %v1264 = vld [vmem:[#allocation8 + $0x20] sm:$0xff]
    %v1265 = vld [vmem:[#allocation8 + $0x28] sm:$0xff]
    %v1266 = vld [vmem:[#allocation8 + $0x30] sm:$0xff]
    %v1267 = vld [vmem:[#allocation8 + $0x38] sm:$0xff]
    %v1268 = vld [vmem:[#allocation8 + $0x40] sm:$0xff]
    %v1269 = vld [vmem:[#allocation8 + $0x48] sm:$0xff]
    %v1270 = vld [vmem:[#allocation8 + $0x50] sm:$0xff]
    %v1271 = vld [vmem:[#allocation8 + $0x58] sm:$0xff]
    %v1272 = vld [vmem:[#allocation8 + $0x60] sm:$0xff]
    %v1273 = vld [vmem:[#allocation8 + $0x68] sm:$0xff]
    %v1274 = vld [vmem:[#allocation8 + $0x70] sm:$0xff]
    %v1275 = vld [vmem:[#allocation8 + $0x78] sm:$0xff]
    %v1276 = vld [vmem:[#allocation8 + $0x80] sm:$0xff]
    %v1277 = vld [vmem:[#allocation8 + $0x88] sm:$0xff]
    %v1278 = vld [vmem:[#allocation8 + $0x90] sm:$0xff]
    %v1279 = vld [vmem:[#allocation8 + $0x98] sm:$0xff]
    %v1280 = vld [vmem:[#allocation8 + $0xa0] sm:$0xff]
    %v1281 = vld [vmem:[#allocation8 + $0xa8] sm:$0xff]
    %v1282 = vld [vmem:[#allocation8 + $0xb0] sm:$0xff]
    %v1283 = vld [vmem:[#allocation8 + $0xb8] sm:$0xff]
    %v1284 = vld [vmem:[#allocation8 + $0xc0] sm:$0xff]
    %v1285 = vld [vmem:[#allocation8 + $0xc8] sm:$0xff]
    %v1286 = vld [vmem:[#allocation8 + $0xd0] sm:$0xff]
    %v1287 = vld [vmem:[#allocation8 + $0xd8] sm:$0xff]
    %v1288 = vld [vmem:[#allocation8 + $0xe0] sm:$0xff]
    %v1289 = vld [vmem:[#allocation8 + $0xe8] sm:$0xff]
    %v1290 = vld [vmem:[#allocation8 + $0xf0] sm:$0xff]
    %v1291 = vld [vmem:[#allocation8 + $0xf8] sm:$0xff]
    %v1292 = vld [vmem:[#allocation8 + $0x100] sm:$0xff]
    %v1293 = vld [vmem:[#allocation8 + $0x108] sm:$0xff]
    %v1294 = vld [vmem:[#allocation8 + $0x110] sm:$0xff]
    %v1295 = vld [vmem:[#allocation8 + $0x118] sm:$0xff]
    %v1296 = vld [vmem:[#allocation8 + $0x120] sm:$0xff]
    %v1297 = vld [vmem:[#allocation8 + $0x128] sm:$0xff]
    %v1298 = vld [vmem:[#allocation8 + $0x130] sm:$0xff]
    %v1299 = vld [vmem:[#allocation8 + $0x138] sm:$0xff]
    %v1300 = vld [vmem:[#allocation8 + $0x140] sm:$0xff]
    %v1301 = vld [vmem:[#allocation8 + $0x148] sm:$0xff]
    %v1302 = vld [vmem:[#allocation8 + $0x150] sm:$0xff]
    %v1303 = vld [vmem:[#allocation8 + $0x158] sm:$0xff]
    %v1304 = vld [vmem:[#allocation8 + $0x160] sm:$0xff]
    %v1305 = vld [vmem:[#allocation8 + $0x168] sm:$0xff]
    %v1306 = vld [vmem:[#allocation8 + $0x170] sm:$0xff]
    %v1307 = vld [vmem:[#allocation8 + $0x178] sm:$0xff]
    %v1308 = vld [vmem:[#allocation8 + $0x180] sm:$0xff]
    %v1309 = vld [vmem:[#allocation8 + $0x188] sm:$0xff]
    %v1310 = vld [vmem:[#allocation8 + $0x190] sm:$0xff]
    %v1311 = vld [vmem:[#allocation8 + $0x198] sm:$0xff]
    %v1312 = vld [vmem:[#allocation8 + $0x1a0] sm:$0xff]
    %v1313 = vld [vmem:[#allocation8 + $0x1a8] sm:$0xff]
    %v1314 = vld [vmem:[#allocation8 + $0x1b0] sm:$0xff]
    %v1315 = vld [vmem:[#allocation8 + $0x1b8] sm:$0xff]
    %v1316 = vld [vmem:[#allocation8 + $0x1c0] sm:$0xff]
    %v1317 = vld [vmem:[#allocation8 + $0x1c8] sm:$0xff]
    %v1318 = vld [vmem:[#allocation8 + $0x1d0] sm:$0xff]
    %v1319 = vld [vmem:[#allocation8 + $0x1d8] sm:$0xff]
    %v1320 = vld [vmem:[#allocation8 + $0x1e0] sm:$0xff]
    %v1321 = vld [vmem:[#allocation8 + $0x1e8] sm:$0xff]
    %v1322 = vld [vmem:[#allocation8 + $0x1f0] sm:$0xff]
    %v1323 = vld [vmem:[#allocation8 + $0x1f8] sm:$0xff]
    %v1325 = vrot.slane %v1251, 6
    %1327 = vmatprep.subr.mxu0 %v1261
    %1328 = vmatpush1.msra.mxu0 %v1260
    %1329 = vmatprep.subr.mxu0 %v1265
    %1330 = vmatpush1.msra.mxu0 %v1264
    %1331 = vmatprep.subr.mxu0 %v1269
    %1332 = vmatpush1.msra.mxu0 %v1268
    %1333 = vmatprep.subr.mxu0 %v1273
    %1334 = vmatpush1.msra.mxu0 %v1272
    %1335 = vmatprep.subr.mxu0 %v1277
    %1336 = vmatpush1.msra.mxu0 %v1276
    %1337 = vmatprep.subr.mxu0 %v1281
    %1338 = vmatpush1.msra.mxu0 %v1280
    %1339 = vmatprep.subr.mxu0 %v1285
    %1340 = vmatpush1.msra.mxu0 %v1284
    %1341 = vmatprep.subr.mxu0 %v1289
    %1342 = vmatpush1.msra.mxu0 %v1288
    %1343 = vmatprep.subr.mxu0 %v1293
    %1344 = vmatpush1.msra.mxu0 %v1292
    %1345 = vmatprep.subr.mxu0 %v1297
    %1346 = vmatpush1.msra.mxu0 %v1296
    %1347 = vmatprep.subr.mxu0 %v1301
    %1348 = vmatpush1.msra.mxu0 %v1300
    %1349 = vmatprep.subr.mxu0 %v1305
    %1350 = vmatpush1.msra.mxu0 %v1304
    %1351 = vmatprep.subr.mxu0 %v1309
    %1352 = vmatpush1.msra.mxu0 %v1308
    %1353 = vmatprep.subr.mxu0 %v1313
    %1354 = vmatpush1.msra.mxu0 %v1312
    %1355 = vmatprep.subr.mxu0 %v1317
    %1356 = vmatpush1.msra.mxu0 %v1316
    %1357 = vmatprep.subr.mxu0 %v1321
    %1358 = vmatpush1.msra.mxu0 %v1320
    %1359 = vmatprep.subr.mxu0 0.0
    %1360 = vmatpush1.msra.mxu0 0.0
    %1361 = vmatprep.subr.mxu0 0.0
    %1362 = vmatpush1.msra.mxu0 0.0
    %1363 = vmatprep.subr.mxu0 0.0
    %1364 = vmatpush1.msra.mxu0 0.0
    %1365 = vmatprep.subr.mxu0 0.0
    %1366 = vmatpush1.msra.mxu0 0.0
    %1367 = vmatprep.subr.mxu0 0.0
    %1368 = vmatpush1.msra.mxu0 0.0
    %1369 = vmatprep.subr.mxu0 0.0
    %1370 = vmatpush1.msra.mxu0 0.0
    %1371 = vmatprep.subr.mxu0 0.0
    %1372 = vmatpush1.msra.mxu0 0.0
    %1373 = vmatprep.subr.mxu0 0.0
    %1374 = vmatpush1.msra.mxu0 0.0
    %1375 = vmatprep.subr.mxu0 0.0
    %1376 = vmatpush1.msra.mxu0 0.0
    %1377 = vmatprep.subr.mxu0 0.0
    %1378 = vmatpush1.msra.mxu0 0.0
    %1379 = vmatprep.subr.mxu0 0.0
    %1380 = vmatpush1.msra.mxu0 0.0
    %1381 = vmatprep.subr.mxu0 0.0
    %1382 = vmatpush1.msra.mxu0 0.0
    %1383 = vmatprep.subr.mxu0 0.0
    %1384 = vmatpush1.msra.mxu0 0.0
    %1385 = vmatprep.subr.mxu0 0.0
    %1386 = vmatpush1.msra.mxu0 0.0
    %1387 = vmatprep.subr.mxu0 0.0
    %1388 = vmatpush1.msra.mxu0 0.0
    %1389 = vmatprep.subr.mxu0 0.0
    %1390 = vmatpush1.msra.mxu0 0.0
    %1391 = vmatprep.mubr.f32.mxu0 0.0
    %1392 = vmatmul.mubr.f32.gmra.mrb[0].mxu0 %v1325
    %v1393 = vpop.f32.mrb[0].mxu0
    %v1394 = vadd.f32 0.0, %v1393
    %v1395 = vpop.f32.mrb[0].mxu0
    %v1396 = vadd.f32 0.0, %v1395
    %1397 = vdwg.mxu0
    %1398 = vmatprep.subr.mxu0 %v1263
    %1399 = vmatpush1.msra.mxu0 %v1262
    %1400 = vmatprep.subr.mxu0 %v1267
    %1401 = vmatpush1.msra.mxu0 %v1266
    %1402 = vmatprep.subr.mxu0 %v1271
    %1403 = vmatpush1.msra.mxu0 %v1270
    %1404 = vmatprep.subr.mxu0 %v1275
    %1405 = vmatpush1.msra.mxu0 %v1274
    %1406 = vmatprep.subr.mxu0 %v1279
    %1407 = vmatpush1.msra.mxu0 %v1278
    %1408 = vmatprep.subr.mxu0 %v1283
    %1409 = vmatpush1.msra.mxu0 %v1282
    %1410 = vmatprep.subr.mxu0 %v1287
    %1411 = vmatpush1.msra.mxu0 %v1286
    %1412 = vmatprep.subr.mxu0 %v1291
    %1413 = vmatpush1.msra.mxu0 %v1290
    %1414 = vmatprep.subr.mxu0 %v1295
    %1415 = vmatpush1.msra.mxu0 %v1294
    %1416 = vmatprep.subr.mxu0 %v1299
    %1417 = vmatpush1.msra.mxu0 %v1298
    %1418 = vmatprep.subr.mxu0 %v1303
    %1419 = vmatpush1.msra.mxu0 %v1302
    %1420 = vmatprep.subr.mxu0 %v1307
    %1421 = vmatpush1.msra.mxu0 %v1306
    %1422 = vmatprep.subr.mxu0 %v1311
    %1423 = vmatpush1.msra.mxu0 %v1310
    %1424 = vmatprep.subr.mxu0 %v1315
    %1425 = vmatpush1.msra.mxu0 %v1314
    %1426 = vmatprep.subr.mxu0 %v1319
    %1427 = vmatpush1.msra.mxu0 %v1318
    %1428 = vmatprep.subr.mxu0 %v1323
    %1429 = vmatpush1.msra.mxu0 %v1322
    %1430 = vmatprep.subr.mxu0 0.0
    %1431 = vmatpush1.msra.mxu0 0.0
    %1432 = vmatprep.subr.mxu0 0.0
    %1433 = vmatpush1.msra.mxu0 0.0
    %1434 = vmatprep.subr.mxu0 0.0
    %1435 = vmatpush1.msra.mxu0 0.0
    %1436 = vmatprep.subr.mxu0 0.0
    %1437 = vmatpush1.msra.mxu0 0.0
    %1438 = vmatprep.subr.mxu0 0.0
    %1439 = vmatpush1.msra.mxu0 0.0
    %1440 = vmatprep.subr.mxu0 0.0
    %1441 = vmatpush1.msra.mxu0 0.0
    %1442 = vmatprep.subr.mxu0 0.0
    %1443 = vmatpush1.msra.mxu0 0.0
    %1444 = vmatprep.subr.mxu0 0.0
    %1445 = vmatpush1.msra.mxu0 0.0
    %1446 = vmatprep.subr.mxu0 0.0
    %1447 = vmatpush1.msra.mxu0 0.0
    %1448 = vmatprep.subr.mxu0 0.0
    %1449 = vmatpush1.msra.mxu0 0.0
    %1450 = vmatprep.subr.mxu0 0.0
    %1451 = vmatpush1.msra.mxu0 0.0
    %1452 = vmatprep.subr.mxu0 0.0
    %1453 = vmatpush1.msra.mxu0 0.0
    %1454 = vmatprep.subr.mxu0 0.0
    %1455 = vmatpush1.msra.mxu0 0.0
    %1456 = vmatprep.subr.mxu0 0.0
    %1457 = vmatpush1.msra.mxu0 0.0
    %1458 = vmatprep.subr.mxu0 0.0
    %1459 = vmatpush1.msra.mxu0 0.0
    %1460 = vmatprep.subr.mxu0 0.0
    %1461 = vmatpush1.msra.mxu0 0.0
    %1462 = vmatprep.mubr.f32.mxu0 0.0
    %1463 = vmatmul.mubr.f32.gmra.mrb[0].mxu0 %v1325
    %v1464 = vpop.f32.mrb[0].mxu0
    %v1465 = vadd.f32 0.0, %v1464
    %v1466 = vpop.f32.mrb[0].mxu0
    %v1467 = vadd.f32 0.0, %v1466
    %1468 = vdwg.mxu0
    %v1469 = vadd.f32 %v1256, %v1394
    %v1470 = vadd.f32 %v1257, %v1396
    %v1471 = vadd.f32 %v1258, %v1465
    %v1472 = vadd.f32 %v1259, %v1467
    %v1473 = vmul.f32 %v1469, 0.5
    %v1474 = vtanh.pop %v1473
    %v1475 = vmul.f32 %v1474, 0.5
    %v1476 = vadd.f32 %v1475, 0.5
    %v1477 = vmul.f32 %v1470, 0.5
    %v1478 = vtanh.pop %v1477
    %v1479 = vmul.f32 %v1478, 0.5
    %v1480 = vadd.f32 %v1479, 0.5
    %v1481 = vtanh.pop %v1471
    %v1482 = vmul.f32 %v1472, 0.5
    %v1483 = vtanh.pop %v1482
    %v1484 = vmul.f32 %v1483, 0.5
    %v1485 = vadd.f32 %v1484, 0.5
    %v1487 = vrot.slane %v1249, 6
    %v1489 = vmul.f32 %v1480, %v1487
    %v1490 = vmul.f32 %v1476, %v1481
    %v1491 = vadd.f32 %v1489, %v1490
    %v1492 = vtanh.pop %v1491
    %v1493 = vmul.f32 %v1485, %v1492
    %s1494 = scalar_lea.vmem [#allocation9], 8
    %1495 = vst [vmem:[%s1494] sm:$0x3] %v1493
    %s1496 = scalar_lea.vmem [#allocation10], 8
    %1497 = vst [vmem:[%s1496] sm:$0x3] %v1491
    %v1498 = vld [vmem:[#allocation2 + $0x20] sm:$0xc]
    %v1499 = vld [vmem:[#allocation2 + $0x28] sm:$0xc]
    %v1500 = vld [vmem:[#allocation2 + $0x30] sm:$0xc]
    %v1501 = vld [vmem:[#allocation2 + $0x38] sm:$0xc]
    %v1502 = vld [vmem:[#allocation8] sm:$0xff]
    %v1503 = vld [vmem:[#allocation8 + $0x8] sm:$0xff]
    %v1504 = vld [vmem:[#allocation8 + $0x10] sm:$0xff]
    %v1505 = vld [vmem:[#allocation8 + $0x18] sm:$0xff]
    %v1506 = vld [vmem:[#allocation8 + $0x20] sm:$0xff]
    %v1507 = vld [vmem:[#allocation8 + $0x28] sm:$0xff]
    %v1508 = vld [vmem:[#allocation8 + $0x30] sm:$0xff]
    %v1509 = vld [vmem:[#allocation8 + $0x38] sm:$0xff]
    %v1510 = vld [vmem:[#allocation8 + $0x40] sm:$0xff]
    %v1511 = vld [vmem:[#allocation8 + $0x48] sm:$0xff]
    %v1512 = vld [vmem:[#allocation8 + $0x50] sm:$0xff]
    %v1513 = vld [vmem:[#allocation8 + $0x58] sm:$0xff]
    %v1514 = vld [vmem:[#allocation8 + $0x60] sm:$0xff]
    %v1515 = vld [vmem:[#allocation8 + $0x68] sm:$0xff]
    %v1516 = vld [vmem:[#allocation8 + $0x70] sm:$0xff]
    %v1517 = vld [vmem:[#allocation8 + $0x78] sm:$0xff]
    %v1518 = vld [vmem:[#allocation8 + $0x80] sm:$0xff]
    %v1519 = vld [vmem:[#allocation8 + $0x88] sm:$0xff]
    %v1520 = vld [vmem:[#allocation8 + $0x90] sm:$0xff]
    %v1521 = vld [vmem:[#allocation8 + $0x98] sm:$0xff]
    %v1522 = vld [vmem:[#allocation8 + $0xa0] sm:$0xff]
    %v1523 = vld [vmem:[#allocation8 + $0xa8] sm:$0xff]
    %v1524 = vld [vmem:[#allocation8 + $0xb0] sm:$0xff]
    %v1525 = vld [vmem:[#allocation8 + $0xb8] sm:$0xff]
    %v1526 = vld [vmem:[#allocation8 + $0xc0] sm:$0xff]
    %v1527 = vld [vmem:[#allocation8 + $0xc8] sm:$0xff]
    %v1528 = vld [vmem:[#allocation8 + $0xd0] sm:$0xff]
    %v1529 = vld [vmem:[#allocation8 + $0xd8] sm:$0xff]
    %v1530 = vld [vmem:[#allocation8 + $0xe0] sm:$0xff]
    %v1531 = vld [vmem:[#allocation8 + $0xe8] sm:$0xff]
    %v1532 = vld [vmem:[#allocation8 + $0xf0] sm:$0xff]
    %v1533 = vld [vmem:[#allocation8 + $0xf8] sm:$0xff]
    %v1534 = vld [vmem:[#allocation8 + $0x100] sm:$0xff]
    %v1535 = vld [vmem:[#allocation8 + $0x108] sm:$0xff]
    %v1536 = vld [vmem:[#allocation8 + $0x110] sm:$0xff]
    %v1537 = vld [vmem:[#allocation8 + $0x118] sm:$0xff]
    %v1538 = vld [vmem:[#allocation8 + $0x120] sm:$0xff]
    %v1539 = vld [vmem:[#allocation8 + $0x128] sm:$0xff]
    %v1540 = vld [vmem:[#allocation8 + $0x130] sm:$0xff]
    %v1541 = vld [vmem:[#allocation8 + $0x138] sm:$0xff]
    %v1542 = vld [vmem:[#allocation8 + $0x140] sm:$0xff]
    %v1543 = vld [vmem:[#allocation8 + $0x148] sm:$0xff]
    %v1544 = vld [vmem:[#allocation8 + $0x150] sm:$0xff]
    %v1545 = vld [vmem:[#allocation8 + $0x158] sm:$0xff]
    %v1546 = vld [vmem:[#allocation8 + $0x160] sm:$0xff]
    %v1547 = vld [vmem:[#allocation8 + $0x168] sm:$0xff]
    %v1548 = vld [vmem:[#allocation8 + $0x170] sm:$0xff]
    %v1549 = vld [vmem:[#allocation8 + $0x178] sm:$0xff]
    %v1550 = vld [vmem:[#allocation8 + $0x180] sm:$0xff]
    %v1551 = vld [vmem:[#allocation8 + $0x188] sm:$0xff]
    %v1552 = vld [vmem:[#allocation8 + $0x190] sm:$0xff]
    %v1553 = vld [vmem:[#allocation8 + $0x198] sm:$0xff]
    %v1554 = vld [vmem:[#allocation8 + $0x1a0] sm:$0xff]
    %v1555 = vld [vmem:[#allocation8 + $0x1a8] sm:$0xff]
    %v1556 = vld [vmem:[#allocation8 + $0x1b0] sm:$0xff]
    %v1557 = vld [vmem:[#allocation8 + $0x1b8] sm:$0xff]
    %v1558 = vld [vmem:[#allocation8 + $0x1c0] sm:$0xff]
    %v1559 = vld [vmem:[#allocation8 + $0x1c8] sm:$0xff]
    %v1560 = vld [vmem:[#allocation8 + $0x1d0] sm:$0xff]
    %v1561 = vld [vmem:[#allocation8 + $0x1d8] sm:$0xff]
    %v1562 = vld [vmem:[#allocation8 + $0x1e0] sm:$0xff]
    %v1563 = vld [vmem:[#allocation8 + $0x1e8] sm:$0xff]
    %v1564 = vld [vmem:[#allocation8 + $0x1f0] sm:$0xff]
    %v1565 = vld [vmem:[#allocation8 + $0x1f8] sm:$0xff]
    %1566 = vmatprep.subr.mxu0 %v1503
    %1567 = vmatpush1.msra.mxu0 %v1502
    %1568 = vmatprep.subr.mxu0 %v1507
    %1569 = vmatpush1.msra.mxu0 %v1506
    %1570 = vmatprep.subr.mxu0 %v1511
    %1571 = vmatpush1.msra.mxu0 %v1510
    %1572 = vmatprep.subr.mxu0 %v1515
    %1573 = vmatpush1.msra.mxu0 %v1514
    %1574 = vmatprep.subr.mxu0 %v1519
    %1575 = vmatpush1.msra.mxu0 %v1518
    %1576 = vmatprep.subr.mxu0 %v1523
    %1577 = vmatpush1.msra.mxu0 %v1522
    %1578 = vmatprep.subr.mxu0 %v1527
    %1579 = vmatpush1.msra.mxu0 %v1526
    %1580 = vmatprep.subr.mxu0 %v1531
    %1581 = vmatpush1.msra.mxu0 %v1530
    %1582 = vmatprep.subr.mxu0 %v1535
    %1583 = vmatpush1.msra.mxu0 %v1534
    %1584 = vmatprep.subr.mxu0 %v1539
    %1585 = vmatpush1.msra.mxu0 %v1538
    %1586 = vmatprep.subr.mxu0 %v1543
    %1587 = vmatpush1.msra.mxu0 %v1542
    %1588 = vmatprep.subr.mxu0 %v1547
    %1589 = vmatpush1.msra.mxu0 %v1546
    %1590 = vmatprep.subr.mxu0 %v1551
    %1591 = vmatpush1.msra.mxu0 %v1550
    %1592 = vmatprep.subr.mxu0 %v1555
    %1593 = vmatpush1.msra.mxu0 %v1554
    %1594 = vmatprep.subr.mxu0 %v1559
    %1595 = vmatpush1.msra.mxu0 %v1558
    %1596 = vmatprep.subr.mxu0 %v1563
    %1597 = vmatpush1.msra.mxu0 %v1562
    %1598 = vmatprep.subr.mxu0 0.0
    %1599 = vmatpush1.msra.mxu0 0.0
    %1600 = vmatprep.subr.mxu0 0.0
    %1601 = vmatpush1.msra.mxu0 0.0
    %1602 = vmatprep.subr.mxu0 0.0
    %1603 = vmatpush1.msra.mxu0 0.0
    %1604 = vmatprep.subr.mxu0 0.0
    %1605 = vmatpush1.msra.mxu0 0.0
    %1606 = vmatprep.subr.mxu0 0.0
    %1607 = vmatpush1.msra.mxu0 0.0
    %1608 = vmatprep.subr.mxu0 0.0
    %1609 = vmatpush1.msra.mxu0 0.0
    %1610 = vmatprep.subr.mxu0 0.0
    %1611 = vmatpush1.msra.mxu0 0.0
    %1612 = vmatprep.subr.mxu0 0.0
    %1613 = vmatpush1.msra.mxu0 0.0
    %1614 = vmatprep.subr.mxu0 0.0
    %1615 = vmatpush1.msra.mxu0 0.0
    %1616 = vmatprep.subr.mxu0 0.0
    %1617 = vmatpush1.msra.mxu0 0.0
    %1618 = vmatprep.subr.mxu0 0.0
    %1619 = vmatpush1.msra.mxu0 0.0
    %1620 = vmatprep.subr.mxu0 0.0
    %1621 = vmatpush1.msra.mxu0 0.0
    %1622 = vmatprep.subr.mxu0 0.0
    %1623 = vmatpush1.msra.mxu0 0.0
    %1624 = vmatprep.subr.mxu0 0.0
    %1625 = vmatpush1.msra.mxu0 0.0
    %1626 = vmatprep.subr.mxu0 0.0
    %1627 = vmatpush1.msra.mxu0 0.0
    %1628 = vmatprep.subr.mxu0 0.0
    %1629 = vmatpush1.msra.mxu0 0.0
    %1630 = vmatprep.mubr.f32.mxu0 0.0
    %1631 = vmatmul.mubr.f32.gmra.mrb[0].mxu0 %v1493
    %v1632 = vpop.f32.mrb[0].mxu0
    %v1633 = vadd.f32 0.0, %v1632
    %v1634 = vpop.f32.mrb[0].mxu0
    %v1635 = vadd.f32 0.0, %v1634
    %1636 = vdwg.mxu0
    %1637 = vmatprep.subr.mxu0 %v1505
    %1638 = vmatpush1.msra.mxu0 %v1504
    %1639 = vmatprep.subr.mxu0 %v1509
    %1640 = vmatpush1.msra.mxu0 %v1508
    %1641 = vmatprep.subr.mxu0 %v1513
    %1642 = vmatpush1.msra.mxu0 %v1512
    %1643 = vmatprep.subr.mxu0 %v1517
    %1644 = vmatpush1.msra.mxu0 %v1516
    %1645 = vmatprep.subr.mxu0 %v1521
    %1646 = vmatpush1.msra.mxu0 %v1520
    %1647 = vmatprep.subr.mxu0 %v1525
    %1648 = vmatpush1.msra.mxu0 %v1524
    %1649 = vmatprep.subr.mxu0 %v1529
    %1650 = vmatpush1.msra.mxu0 %v1528
    %1651 = vmatprep.subr.mxu0 %v1533
    %1652 = vmatpush1.msra.mxu0 %v1532
    %1653 = vmatprep.subr.mxu0 %v1537
    %1654 = vmatpush1.msra.mxu0 %v1536
    %1655 = vmatprep.subr.mxu0 %v1541
    %1656 = vmatpush1.msra.mxu0 %v1540
    %1657 = vmatprep.subr.mxu0 %v1545
    %1658 = vmatpush1.msra.mxu0 %v1544
    %1659 = vmatprep.subr.mxu0 %v1549
    %1660 = vmatpush1.msra.mxu0 %v1548
    %1661 = vmatprep.subr.mxu0 %v1553
    %1662 = vmatpush1.msra.mxu0 %v1552
    %1663 = vmatprep.subr.mxu0 %v1557
    %1664 = vmatpush1.msra.mxu0 %v1556
    %1665 = vmatprep.subr.mxu0 %v1561
    %1666 = vmatpush1.msra.mxu0 %v1560
    %1667 = vmatprep.subr.mxu0 %v1565
    %1668 = vmatpush1.msra.mxu0 %v1564
    %1669 = vmatprep.subr.mxu0 0.0
    %1670 = vmatpush1.msra.mxu0 0.0
    %1671 = vmatprep.subr.mxu0 0.0
    %1672 = vmatpush1.msra.mxu0 0.0
    %1673 = vmatprep.subr.mxu0 0.0
    %1674 = vmatpush1.msra.mxu0 0.0
    %1675 = vmatprep.subr.mxu0 0.0
    %1676 = vmatpush1.msra.mxu0 0.0
    %1677 = vmatprep.subr.mxu0 0.0
    %1678 = vmatpush1.msra.mxu0 0.0
    %1679 = vmatprep.subr.mxu0 0.0
    %1680 = vmatpush1.msra.mxu0 0.0
    %1681 = vmatprep.subr.mxu0 0.0
    %1682 = vmatpush1.msra.mxu0 0.0
    %1683 = vmatprep.subr.mxu0 0.0
    %1684 = vmatpush1.msra.mxu0 0.0
    %1685 = vmatprep.subr.mxu0 0.0
    %1686 = vmatpush1.msra.mxu0 0.0
    %1687 = vmatprep.subr.mxu0 0.0
    %1688 = vmatpush1.msra.mxu0 0.0
    %1689 = vmatprep.subr.mxu0 0.0
    %1690 = vmatpush1.msra.mxu0 0.0
    %1691 = vmatprep.subr.mxu0 0.0
    %1692 = vmatpush1.msra.mxu0 0.0
    %1693 = vmatprep.subr.mxu0 0.0
    %1694 = vmatpush1.msra.mxu0 0.0
    %1695 = vmatprep.subr.mxu0 0.0
    %1696 = vmatpush1.msra.mxu0 0.0
    %1697 = vmatprep.subr.mxu0 0.0
    %1698 = vmatpush1.msra.mxu0 0.0
    %1699 = vmatprep.subr.mxu0 0.0
    %1700 = vmatpush1.msra.mxu0 0.0
    %1701 = vmatprep.mubr.f32.mxu0 0.0
    %1702 = vmatmul.mubr.f32.gmra.mrb[0].mxu0 %v1493
    %v1703 = vpop.f32.mrb[0].mxu0
    %v1704 = vadd.f32 0.0, %v1703
    %v1705 = vpop.f32.mrb[0].mxu0
    %v1706 = vadd.f32 0.0, %v1705
    %1707 = vdwg.mxu0
    %v1712 = vrot.slane %v1633, 6
    %v1713 = vrot.slane %v1635, 6
    %v1714 = vrot.slane %v1704, 6
    %v1715 = vrot.slane %v1706, 6
    %v1720 = vadd.f32 %v1498, %v1712
    %v1721 = vadd.f32 %v1499, %v1713
    %v1722 = vadd.f32 %v1500, %v1714
    %v1723 = vadd.f32 %v1501, %v1715
    %v1724 = vmul.f32 %v1720, 0.5
    %v1725 = vtanh.pop %v1724
    %v1726 = vmul.f32 %v1725, 0.5
    %v1727 = vadd.f32 %v1726, 0.5
    %v1728 = vmul.f32 %v1721, 0.5
    %v1729 = vtanh.pop %v1728
    %v1730 = vmul.f32 %v1729, 0.5
    %v1731 = vadd.f32 %v1730, 0.5
    %v1732 = vtanh.pop %v1722
    %v1733 = vmul.f32 %v1723, 0.5
    %v1734 = vtanh.pop %v1733
    %v1735 = vmul.f32 %v1734, 0.5
    %v1736 = vadd.f32 %v1735, 0.5
    %v1738 = vrot.slane %v1491, 6
    %v1740 = vmul.f32 %v1731, %v1738
    %v1741 = vmul.f32 %v1727, %v1732
    %v1742 = vadd.f32 %v1740, %v1741
    %v1743 = vtanh.pop %v1742
    %v1744 = vmul.f32 %v1736, %v1743
    %s1745 = scalar_lea.vmem [#allocation9], 10
    %1746 = vst [vmem:[%s1745 - $0x2] sm:$0xc] %v1744
    %s1747 = scalar_lea.vmem [#allocation10], 10
    %1748 = vst [vmem:[%s1747 - $0x2] sm:$0xc] %v1742
    %v1749 = vld [vmem:[#allocation2 + $0x20] sm:$0x30]
    %v1750 = vld [vmem:[#allocation2 + $0x28] sm:$0x30]
    %v1751 = vld [vmem:[#allocation2 + $0x30] sm:$0x30]
    %v1752 = vld [vmem:[#allocation2 + $0x38] sm:$0x30]
    %v1753 = vld [vmem:[#allocation8] sm:$0xff]
    %v1754 = vld [vmem:[#allocation8 + $0x8] sm:$0xff]
    %v1755 = vld [vmem:[#allocation8 + $0x10] sm:$0xff]
    %v1756 = vld [vmem:[#allocation8 + $0x18] sm:$0xff]
    %v1757 = vld [vmem:[#allocation8 + $0x20] sm:$0xff]
    %v1758 = vld [vmem:[#allocation8 + $0x28] sm:$0xff]
    %v1759 = vld [vmem:[#allocation8 + $0x30] sm:$0xff]
    %v1760 = vld [vmem:[#allocation8 + $0x38] sm:$0xff]
    %v1761 = vld [vmem:[#allocation8 + $0x40] sm:$0xff]
    %v1762 = vld [vmem:[#allocation8 + $0x48] sm:$0xff]
    %v1763 = vld [vmem:[#allocation8 + $0x50] sm:$0xff]
    %v1764 = vld [vmem:[#allocation8 + $0x58] sm:$0xff]
    %v1765 = vld [vmem:[#allocation8 + $0x60] sm:$0xff]
    %v1766 = vld [vmem:[#allocation8 + $0x68] sm:$0xff]
    %v1767 = vld [vmem:[#allocation8 + $0x70] sm:$0xff]
    %v1768 = vld [vmem:[#allocation8 + $0x78] sm:$0xff]
    %v1769 = vld [vmem:[#allocation8 + $0x80] sm:$0xff]
    %v1770 = vld [vmem:[#allocation8 + $0x88] sm:$0xff]
    %v1771 = vld [vmem:[#allocation8 + $0x90] sm:$0xff]
    %v1772 = vld [vmem:[#allocation8 + $0x98] sm:$0xff]
    %v1773 = vld [vmem:[#allocation8 + $0xa0] sm:$0xff]
    %v1774 = vld [vmem:[#allocation8 + $0xa8] sm:$0xff]
    %v1775 = vld [vmem:[#allocation8 + $0xb0] sm:$0xff]
    %v1776 = vld [vmem:[#allocation8 + $0xb8] sm:$0xff]
    %v1777 = vld [vmem:[#allocation8 + $0xc0] sm:$0xff]
    %v1778 = vld [vmem:[#allocation8 + $0xc8] sm:$0xff]
    %v1779 = vld [vmem:[#allocation8 + $0xd0] sm:$0xff]
    %v1780 = vld [vmem:[#allocation8 + $0xd8] sm:$0xff]
    %v1781 = vld [vmem:[#allocation8 + $0xe0] sm:$0xff]
    %v1782 = vld [vmem:[#allocation8 + $0xe8] sm:$0xff]
    %v1783 = vld [vmem:[#allocation8 + $0xf0] sm:$0xff]
    %v1784 = vld [vmem:[#allocation8 + $0xf8] sm:$0xff]
    %v1785 = vld [vmem:[#allocation8 + $0x100] sm:$0xff]
    %v1786 = vld [vmem:[#allocation8 + $0x108] sm:$0xff]
    %v1787 = vld [vmem:[#allocation8 + $0x110] sm:$0xff]
    %v1788 = vld [vmem:[#allocation8 + $0x118] sm:$0xff]
    %v1789 = vld [vmem:[#allocation8 + $0x120] sm:$0xff]
    %v1790 = vld [vmem:[#allocation8 + $0x128] sm:$0xff]
    %v1791 = vld [vmem:[#allocation8 + $0x130] sm:$0xff]
    %v1792 = vld [vmem:[#allocation8 + $0x138] sm:$0xff]
    %v1793 = vld [vmem:[#allocation8 + $0x140] sm:$0xff]
    %v1794 = vld [vmem:[#allocation8 + $0x148] sm:$0xff]
    %v1795 = vld [vmem:[#allocation8 + $0x150] sm:$0xff]
    %v1796 = vld [vmem:[#allocation8 + $0x158] sm:$0xff]
    %v1797 = vld [vmem:[#allocation8 + $0x160] sm:$0xff]
    %v1798 = vld [vmem:[#allocation8 + $0x168] sm:$0xff]
    %v1799 = vld [vmem:[#allocation8 + $0x170] sm:$0xff]
    %v1800 = vld [vmem:[#allocation8 + $0x178] sm:$0xff]
    %v1801 = vld [vmem:[#allocation8 + $0x180] sm:$0xff]
    %v1802 = vld [vmem:[#allocation8 + $0x188] sm:$0xff]
    %v1803 = vld [vmem:[#allocation8 + $0x190] sm:$0xff]
    %v1804 = vld [vmem:[#allocation8 + $0x198] sm:$0xff]
    %v1805 = vld [vmem:[#allocation8 + $0x1a0] sm:$0xff]
    %v1806 = vld [vmem:[#allocation8 + $0x1a8] sm:$0xff]
    %v1807 = vld [vmem:[#allocation8 + $0x1b0] sm:$0xff]
    %v1808 = vld [vmem:[#allocation8 + $0x1b8] sm:$0xff]
    %v1809 = vld [vmem:[#allocation8 + $0x1c0] sm:$0xff]
    %v1810 = vld [vmem:[#allocation8 + $0x1c8] sm:$0xff]
    %v1811 = vld [vmem:[#allocation8 + $0x1d0] sm:$0xff]
    %v1812 = vld [vmem:[#allocation8 + $0x1d8] sm:$0xff]
    %v1813 = vld [vmem:[#allocation8 + $0x1e0] sm:$0xff]
    %v1814 = vld [vmem:[#allocation8 + $0x1e8] sm:$0xff]
    %v1815 = vld [vmem:[#allocation8 + $0x1f0] sm:$0xff]
    %v1816 = vld [vmem:[#allocation8 + $0x1f8] sm:$0xff]
    %v1818 = vrot.slane %v1744, 2
    %1820 = vmatprep.subr.mxu0 %v1754
    %1821 = vmatpush1.msra.mxu0 %v1753
    %1822 = vmatprep.subr.mxu0 %v1758
    %1823 = vmatpush1.msra.mxu0 %v1757
    %1824 = vmatprep.subr.mxu0 %v1762
    %1825 = vmatpush1.msra.mxu0 %v1761
    %1826 = vmatprep.subr.mxu0 %v1766
    %1827 = vmatpush1.msra.mxu0 %v1765
    %1828 = vmatprep.subr.mxu0 %v1770
    %1829 = vmatpush1.msra.mxu0 %v1769
    %1830 = vmatprep.subr.mxu0 %v1774
    %1831 = vmatpush1.msra.mxu0 %v1773
    %1832 = vmatprep.subr.mxu0 %v1778
    %1833 = vmatpush1.msra.mxu0 %v1777
    %1834 = vmatprep.subr.mxu0 %v1782
    %1835 = vmatpush1.msra.mxu0 %v1781
    %1836 = vmatprep.subr.mxu0 %v1786
    %1837 = vmatpush1.msra.mxu0 %v1785
    %1838 = vmatprep.subr.mxu0 %v1790
    %1839 = vmatpush1.msra.mxu0 %v1789
    %1840 = vmatprep.subr.mxu0 %v1794
    %1841 = vmatpush1.msra.mxu0 %v1793
    %1842 = vmatprep.subr.mxu0 %v1798
    %1843 = vmatpush1.msra.mxu0 %v1797
    %1844 = vmatprep.subr.mxu0 %v1802
    %1845 = vmatpush1.msra.mxu0 %v1801
    %1846 = vmatprep.subr.mxu0 %v1806
    %1847 = vmatpush1.msra.mxu0 %v1805
    %1848 = vmatprep.subr.mxu0 %v1810
    %1849 = vmatpush1.msra.mxu0 %v1809
    %1850 = vmatprep.subr.mxu0 %v1814
    %1851 = vmatpush1.msra.mxu0 %v1813
    %1852 = vmatprep.subr.mxu0 0.0
    %1853 = vmatpush1.msra.mxu0 0.0
    %1854 = vmatprep.subr.mxu0 0.0
    %1855 = vmatpush1.msra.mxu0 0.0
    %1856 = vmatprep.subr.mxu0 0.0
    %1857 = vmatpush1.msra.mxu0 0.0
    %1858 = vmatprep.subr.mxu0 0.0
    %1859 = vmatpush1.msra.mxu0 0.0
    %1860 = vmatprep.subr.mxu0 0.0
    %1861 = vmatpush1.msra.mxu0 0.0
    %1862 = vmatprep.subr.mxu0 0.0
    %1863 = vmatpush1.msra.mxu0 0.0
    %1864 = vmatprep.subr.mxu0 0.0
    %1865 = vmatpush1.msra.mxu0 0.0
    %1866 = vmatprep.subr.mxu0 0.0
    %1867 = vmatpush1.msra.mxu0 0.0
    %1868 = vmatprep.subr.mxu0 0.0
    %1869 = vmatpush1.msra.mxu0 0.0
    %1870 = vmatprep.subr.mxu0 0.0
    %1871 = vmatpush1.msra.mxu0 0.0
    %1872 = vmatprep.subr.mxu0 0.0
    %1873 = vmatpush1.msra.mxu0 0.0
    %1874 = vmatprep.subr.mxu0 0.0
    %1875 = vmatpush1.msra.mxu0 0.0
    %1876 = vmatprep.subr.mxu0 0.0
    %1877 = vmatpush1.msra.mxu0 0.0
    %1878 = vmatprep.subr.mxu0 0.0
    %1879 = vmatpush1.msra.mxu0 0.0
    %1880 = vmatprep.subr.mxu0 0.0
    %1881 = vmatpush1.msra.mxu0 0.0
    %1882 = vmatprep.subr.mxu0 0.0
    %1883 = vmatpush1.msra.mxu0 0.0
    %1884 = vmatprep.mubr.f32.mxu0 0.0
    %1885 = vmatmul.mubr.f32.gmra.mrb[0].mxu0 %v1818
    %v1886 = vpop.f32.mrb[0].mxu0
    %v1887 = vadd.f32 0.0, %v1886
    %v1888 = vpop.f32.mrb[0].mxu0
    %v1889 = vadd.f32 0.0, %v1888
    %1890 = vdwg.mxu0
    %1891 = vmatprep.subr.mxu0 %v1756
    %1892 = vmatpush1.msra.mxu0 %v1755
    %1893 = vmatprep.subr.mxu0 %v1760
    %1894 = vmatpush1.msra.mxu0 %v1759
    %1895 = vmatprep.subr.mxu0 %v1764
    %1896 = vmatpush1.msra.mxu0 %v1763
    %1897 = vmatprep.subr.mxu0 %v1768
    %1898 = vmatpush1.msra.mxu0 %v1767
    %1899 = vmatprep.subr.mxu0 %v1772
    %1900 = vmatpush1.msra.mxu0 %v1771
    %1901 = vmatprep.subr.mxu0 %v1776
    %1902 = vmatpush1.msra.mxu0 %v1775
    %1903 = vmatprep.subr.mxu0 %v1780
    %1904 = vmatpush1.msra.mxu0 %v1779
    %1905 = vmatprep.subr.mxu0 %v1784
    %1906 = vmatpush1.msra.mxu0 %v1783
    %1907 = vmatprep.subr.mxu0 %v1788
    %1908 = vmatpush1.msra.mxu0 %v1787
    %1909 = vmatprep.subr.mxu0 %v1792
    %1910 = vmatpush1.msra.mxu0 %v1791
    %1911 = vmatprep.subr.mxu0 %v1796
    %1912 = vmatpush1.msra.mxu0 %v1795
    %1913 = vmatprep.subr.mxu0 %v1800
    %1914 = vmatpush1.msra.mxu0 %v1799
    %1915 = vmatprep.subr.mxu0 %v1804
    %1916 = vmatpush1.msra.mxu0 %v1803
    %1917 = vmatprep.subr.mxu0 %v1808
    %1918 = vmatpush1.msra.mxu0 %v1807
    %1919 = vmatprep.subr.mxu0 %v1812
    %1920 = vmatpush1.msra.mxu0 %v1811
    %1921 = vmatprep.subr.mxu0 %v1816
    %1922 = vmatpush1.msra.mxu0 %v1815
    %1923 = vmatprep.subr.mxu0 0.0
    %1924 = vmatpush1.msra.mxu0 0.0
    %1925 = vmatprep.subr.mxu0 0.0
    %1926 = vmatpush1.msra.mxu0 0.0
    %1927 = vmatprep.subr.mxu0 0.0
    %1928 = vmatpush1.msra.mxu0 0.0
    %1929 = vmatprep.subr.mxu0 0.0
    %1930 = vmatpush1.msra.mxu0 0.0
    %1931 = vmatprep.subr.mxu0 0.0
    %1932 = vmatpush1.msra.mxu0 0.0
    %1933 = vmatprep.subr.mxu0 0.0
    %1934 = vmatpush1.msra.mxu0 0.0
    %1935 = vmatprep.subr.mxu0 0.0
    %1936 = vmatpush1.msra.mxu0 0.0
    %1937 = vmatprep.subr.mxu0 0.0
    %1938 = vmatpush1.msra.mxu0 0.0
    %1939 = vmatprep.subr.mxu0 0.0
    %1940 = vmatpush1.msra.mxu0 0.0
    %1941 = vmatprep.subr.mxu0 0.0
    %1942 = vmatpush1.msra.mxu0 0.0
    %1943 = vmatprep.subr.mxu0 0.0
    %1944 = vmatpush1.msra.mxu0 0.0
    %1945 = vmatprep.subr.mxu0 0.0
    %1946 = vmatpush1.msra.mxu0 0.0
    %1947 = vmatprep.subr.mxu0 0.0
    %1948 = vmatpush1.msra.mxu0 0.0
    %1949 = vmatprep.subr.mxu0 0.0
    %1950 = vmatpush1.msra.mxu0 0.0
    %1951 = vmatprep.subr.mxu0 0.0
    %1952 = vmatpush1.msra.mxu0 0.0
    %1953 = vmatprep.subr.mxu0 0.0
    %1954 = vmatpush1.msra.mxu0 0.0
    %1955 = vmatprep.mubr.f32.mxu0 0.0
    %1956 = vmatmul.mubr.f32.gmra.mrb[0].mxu0 %v1818
    %v1957 = vpop.f32.mrb[0].mxu0
    %v1958 = vadd.f32 0.0, %v1957
    %v1959 = vpop.f32.mrb[0].mxu0
    %v1960 = vadd.f32 0.0, %v1959
    %1961 = vdwg.mxu0
    %v1966 = vrot.slane %v1887, 4
    %v1967 = vrot.slane %v1889, 4
    %v1968 = vrot.slane %v1958, 4
    %v1969 = vrot.slane %v1960, 4
    %v1974 = vadd.f32 %v1749, %v1966
    %v1975 = vadd.f32 %v1750, %v1967
    %v1976 = vadd.f32 %v1751, %v1968
    %v1977 = vadd.f32 %v1752, %v1969
    %v1978 = vmul.f32 %v1974, 0.5
    %v1979 = vtanh.pop %v1978
    %v1980 = vmul.f32 %v1979, 0.5
    %v1981 = vadd.f32 %v1980, 0.5
    %v1982 = vmul.f32 %v1975, 0.5
    %v1983 = vtanh.pop %v1982
    %v1984 = vmul.f32 %v1983, 0.5
    %v1985 = vadd.f32 %v1984, 0.5
    %v1986 = vtanh.pop %v1976
    %v1987 = vmul.f32 %v1977, 0.5
    %v1988 = vtanh.pop %v1987
    %v1989 = vmul.f32 %v1988, 0.5
    %v1990 = vadd.f32 %v1989, 0.5
    %v1992 = vrot.slane %v1742, 6
    %v1994 = vmul.f32 %v1985, %v1992
    %v1995 = vmul.f32 %v1981, %v1986
    %v1996 = vadd.f32 %v1994, %v1995
    %v1997 = vtanh.pop %v1996
    %v1998 = vmul.f32 %v1990, %v1997
    %s1999 = scalar_lea.vmem [#allocation9], 12
    %2000 = vst [vmem:[%s1999 - $0x4] sm:$0x30] %v1998
    %s2001 = scalar_lea.vmem [#allocation10], 12
    %2002 = vst [vmem:[%s2001 - $0x4] sm:$0x30] %v1996
    %v2003 = vld [vmem:[#allocation2 + $0x20] sm:$0xc0]
    %v2004 = vld [vmem:[#allocation2 + $0x28] sm:$0xc0]
    %v2005 = vld [vmem:[#allocation2 + $0x30] sm:$0xc0]
    %v2006 = vld [vmem:[#allocation2 + $0x38] sm:$0xc0]
    %v2007 = vld [vmem:[#allocation8] sm:$0xff]
    %v2008 = vld [vmem:[#allocation8 + $0x8] sm:$0xff]
    %v2009 = vld [vmem:[#allocation8 + $0x10] sm:$0xff]
    %v2010 = vld [vmem:[#allocation8 + $0x18] sm:$0xff]
    %v2011 = vld [vmem:[#allocation8 + $0x20] sm:$0xff]
    %v2012 = vld [vmem:[#allocation8 + $0x28] sm:$0xff]
    %v2013 = vld [vmem:[#allocation8 + $0x30] sm:$0xff]
    %v2014 = vld [vmem:[#allocation8 + $0x38] sm:$0xff]
    %v2015 = vld [vmem:[#allocation8 + $0x40] sm:$0xff]
    %v2016 = vld [vmem:[#allocation8 + $0x48] sm:$0xff]
    %v2017 = vld [vmem:[#allocation8 + $0x50] sm:$0xff]
    %v2018 = vld [vmem:[#allocation8 + $0x58] sm:$0xff]
    %v2019 = vld [vmem:[#allocation8 + $0x60] sm:$0xff]
    %v2020 = vld [vmem:[#allocation8 + $0x68] sm:$0xff]
    %v2021 = vld [vmem:[#allocation8 + $0x70] sm:$0xff]
    %v2022 = vld [vmem:[#allocation8 + $0x78] sm:$0xff]
    %v2023 = vld [vmem:[#allocation8 + $0x80] sm:$0xff]
    %v2024 = vld [vmem:[#allocation8 + $0x88] sm:$0xff]
    %v2025 = vld [vmem:[#allocation8 + $0x90] sm:$0xff]
    %v2026 = vld [vmem:[#allocation8 + $0x98] sm:$0xff]
    %v2027 = vld [vmem:[#allocation8 + $0xa0] sm:$0xff]
    %v2028 = vld [vmem:[#allocation8 + $0xa8] sm:$0xff]
    %v2029 = vld [vmem:[#allocation8 + $0xb0] sm:$0xff]
    %v2030 = vld [vmem:[#allocation8 + $0xb8] sm:$0xff]
    %v2031 = vld [vmem:[#allocation8 + $0xc0] sm:$0xff]
    %v2032 = vld [vmem:[#allocation8 + $0xc8] sm:$0xff]
    %v2033 = vld [vmem:[#allocation8 + $0xd0] sm:$0xff]
    %v2034 = vld [vmem:[#allocation8 + $0xd8] sm:$0xff]
    %v2035 = vld [vmem:[#allocation8 + $0xe0] sm:$0xff]
    %v2036 = vld [vmem:[#allocation8 + $0xe8] sm:$0xff]
    %v2037 = vld [vmem:[#allocation8 + $0xf0] sm:$0xff]
    %v2038 = vld [vmem:[#allocation8 + $0xf8] sm:$0xff]
    %v2039 = vld [vmem:[#allocation8 + $0x100] sm:$0xff]
    %v2040 = vld [vmem:[#allocation8 + $0x108] sm:$0xff]
    %v2041 = vld [vmem:[#allocation8 + $0x110] sm:$0xff]
    %v2042 = vld [vmem:[#allocation8 + $0x118] sm:$0xff]
    %v2043 = vld [vmem:[#allocation8 + $0x120] sm:$0xff]
    %v2044 = vld [vmem:[#allocation8 + $0x128] sm:$0xff]
    %v2045 = vld [vmem:[#allocation8 + $0x130] sm:$0xff]
    %v2046 = vld [vmem:[#allocation8 + $0x138] sm:$0xff]
    %v2047 = vld [vmem:[#allocation8 + $0x140] sm:$0xff]
    %v2048 = vld [vmem:[#allocation8 + $0x148] sm:$0xff]
    %v2049 = vld [vmem:[#allocation8 + $0x150] sm:$0xff]
    %v2050 = vld [vmem:[#allocation8 + $0x158] sm:$0xff]
    %v2051 = vld [vmem:[#allocation8 + $0x160] sm:$0xff]
    %v2052 = vld [vmem:[#allocation8 + $0x168] sm:$0xff]
    %v2053 = vld [vmem:[#allocation8 + $0x170] sm:$0xff]
    %v2054 = vld [vmem:[#allocation8 + $0x178] sm:$0xff]
    %v2055 = vld [vmem:[#allocation8 + $0x180] sm:$0xff]
    %v2056 = vld [vmem:[#allocation8 + $0x188] sm:$0xff]
    %v2057 = vld [vmem:[#allocation8 + $0x190] sm:$0xff]
    %v2058 = vld [vmem:[#allocation8 + $0x198] sm:$0xff]
    %v2059 = vld [vmem:[#allocation8 + $0x1a0] sm:$0xff]
    %v2060 = vld [vmem:[#allocation8 + $0x1a8] sm:$0xff]
    %v2061 = vld [vmem:[#allocation8 + $0x1b0] sm:$0xff]
    %v2062 = vld [vmem:[#allocation8 + $0x1b8] sm:$0xff]
    %v2063 = vld [vmem:[#allocation8 + $0x1c0] sm:$0xff]
    %v2064 = vld [vmem:[#allocation8 + $0x1c8] sm:$0xff]
    %v2065 = vld [vmem:[#allocation8 + $0x1d0] sm:$0xff]
    %v2066 = vld [vmem:[#allocation8 + $0x1d8] sm:$0xff]
    %v2067 = vld [vmem:[#allocation8 + $0x1e0] sm:$0xff]
    %v2068 = vld [vmem:[#allocation8 + $0x1e8] sm:$0xff]
    %v2069 = vld [vmem:[#allocation8 + $0x1f0] sm:$0xff]
    %v2070 = vld [vmem:[#allocation8 + $0x1f8] sm:$0xff]
    %v2072 = vrot.slane %v1998, 4
    %2074 = vmatprep.subr.mxu0 %v2008
    %2075 = vmatpush1.msra.mxu0 %v2007
    %2076 = vmatprep.subr.mxu0 %v2012
    %2077 = vmatpush1.msra.mxu0 %v2011
    %2078 = vmatprep.subr.mxu0 %v2016
    %2079 = vmatpush1.msra.mxu0 %v2015
    %2080 = vmatprep.subr.mxu0 %v2020
    %2081 = vmatpush1.msra.mxu0 %v2019
    %2082 = vmatprep.subr.mxu0 %v2024
    %2083 = vmatpush1.msra.mxu0 %v2023
    %2084 = vmatprep.subr.mxu0 %v2028
    %2085 = vmatpush1.msra.mxu0 %v2027
    %2086 = vmatprep.subr.mxu0 %v2032
    %2087 = vmatpush1.msra.mxu0 %v2031
    %2088 = vmatprep.subr.mxu0 %v2036
    %2089 = vmatpush1.msra.mxu0 %v2035
    %2090 = vmatprep.subr.mxu0 %v2040
    %2091 = vmatpush1.msra.mxu0 %v2039
    %2092 = vmatprep.subr.mxu0 %v2044
    %2093 = vmatpush1.msra.mxu0 %v2043
    %2094 = vmatprep.subr.mxu0 %v2048
    %2095 = vmatpush1.msra.mxu0 %v2047
    %2096 = vmatprep.subr.mxu0 %v2052
    %2097 = vmatpush1.msra.mxu0 %v2051
    %2098 = vmatprep.subr.mxu0 %v2056
    %2099 = vmatpush1.msra.mxu0 %v2055
    %2100 = vmatprep.subr.mxu0 %v2060
    %2101 = vmatpush1.msra.mxu0 %v2059
    %2102 = vmatprep.subr.mxu0 %v2064
    %2103 = vmatpush1.msra.mxu0 %v2063
    %2104 = vmatprep.subr.mxu0 %v2068
    %2105 = vmatpush1.msra.mxu0 %v2067
    %2106 = vmatprep.subr.mxu0 0.0
    %2107 = vmatpush1.msra.mxu0 0.0
    %2108 = vmatprep.subr.mxu0 0.0
    %2109 = vmatpush1.msra.mxu0 0.0
    %2110 = vmatprep.subr.mxu0 0.0
    %2111 = vmatpush1.msra.mxu0 0.0
    %2112 = vmatprep.subr.mxu0 0.0
    %2113 = vmatpush1.msra.mxu0 0.0
    %2114 = vmatprep.subr.mxu0 0.0
    %2115 = vmatpush1.msra.mxu0 0.0
    %2116 = vmatprep.subr.mxu0 0.0
    %2117 = vmatpush1.msra.mxu0 0.0
    %2118 = vmatprep.subr.mxu0 0.0
    %2119 = vmatpush1.msra.mxu0 0.0
    %2120 = vmatprep.subr.mxu0 0.0
    %2121 = vmatpush1.msra.mxu0 0.0
    %2122 = vmatprep.subr.mxu0 0.0
    %2123 = vmatpush1.msra.mxu0 0.0
    %2124 = vmatprep.subr.mxu0 0.0
    %2125 = vmatpush1.msra.mxu0 0.0
    %2126 = vmatprep.subr.mxu0 0.0
    %2127 = vmatpush1.msra.mxu0 0.0
    %2128 = vmatprep.subr.mxu0 0.0
    %2129 = vmatpush1.msra.mxu0 0.0
    %2130 = vmatprep.subr.mxu0 0.0
    %2131 = vmatpush1.msra.mxu0 0.0
    %2132 = vmatprep.subr.mxu0 0.0
    %2133 = vmatpush1.msra.mxu0 0.0
    %2134 = vmatprep.subr.mxu0 0.0
    %2135 = vmatpush1.msra.mxu0 0.0
    %2136 = vmatprep.subr.mxu0 0.0
    %2137 = vmatpush1.msra.mxu0 0.0
    %2138 = vmatprep.mubr.f32.mxu0 0.0
    %2139 = vmatmul.mubr.f32.gmra.mrb[0].mxu0 %v2072
    %v2140 = vpop.f32.mrb[0].mxu0
    %v2141 = vadd.f32 0.0, %v2140
    %v2142 = vpop.f32.mrb[0].mxu0
    %v2143 = vadd.f32 0.0, %v2142
    %2144 = vdwg.mxu0
    %2145 = vmatprep.subr.mxu0 %v2010
    %2146 = vmatpush1.msra.mxu0 %v2009
    %2147 = vmatprep.subr.mxu0 %v2014
    %2148 = vmatpush1.msra.mxu0 %v2013
    %2149 = vmatprep.subr.mxu0 %v2018
    %2150 = vmatpush1.msra.mxu0 %v2017
    %2151 = vmatprep.subr.mxu0 %v2022
    %2152 = vmatpush1.msra.mxu0 %v2021
    %2153 = vmatprep.subr.mxu0 %v2026
    %2154 = vmatpush1.msra.mxu0 %v2025
    %2155 = vmatprep.subr.mxu0 %v2030
    %2156 = vmatpush1.msra.mxu0 %v2029
    %2157 = vmatprep.subr.mxu0 %v2034
    %2158 = vmatpush1.msra.mxu0 %v2033
    %2159 = vmatprep.subr.mxu0 %v2038
    %2160 = vmatpush1.msra.mxu0 %v2037
    %2161 = vmatprep.subr.mxu0 %v2042
    %2162 = vmatpush1.msra.mxu0 %v2041
    %2163 = vmatprep.subr.mxu0 %v2046
    %2164 = vmatpush1.msra.mxu0 %v2045
    %2165 = vmatprep.subr.mxu0 %v2050
    %2166 = vmatpush1.msra.mxu0 %v2049
    %2167 = vmatprep.subr.mxu0 %v2054
    %2168 = vmatpush1.msra.mxu0 %v2053
    %2169 = vmatprep.subr.mxu0 %v2058
    %2170 = vmatpush1.msra.mxu0 %v2057
    %2171 = vmatprep.subr.mxu0 %v2062
    %2172 = vmatpush1.msra.mxu0 %v2061
    %2173 = vmatprep.subr.mxu0 %v2066
    %2174 = vmatpush1.msra.mxu0 %v2065
    %2175 = vmatprep.subr.mxu0 %v2070
    %2176 = vmatpush1.msra.mxu0 %v2069
    %2177 = vmatprep.subr.mxu0 0.0
    %2178 = vmatpush1.msra.mxu0 0.0
    %2179 = vmatprep.subr.mxu0 0.0
    %2180 = vmatpush1.msra.mxu0 0.0
    %2181 = vmatprep.subr.mxu0 0.0
    %2182 = vmatpush1.msra.mxu0 0.0
    %2183 = vmatprep.subr.mxu0 0.0
    %2184 = vmatpush1.msra.mxu0 0.0
    %2185 = vmatprep.subr.mxu0 0.0
    %2186 = vmatpush1.msra.mxu0 0.0
    %2187 = vmatprep.subr.mxu0 0.0
    %2188 = vmatpush1.msra.mxu0 0.0
    %2189 = vmatprep.subr.mxu0 0.0
    %2190 = vmatpush1.msra.mxu0 0.0
    %2191 = vmatprep.subr.mxu0 0.0
    %2192 = vmatpush1.msra.mxu0 0.0
    %2193 = vmatprep.subr.mxu0 0.0
    %2194 = vmatpush1.msra.mxu0 0.0
    %2195 = vmatprep.subr.mxu0 0.0
    %2196 = vmatpush1.msra.mxu0 0.0
    %2197 = vmatprep.subr.mxu0 0.0
    %2198 = vmatpush1.msra.mxu0 0.0
    %2199 = vmatprep.subr.mxu0 0.0
    %2200 = vmatpush1.msra.mxu0 0.0
    %2201 = vmatprep.subr.mxu0 0.0
    %2202 = vmatpush1.msra.mxu0 0.0
    %2203 = vmatprep.subr.mxu0 0.0
    %2204 = vmatpush1.msra.mxu0 0.0
    %2205 = vmatprep.subr.mxu0 0.0
    %2206 = vmatpush1.msra.mxu0 0.0
    %2207 = vmatprep.subr.mxu0 0.0
    %2208 = vmatpush1.msra.mxu0 0.0
    %2209 = vmatprep.mubr.f32.mxu0 0.0
    %2210 = vmatmul.mubr.f32.gmra.mrb[0].mxu0 %v2072
    %v2211 = vpop.f32.mrb[0].mxu0
    %v2212 = vadd.f32 0.0, %v2211
    %v2213 = vpop.f32.mrb[0].mxu0
    %v2214 = vadd.f32 0.0, %v2213
    %2215 = vdwg.mxu0
    %v2220 = vrot.slane %v2141, 2
    %v2221 = vrot.slane %v2143, 2
    %v2222 = vrot.slane %v2212, 2
    %v2223 = vrot.slane %v2214, 2
    %v2228 = vadd.f32 %v2003, %v2220
    %v2229 = vadd.f32 %v2004, %v2221
    %v2230 = vadd.f32 %v2005, %v2222
    %v2231 = vadd.f32 %v2006, %v2223
    %v2232 = vmul.f32 %v2228, 0.5
    %v2233 = vtanh.pop %v2232
    %v2234 = vmul.f32 %v2233, 0.5
    %v2235 = vadd.f32 %v2234, 0.5
    %v2236 = vmul.f32 %v2229, 0.5
    %v2237 = vtanh.pop %v2236
    %v2238 = vmul.f32 %v2237, 0.5
    %v2239 = vadd.f32 %v2238, 0.5
    %v2240 = vtanh.pop %v2230
    %v2241 = vmul.f32 %v2231, 0.5
    %v2242 = vtanh.pop %v2241
    %v2243 = vmul.f32 %v2242, 0.5
    %v2244 = vadd.f32 %v2243, 0.5
    %v2246 = vrot.slane %v1996, 6
    %v2248 = vmul.f32 %v2239, %v2246
    %v2249 = vmul.f32 %v2235, %v2240
    %v2250 = vadd.f32 %v2248, %v2249
    %v2251 = vtanh.pop %v2250
    %v2252 = vmul.f32 %v2244, %v2251
    %s2253 = scalar_lea.vmem [#allocation9], 14
    %2254 = vst [vmem:[%s2253 - $0x6] sm:$0xc0] %v2252
    %s2255 = scalar_lea.vmem [#allocation10], 14
    %2256 = vst [vmem:[%s2255 - $0x6] sm:$0xc0] %v2250
    // Predicated region
    $region30: #{tpu_custom_call.1} parent=1 // pred_check
      _
    $region31: #{tpu_custom_call.1} parent=1 // pred_check_branch
      %2258 = sbr.rel (0) target = $region33
    $region32: #{tpu_custom_call.1} parent=1 // pred_region
      %s2260 = ssub.s32 256, 256
      %2261 = vsyncadd [#allocation5], %s2260
      %s2262 = sshll.u32 [#allocation9], 4
      %s2263 = int_to_ptr.vmem [resolvable:$true] %s2262
      %2268 = dma.vmem_to_hbm [thread:$0]  %s2263, 256, %s4, [#allocation5], 32, 32, 2
    $region33: #{tpu_custom_call.1} parent=1 // pred_fallthru
      _
    // Predicated region
    $region34: #{tpu_custom_call.1} parent=1 // pred_check
      _
    $region35: #{tpu_custom_call.1} parent=1 // pred_check_branch
      %2270 = sbr.rel (0) target = $region37
    $region36: #{tpu_custom_call.1} parent=1 // pred_region
      %s2272 = ssub.s32 256, 256
      %2273 = vsyncadd [#allocation11], %s2272
      %s2274 = sshll.u32 [#allocation10], 4
      %s2275 = int_to_ptr.vmem [resolvable:$true] %s2274
      %2280 = dma.vmem_to_hbm [thread:$0]  %s2275, 256, %s5, [#allocation11], 32, 32, 2
    $region37: #{tpu_custom_call.1} parent=1 // pred_fallthru
      _
    // Predicated region
    $region38: #{tpu_custom_call.1} parent=1 // pred_check
      _
    $region39: #{tpu_custom_call.1} parent=1 // pred_check_branch
      %2282 = sbr.rel (0) target = $region41
    $region40: #{tpu_custom_call.1} parent=1 // pred_region
      %2283 = dma.done [#allocation5], 256
    $region41: #{tpu_custom_call.1} parent=1 // pred_fallthru
      _
    // Predicated region
    $region42: #{tpu_custom_call.1} parent=1 // pred_check
      _
    $region43: #{tpu_custom_call.1} parent=1 // pred_check_branch
      %2285 = sbr.rel (0) target = $region45
    $region44: #{tpu_custom_call.1} parent=1 // pred_region
      %2286 = dma.done [#allocation11], 256
    $region45: #{tpu_custom_call.1} parent=1 // pred_fallthru
      _
    %2287 = vsyncpa [#allocation4], 1
    %2288 = vsyncpa [#allocation7], 1
    %2289 = vsyncpa [#allocation5], 1
    %2290 = vsyncpa [#allocation11], 1

</llo_original>
